<compile_context>
chip_gen: v7x
topology: tpu7x:2x2x1
jax: 0.10.0
libtpu: 0.0.40
codegen_flags: <defaults>
</compile_context>

<pallas_src>
import math
import functools

import jax
import jax.numpy as jnp
from jax import lax
from jax.experimental import pallas as pl
from jax.experimental.pallas import tpu as pltpu

_HAS_BUFFERED = hasattr(pl, "Buffered")


# ----------------------------------------------------------------------------
# Pallas kernel: b_blk sequences per grid step, flattened to (b_blk*s_pad, h_pad).
# ----------------------------------------------------------------------------
def _encoder_kernel(x_ref, bias_ref, ln_w_ref, ln_b_ref,
                    wqkv_ref, bqkv_ref, wo_ref, bo_ref,
                    w1_ref, b1_ref, w2_ref, b2_ref,
                    out_ref, *, b_blk, s_pad, hid, h_pad, inv_scale, eps):
    M = b_blk * s_pad
    x = x_ref[...]                          # (M, h_pad) fp32; cls+PE applied

    ln_w = ln_w_ref[...]                    # (1, h_pad) fp32 (zero in pad lanes)
    ln_b = ln_b_ref[...]
    inv_h = jnp.float32(1.0 / hid)          # stats use the TRUE hidden width

    if h_pad != hid:
        lane = lax.broadcasted_iota(jnp.int32, (1, h_pad), 1)
        lane_mask = (lane < hid).astype(jnp.float32)
    else:
        lane_mask = None

    def layer_norm(v):                      # fp32 stats (VPU/EUP path)
        mu = jnp.sum(v, axis=-1, keepdims=True) * inv_h   # pad lanes are zero
        d = v - mu
        if lane_mask is not None:
            d = d * lane_mask               # exclude pad lanes from variance
        var = jnp.sum(d * d, axis=-1, keepdims=True) * inv_h
        return d * lax.rsqrt(var + eps) * ln_w + ln_b

    z = layer_norm(x)                       # shared LayerNorm (used twice)
    z_bf = z.astype(jnp.bfloat16)

    # Fused QKV projection: single MXU pass, N = 3*h_pad (bf16 in, fp32 accum).
    qkv = jnp.dot(z_bf, wqkv_ref[...],
                  preferred_element_type=jnp.float32) + bqkv_ref[...]  # (M, 3h)
    # Pre-scale q (one multiply on (M,H) instead of dividing (S,S) logits).
    # h_pad is a multiple of 128, so these lane slices are aligned.
    q = (qkv[:, 0:h_pad] * inv_scale).astype(jnp.bfloat16).reshape(b_blk, s_pad, h_pad)
    k = qkv[:, h_pad:2 * h_pad].astype(jnp.bfloat16).reshape(b_blk, s_pad, h_pad)
    v = qkv[:, 2 * h_pad:3 * h_pad].astype(jnp.bfloat16).reshape(b_blk, s_pad, h_pad)

    # Batched attention; contraction on the last dim (no explicit transpose).
    # TODO(synk): for large S, exploit the banded src_mask (mask_range=20) with
    # a flash-style KV-block loop instead of dense (s_pad, s_pad) logits.
    attn = jnp.einsum('bqd,bkd->bqk', q, k,
                      preferred_element_type=jnp.float32)              # fp32
    attn = attn + bias_ref[...].astype(jnp.float32)   # additive bias (0 / -1e10)
    attn = attn - jnp.max(attn, axis=-1, keepdims=True)
    p = jnp.exp(attn)
    p = p * pl.reciprocal(jnp.sum(p, axis=-1, keepdims=True), approx=True)

    ctx = jnp.einsum('bqk,bkd->bqd', p.astype(jnp.bfloat16), v,
                     preferred_element_type=jnp.float32)               # (b,s,h)
    sa = jnp.dot(ctx.reshape(M, h_pad).astype(jnp.bfloat16), wo_ref[...],
                 preferred_element_type=jnp.float32) + bo_ref[...]     # (M, h)

    zsa = layer_norm(z + sa)                # same LayerNorm params, as in PyTorch
    zsa_bf = zsa.astype(jnp.bfloat16)

    # MLP: Linear -> exact GELU (erf, fp32) -> Linear.
    h = jnp.dot(zsa_bf, w1_ref[...],
                preferred_element_type=jnp.float32) + b1_ref[...]
    h = 0.5 * h * (1.0 + lax.erf(h * jnp.float32(1.0 / math.sqrt(2.0))))
    h = jnp.dot(h.astype(jnp.bfloat16), w2_ref[...],
                preferred_element_type=jnp.float32) + b2_ref[...]

    # Lane-dense store: h_pad % 128 == 0 (pad lanes hold exact zeros, sliced off
    # in the wrapper).
    out_ref[...] = zsa + h


# ----------------------------------------------------------------------------
# Parameter / buffer construction (deterministic, synthetic).
# ----------------------------------------------------------------------------
def init_params(key, hid_dim, max_len=150, period=1.0):
    ks = jax.random.split(key, 13)
    H = hid_dim
    std = 0.02
    p = {
        "ln_w": jnp.ones((1, H), jnp.float32),
        "ln_b": jnp.zeros((1, H), jnp.float32),
        # fc_qkv: PyTorch weight (3H, H); stored as three transposed H-chunks.
        "wq": jax.random.normal(ks[0], (H, H), jnp.float32) * std,
        "bq": jax.random.normal(ks[1], (1, H), jnp.float32) * std,
        "wk": jax.random.normal(ks[2], (H, H), jnp.float32) * std,
        "bk": jax.random.normal(ks[3], (1, H), jnp.float32) * std,
        "wv": jax.random.normal(ks[4], (H, H), jnp.float32) * std,
        "bv": jax.random.normal(ks[5], (1, H), jnp.float32) * std,
        "wo": jax.random.normal(ks[6], (H, H), jnp.float32) * std,
        "bo": jax.random.normal(ks[7], (1, H), jnp.float32) * std,
        "w1": jax.random.normal(ks[8], (H, H), jnp.float32) * std,
        "b1": jax.random.normal(ks[9], (1, H), jnp.float32) * std,
        "w2": jax.random.normal(ks[10], (H, H), jnp.float32) * std,
        "b2": jax.random.normal(ks[11], (1, H), jnp.float32) * std,
        "cls_token": jax.random.normal(ks[12], (1, H), jnp.float32),
    }
    # ConstantPE buffer, identical construction to the PyTorch module.
    pos = 2.0 * jnp.pi * jnp.arange(max_len, dtype=jnp.float32)[:, None] / period
    div = jnp.exp(jnp.arange(0, H, 2, dtype=jnp.float32) * (-jnp.log(10000.0) / H))
    pe = jnp.zeros((max_len, H), jnp.float32)
    pe = pe.at[:, 0::2].set(jnp.sin(pos * div))
    pe = pe.at[:, 1::2].set(jnp.cos(pos * div))
    p["pe"] = pe
    return p


def prepare_weights(params):
    """One-time prep (hoisted out of the per-call path): pad H to a multiple of
    128 (zero pad), fuse QKV, and cast matmul weights to bf16."""
    H = params["wq"].shape[0]
    h_pad = pl.cdiv(H, 128) * 128
    ph = h_pad - H

    pad_m = lambda w: jnp.pad(w, ((0, ph), (0, ph)))     # (H,H) -> (h_pad,h_pad)
    pad_v = lambda b: jnp.pad(b, ((0, 0), (0, ph)))      # (1,H) -> (1,h_pad)

    wqkv = jnp.concatenate([pad_m(params["wq"]), pad_m(params["wk"]),
                            pad_m(params["wv"])], axis=1).astype(jnp.bfloat16)
    bqkv = jnp.concatenate([pad_v(params["bq"]), pad_v(params["bk"]),
                            pad_v(params["bv"])], axis=1)
    return {
        "wqkv": wqkv, "bqkv": bqkv,
        "wo": pad_m(params["wo"]).astype(jnp.bfloat16), "bo": pad_v(params["bo"]),
        "w1": pad_m(params["w1"]).astype(jnp.bfloat16), "b1": pad_v(params["b1"]),
        "w2": pad_m(params["w2"]).astype(jnp.bfloat16), "b2": pad_v(params["b2"]),
        "ln_w": pad_v(params["ln_w"]), "ln_b": pad_v(params["ln_b"]),
        "cls": pad_v(params["cls_token"]),
        "pe": jnp.pad(params["pe"], ((0, 0), (0, ph))),
    }


def build_mask_bias(size, size_pad, mask_range=20):
    """Additive attention bias: 0 where the banded src_mask allows, -1e10 where
    masked; padded key columns / query rows are fully masked."""
    rows = jnp.arange(size)[:, None]
    cols = jnp.arange(size)[None, :]
    head = jnp.maximum(rows - mask_range, 0)
    tail = rows + mask_range
    unmasked = ((cols >= head) & (cols < tail)) | (rows == 0)
    bias = jnp.where(unmasked, 0.0, -1e10).astype(jnp.float32)
    full = jnp.full((size_pad, size_pad), jnp.float32(-1e10))
    return full.at[:size, :size].set(bias)


def build_src_mask(size, mask_range=20):
    """Boolean (int) version of the banded mask, for the pure-JAX reference."""
    rows = jnp.arange(size)[:, None]
    cols = jnp.arange(size)[None, :]
    head = jnp.maximum(rows - mask_range, 0)
    tail = rows + mask_range
    unmasked = ((cols >= head) & (cols < tail)) | (rows == 0)
    return (~unmasked).astype(jnp.int32)


# ----------------------------------------------------------------------------
# Generation-aware knobs (v7x: 64 MiB VMEM, 2 TCs; v5e/v6e: 128 MiB, 1 TC).
# ----------------------------------------------------------------------------
def _device_kind():
    try:
        return jax.devices()[0].device_kind.lower()
    except Exception:
        return ""


def _is_v7(kind):
    return ("v7" in kind) or ("7x" in kind)


def _vmem_limit_bytes(kind):
    if _is_v7(kind):
        return 52 * 1024 * 1024          # 64 MiB physical; leave Mosaic headroom
    if ("v5" in kind) or ("v6" in kind):
        return 100 * 1024 * 1024         # 128 MiB physical
    return 64 * 1024 * 1024              # conservative default (ran clean before)


def _select_b_blk(B, s_pad, h_pad, kind, requested):
    if requested is None:
        target_rows = 256 if _is_v7(kind) else 512    # fat, 128-aligned M tiles
        b_blk = max(1, target_rows // s_pad)
    else:
        b_blk = requested
    b_blk = max(1, min(b_blk, B))
    if _is_v7(kind) and B >= 2:
        # Guarantee >= 2 grid steps so the "parallel" axis spans both TCs.
        b_blk = min(b_blk, max(1, pl.cdiv(B, 2)))

    limit = _vmem_limit_bytes(kind)

    def vmem_estimate(bb):               # rough per-step working set
        m = bb * s_pad
        return (2 * 2 * m * h_pad * 4                     # x + out (2 buffers each)
                + m * 3 * h_pad * 4 + 3 * m * h_pad * 2   # qkv fp32 + bf16 q/k/v
                + 2 * bb * s_pad * s_pad * 4              # attn logits + p (fp32)
                + 2 * m * h_pad * 4                       # MLP hidden / residual
                + 6 * h_pad * h_pad * 2 + s_pad * s_pad * 2)  # resident weights+bias
    while b_blk > 1 and vmem_estimate(b_blk) > int(0.7 * limit):
        b_blk = max(1, b_blk // 2)
    return b_blk


# ----------------------------------------------------------------------------
# Wrapper: glue (transpose / cls concat / PE add / padding) + pallas_call.
# ----------------------------------------------------------------------------
def _const_spec(shape, single_buffer):
    # Resident operand (constant index map): fetched once -> single VMEM buffer.
    if single_buffer and _HAS_BUFFERED:
        return pl.BlockSpec(shape, lambda i: (0, 0), pipeline_mode=pl.Buffered(1))
    return pl.BlockSpec(shape, lambda i: (0, 0))


@functools.partial(jax.jit,
                   static_argnames=("s_pad", "b_blk", "vmem_limit", "single_buffer"))
def _forward_impl(z, weights, *, s_pad, b_blk, vmem_limit, single_buffer):
    S0, B, H = z.shape
    S = S0 + 1
    h_pad = weights["wqkv"].shape[0]
    ph = h_pad - H

    x = jnp.transpose(z, (1, 0, 2))                                   # (B, S0, H)
    x = jnp.pad(x, ((0, 0), (0, 0), (0, ph)))                         # pad lanes
    cls = jnp.broadcast_to(weights["cls"][None, :, :], (B, 1, h_pad))
    x = jnp.concatenate([cls, x], axis=1)                             # (B, S, hp)
    # ConstantPE is called with batch_first=False on a batch-first tensor, so
    # the PE row is indexed by the *batch* index — reproduced exactly here.
    x = x + weights["pe"][:B][:, None, :]

    # Padding: S -> multiple of 16 (bf16 sublane packing => layout-trivial
    # in-kernel reshapes), B -> multiple of b_blk.  Padded rows are masked /
    # sliced off below.
    b_pad = pl.cdiv(B, b_blk) * b_blk
    x = jnp.pad(x, ((0, b_pad - B), (0, s_pad - S), (0, 0)))
    x2 = x.reshape(b_pad * s_pad, h_pad)                              # 2-D slab

    bias = build_mask_bias(S, s_pad).astype(jnp.bfloat16)             # O(S^2)/2

    kernel = functools.partial(_encoder_kernel, b_blk=b_blk, s_pad=s_pad,
                               hid=H, h_pad=h_pad,
                               inv_scale=1.0 / math.sqrt(float(H)), eps=1e-5)
    m_blk = b_blk * s_pad
    csp = functools.partial(_const_spec, single_buffer=single_buffer)

    # TODO(synk): optionally stream x2/out2 as bf16 to halve HBM traffic on
    # v5e/v6e (fp32 kept here to preserve residual-path precision).
    out2 = pl.pallas_call(
        kernel,
        out_shape=jax.ShapeDtypeStruct((b_pad * s_pad, h_pad), jnp.float32),
        grid=(b_pad // b_blk,),
        in_specs=[
            pl.BlockSpec((m_blk, h_pad), lambda i: (i, 0)),   # x (flattened rows)
            csp((s_pad, s_pad)),                              # mask bias (bf16)
            csp((1, h_pad)),                                  # ln_w
            csp((1, h_pad)),                                  # ln_b
            csp((h_pad, 3 * h_pad)),                          # wqkv (bf16, fused)
            csp((1, 3 * h_pad)),                              # bqkv
            csp((h_pad, h_pad)),                              # wo (bf16)
            csp((1, h_pad)),                                  # bo
            csp((h_pad, h_pad)),                              # w1 (bf16)
            csp((1, h_pad)),                                  # b1
            csp((h_pad, h_pad)),                              # w2 (bf16)
            csp((1, h_pad)),                                  # b2
        ],
        out_specs=pl.BlockSpec((m_blk, h_pad), lambda i: (i, 0)),
        compiler_params=pltpu.CompilerParams(
            dimension_semantics=("parallel",),
            vmem_limit_bytes=vmem_limit),
    )(x2, bias, weights["ln_w"], weights["ln_b"],
      weights["wqkv"], weights["bqkv"], weights["wo"], weights["bo"],
      weights["w1"], weights["b1"], weights["w2"], weights["b2"])

    out = out2.reshape(b_pad, s_pad, h_pad)[:B, :S, :H]
    return jnp.transpose(out, (1, 0, 2))                              # (S, B, H)


def transformer_encoder_forward(z, weights, b_blk=None):
    """z: (seq, batch, hid) -> (seq+1, batch, hid), matching the PyTorch module.
    `weights` comes from prepare_weights(params) (one-time prep)."""
    S0, B, H = z.shape
    S = S0 + 1
    s_pad = max(16, pl.cdiv(S, 16) * 16)
    h_pad = weights["wqkv"].shape[0]
    kind = _device_kind()
    bb = _select_b_blk(B, s_pad, h_pad, kind, b_blk)
    vmem = _vmem_limit_bytes(kind)
    try:
        out = _forward_impl(z, weights, s_pad=s_pad, b_blk=bb,
                            vmem_limit=vmem, single_buffer=True)
        return jax.block_until_ready(out)
    except Exception:
        # Fallback for jax versions without BlockSpec(pipeline_mode=...):
        # identical kernel, default double-buffered resident operands.
        out = _forward_impl(z, weights, s_pad=s_pad, b_blk=bb,
                            vmem_limit=vmem, single_buffer=False)
        return jax.block_until_ready(out)


# ----------------------------------------------------------------------------
# Pure-JAX fp32 reference (mirror of the PyTorch forward) for validation.
# ----------------------------------------------------------------------------
def _reference(z, params):
    S0, B, H = z.shape
    S = S0 + 1
    x = jnp.transpose(z, (1, 0, 2))
    cls = jnp.broadcast_to(params["cls_token"][None, :, :], (B, 1, H))
    x = jnp.concatenate([cls, x], axis=1)
    x = x + params["pe"][:B][:, None, :]

    def ln(v):
        mu = jnp.mean(v, -1, keepdims=True)
        var = jnp.mean((v - mu) ** 2, -1, keepdims=True)
        return (v - mu) / jnp.sqrt(var + 1e-5) * params["ln_w"][0] + params["ln_b"][0]

    zz = ln(x)
    q = zz @ params["wq"] + params["bq"]
    k = zz @ params["wk"] + params["bk"]
    v = zz @ params["wv"] + params["bv"]
    attn = jnp.einsum("bsh,bth->bst", q, k) / math.sqrt(float(H))
    mask = build_src_mask(S)
    attn = jnp.where(mask[None] == 1, -1e10, attn)
    attn = jax.nn.softmax(attn, axis=-1)
    sa = jnp.einsum("bst,bth->bsh", attn, v) @ params["wo"] + params["bo"]
    zsa = ln(zz + sa)
    h = jax.nn.gelu(zsa @ params["w1"] + params["b1"], approximate=False)
    h = h @ params["w2"] + params["b2"]
    return jnp.transpose(zsa + h, (1, 0, 2))


if __name__ == "__main__":
    seq, batch, hid = 8, 2, 32
    key = jax.random.PRNGKey(0)
    k_param, k_z = jax.random.split(key)
    params = init_params(k_param, hid)
    z = jax.random.normal(k_z, (seq, batch, hid), jnp.float32)

    weights = prepare_weights(params)        # one-time: pad H, fuse QKV, cast bf16
    out = jax.block_until_ready(transformer_encoder_forward(z, weights))
    ref = _reference(z, params)

    assert out.shape == (seq + 1, batch, hid)
    # bf16 matmul operands + approx softmax reciprocal => relaxed tolerance.
    assert jnp.allclose(out, ref, rtol=2e-2, atol=2e-2), "mismatch vs reference"
    print("KERNEL_OK")
</pallas_src>

<mosaic_0001>
module attributes {stable_mosaic.version = 11 : i64} {
  func.func @_encoder_kernel(%arg0: i32, %arg1: memref<32x128xf32, #tpu.memory_space<vmem>>, %arg2: memref<16x16xbf16, #tpu.memory_space<vmem>>, %arg3: memref<1x128xf32, #tpu.memory_space<vmem>>, %arg4: memref<1x128xf32, #tpu.memory_space<vmem>>, %arg5: memref<128x384xbf16, #tpu.memory_space<vmem>>, %arg6: memref<1x384xf32, #tpu.memory_space<vmem>>, %arg7: memref<128x128xbf16, #tpu.memory_space<vmem>>, %arg8: memref<1x128xf32, #tpu.memory_space<vmem>>, %arg9: memref<128x128xbf16, #tpu.memory_space<vmem>>, %arg10: memref<1x128xf32, #tpu.memory_space<vmem>>, %arg11: memref<128x128xbf16, #tpu.memory_space<vmem>>, %arg12: memref<1x128xf32, #tpu.memory_space<vmem>>, %arg13: memref<32x128xf32, #tpu.memory_space<vmem>>) attributes {dimension_semantics = [#tpu.dimension_semantics<parallel>], iteration_bounds = array<i64: 1>, scalar_prefetch = 0 : i64, scratch_operands = 0 : i64, tpu.core_type = #tpu.core_type<tc>, window_params = [{transform_indices = @transform_0, window_bounds = array<i64: 32, 128>}, {pipeline_mode = #tpu.pipeline_mode<synchronous>, transform_indices = @transform_1, window_bounds = array<i64: 16, 16>}, {pipeline_mode = #tpu.pipeline_mode<synchronous>, transform_indices = @transform_2, window_bounds = array<i64: 1, 128>}, {pipeline_mode = #tpu.pipeline_mode<synchronous>, transform_indices = @transform_3, window_bounds = array<i64: 1, 128>}, {pipeline_mode = #tpu.pipeline_mode<synchronous>, transform_indices = @transform_4, window_bounds = array<i64: 128, 384>}, {pipeline_mode = #tpu.pipeline_mode<synchronous>, transform_indices = @transform_5, window_bounds = array<i64: 1, 384>}, {pipeline_mode = #tpu.pipeline_mode<synchronous>, transform_indices = @transform_6, window_bounds = array<i64: 128, 128>}, {pipeline_mode = #tpu.pipeline_mode<synchronous>, transform_indices = @transform_7, window_bounds = array<i64: 1, 128>}, {pipeline_mode = #tpu.pipeline_mode<synchronous>, transform_indices = @transform_8, window_bounds = array<i64: 128, 128>}, {pipeline_mode = #tpu.pipeline_mode<synchronous>, transform_indices = @transform_9, window_bounds = array<i64: 1, 128>}, {pipeline_mode = #tpu.pipeline_mode<synchronous>, transform_indices = @transform_10, window_bounds = array<i64: 128, 128>}, {pipeline_mode = #tpu.pipeline_mode<synchronous>, transform_indices = @transform_11, window_bounds = array<i64: 1, 128>}, {transform_indices = @transform_12, window_bounds = array<i64: 32, 128>}]} {
    %c0 = arith.constant 0 : index
    %c0_0 = arith.constant 0 : index
    %0 = vector.load %arg1[%c0, %c0_0] : memref<32x128xf32, #tpu.memory_space<vmem>>, vector<32x128xf32>
    %c0_1 = arith.constant 0 : index
    %c0_2 = arith.constant 0 : index
    %1 = vector.load %arg3[%c0_1, %c0_2] : memref<1x128xf32, #tpu.memory_space<vmem>>, vector<1x128xf32>
    %c0_3 = arith.constant 0 : index
    %c0_4 = arith.constant 0 : index
    %2 = vector.load %arg4[%c0_3, %c0_4] : memref<1x128xf32, #tpu.memory_space<vmem>>, vector<1x128xf32>
    %3 = tpu.iota {dimensions = array<i32: 1>} : vector<1x128xi32>
    %c32_i32 = arith.constant 32 : i32
    %4 = vector.broadcast %c32_i32 : i32 to vector<1x128xi32>
    %5 = arith.cmpi slt, %3, %4 : vector<1x128xi32>
    %6 = arith.extui %5 : vector<1x128xi1> to vector<1x128xi32>
    %7 = arith.sitofp %6 : vector<1x128xi32> to vector<1x128xf32>
    %cst = arith.constant dense<0.000000e+00> : vector<32xf32>
    %8 = vector.multi_reduction <add>, %0, %cst [1] : vector<32x128xf32> to vector<32xf32>
    %9 = vector.shape_cast %8 : vector<32xf32> to vector<32x1xf32>
    %cst_5 = arith.constant 3.125000e-02 : f32
    %10 = vector.broadcast %cst_5 : f32 to vector<32x1xf32>
    %11 = arith.mulf %9, %10 : vector<32x1xf32>
    %12 = vector.broadcast %11 : vector<32x1xf32> to vector<32x128xf32>
    %13 = arith.subf %0, %12 : vector<32x128xf32>
    %14 = vector.broadcast %7 : vector<1x128xf32> to vector<32x128xf32>
    %15 = arith.mulf %13, %14 : vector<32x128xf32>
    %16 = arith.mulf %15, %15 : vector<32x128xf32>
    %cst_6 = arith.constant dense<0.000000e+00> : vector<32xf32>
    %17 = vector.multi_reduction <add>, %16, %cst_6 [1] : vector<32x128xf32> to vector<32xf32>
    %18 = vector.shape_cast %17 : vector<32xf32> to vector<32x1xf32>
    %cst_7 = arith.constant 3.125000e-02 : f32
    %19 = vector.broadcast %cst_7 : f32 to vector<32x1xf32>
    %20 = arith.mulf %18, %19 : vector<32x1xf32>
    %cst_8 = arith.constant 9.99999974E-6 : f32
    %21 = vector.broadcast %cst_8 : f32 to vector<32x1xf32>
    %22 = arith.addf %20, %21 : vector<32x1xf32>
    %23 = math.rsqrt %22 : vector<32x1xf32>
    %24 = vector.broadcast %23 : vector<32x1xf32> to vector<32x128xf32>
    %25 = arith.mulf %15, %24 : vector<32x128xf32>
    %26 = vector.broadcast %1 : vector<1x128xf32> to vector<32x128xf32>
    %27 = arith.mulf %25, %26 : vector<32x128xf32>
    %28 = vector.broadcast %2 : vector<1x128xf32> to vector<32x128xf32>
    %29 = arith.addf %27, %28 : vector<32x128xf32>
    %30 = arith.truncf %29 : vector<32x128xf32> to vector<32x128xbf16>
    %c0_9 = arith.constant 0 : index
    %c0_10 = arith.constant 0 : index
    %31 = vector.load %arg5[%c0_9, %c0_10] : memref<128x384xbf16, #tpu.memory_space<vmem>>, vector<128x384xbf16>
    %cst_11 = arith.constant dense<0.000000e+00> : vector<32x384xf32>
    %32 = tpu.matmul %30, %31, %cst_11 {dimension_numbers = #tpu.dot_dimension_numbers<[1], [0], [0], [1], [0, 0, 1, 1], [], []>} : vector<32x128xbf16>, vector<128x384xbf16>, vector<32x384xf32> -> vector<32x384xf32>
    %c0_12 = arith.constant 0 : index
    %c0_13 = arith.constant 0 : index
    %33 = vector.load %arg6[%c0_12, %c0_13] : memref<1x384xf32, #tpu.memory_space<vmem>>, vector<1x384xf32>
    %34 = vector.broadcast %33 : vector<1x384xf32> to vector<32x384xf32>
    %35 = arith.addf %32, %34 : vector<32x384xf32>
    %36 = vector.extract_strided_slice %35 {offsets = [0, 0], sizes = [32, 128], strides = [1, 1]} : vector<32x384xf32> to vector<32x128xf32>
    %cst_14 = arith.constant 0.176776692 : f32
    %37 = vector.broadcast %cst_14 : f32 to vector<32x128xf32>
    %38 = arith.mulf %36, %37 : vector<32x128xf32>
    %39 = arith.truncf %38 : vector<32x128xf32> to vector<32x128xbf16>
    %40 = vector.shape_cast %39 : vector<32x128xbf16> to vector<2x16x128xbf16>
    %41 = vector.extract_strided_slice %35 {offsets = [0, 128], sizes = [32, 128], strides = [1, 1]} : vector<32x384xf32> to vector<32x128xf32>
    %42 = arith.truncf %41 : vector<32x128xf32> to vector<32x128xbf16>
    %43 = vector.shape_cast %42 : vector<32x128xbf16> to vector<2x16x128xbf16>
    %44 = vector.extract_strided_slice %35 {offsets = [0, 256], sizes = [32, 128], strides = [1, 1]} : vector<32x384xf32> to vector<32x128xf32>
    %45 = arith.truncf %44 : vector<32x128xf32> to vector<32x128xbf16>
    %46 = vector.shape_cast %45 : vector<32x128xbf16> to vector<2x16x128xbf16>
    "tpu.trace_start"() <{level = 10 : i32, message = "bqd,bkd->bqk"}> : () -> ()
    %cst_15 = arith.constant dense<0.000000e+00> : vector<2x16x16xf32>
    %47 = tpu.matmul %40, %43, %cst_15 {dimension_numbers = #tpu.dot_dimension_numbers<[2], [2], [1], [1], [0, 0, 0, 1, 1, 1], [0], [0]>} : vector<2x16x128xbf16>, vector<2x16x128xbf16>, vector<2x16x16xf32> -> vector<2x16x16xf32>
    "tpu.trace_stop"() : () -> ()
    %c0_16 = arith.constant 0 : index
    %c0_17 = arith.constant 0 : index
    %48 = vector.load %arg2[%c0_16, %c0_17] : memref<16x16xbf16, #tpu.memory_space<vmem>>, vector<16x16xbf16>
    %49 = arith.extf %48 : vector<16x16xbf16> to vector<16x16xf32>
    %50 = vector.shape_cast %49 : vector<16x16xf32> to vector<1x16x16xf32>
    %51 = vector.broadcast %50 : vector<1x16x16xf32> to vector<2x16x16xf32>
    %52 = arith.addf %47, %51 : vector<2x16x16xf32>
    %cst_18 = arith.constant dense<0xFF800000> : vector<2x16xf32>
    %53 = vector.multi_reduction <maximumf>, %52, %cst_18 [2] : vector<2x16x16xf32> to vector<2x16xf32>
    %54 = vector.shape_cast %53 : vector<2x16xf32> to vector<2x16x1xf32>
    %55 = vector.broadcast %54 : vector<2x16x1xf32> to vector<2x16x16xf32>
    %56 = arith.subf %52, %55 : vector<2x16x16xf32>
    %57 = math.exp %56 : vector<2x16x16xf32>
    %cst_19 = arith.constant dense<0.000000e+00> : vector<2x16xf32>
    %58 = vector.multi_reduction <add>, %57, %cst_19 [2] : vector<2x16x16xf32> to vector<2x16xf32>
    %59 = vector.shape_cast %58 : vector<2x16xf32> to vector<2x16x1xf32>
    %60 = tpu.reciprocal %59 {approx = true} : vector<2x16x1xf32> -> vector<2x16x1xf32>
    %61 = vector.broadcast %60 : vector<2x16x1xf32> to vector<2x16x16xf32>
    %62 = arith.mulf %57, %61 : vector<2x16x16xf32>
    %63 = arith.truncf %62 : vector<2x16x16xf32> to vector<2x16x16xbf16>
    "tpu.trace_start"() <{level = 10 : i32, message = "bqk,bkd->bqd"}> : () -> ()
    %cst_20 = arith.constant dense<0.000000e+00> : vector<2x16x128xf32>
    %64 = tpu.matmul %63, %46, %cst_20 {dimension_numbers = #tpu.dot_dimension_numbers<[2], [1], [1], [2], [0, 0, 0, 1, 1, 2], [0], [0]>} : vector<2x16x16xbf16>, vector<2x16x128xbf16>, vector<2x16x128xf32> -> vector<2x16x128xf32>
    "tpu.trace_stop"() : () -> ()
    %65 = vector.shape_cast %64 : vector<2x16x128xf32> to vector<32x128xf32>
    %66 = arith.truncf %65 : vector<32x128xf32> to vector<32x128xbf16>
    %c0_21 = arith.constant 0 : index
    %c0_22 = arith.constant 0 : index
    %67 = vector.load %arg7[%c0_21, %c0_22] : memref<128x128xbf16, #tpu.memory_space<vmem>>, vector<128x128xbf16>
    %cst_23 = arith.constant dense<0.000000e+00> : vector<32x128xf32>
    %68 = tpu.matmul %66, %67, %cst_23 {dimension_numbers = #tpu.dot_dimension_numbers<[1], [0], [0], [1], [0, 0, 1, 1], [], []>} : vector<32x128xbf16>, vector<128x128xbf16>, vector<32x128xf32> -> vector<32x128xf32>
    %c0_24 = arith.constant 0 : index
    %c0_25 = arith.constant 0 : index
    %69 = vector.load %arg8[%c0_24, %c0_25] : memref<1x128xf32, #tpu.memory_space<vmem>>, vector<1x128xf32>
    %70 = vector.broadcast %69 : vector<1x128xf32> to vector<32x128xf32>
    %71 = arith.addf %68, %70 : vector<32x128xf32>
    %72 = arith.addf %29, %71 : vector<32x128xf32>
    %cst_26 = arith.constant dense<0.000000e+00> : vector<32xf32>
    %73 = vector.multi_reduction <add>, %72, %cst_26 [1] : vector<32x128xf32> to vector<32xf32>
    %74 = vector.shape_cast %73 : vector<32xf32> to vector<32x1xf32>
    %cst_27 = arith.constant 3.125000e-02 : f32
    %75 = vector.broadcast %cst_27 : f32 to vector<32x1xf32>
    %76 = arith.mulf %74, %75 : vector<32x1xf32>
    %77 = vector.broadcast %76 : vector<32x1xf32> to vector<32x128xf32>
    %78 = arith.subf %72, %77 : vector<32x128xf32>
    %79 = vector.broadcast %7 : vector<1x128xf32> to vector<32x128xf32>
    %80 = arith.mulf %78, %79 : vector<32x128xf32>
    %81 = arith.mulf %80, %80 : vector<32x128xf32>
    %cst_28 = arith.constant dense<0.000000e+00> : vector<32xf32>
    %82 = vector.multi_reduction <add>, %81, %cst_28 [1] : vector<32x128xf32> to vector<32xf32>
    %83 = vector.shape_cast %82 : vector<32xf32> to vector<32x1xf32>
    %cst_29 = arith.constant 3.125000e-02 : f32
    %84 = vector.broadcast %cst_29 : f32 to vector<32x1xf32>
    %85 = arith.mulf %83, %84 : vector<32x1xf32>
    %cst_30 = arith.constant 9.99999974E-6 : f32
    %86 = vector.broadcast %cst_30 : f32 to vector<32x1xf32>
    %87 = arith.addf %85, %86 : vector<32x1xf32>
    %88 = math.rsqrt %87 : vector<32x1xf32>
    %89 = vector.broadcast %88 : vector<32x1xf32> to vector<32x128xf32>
    %90 = arith.mulf %80, %89 : vector<32x128xf32>
    %91 = vector.broadcast %1 : vector<1x128xf32> to vector<32x128xf32>
    %92 = arith.mulf %90, %91 : vector<32x128xf32>
    %93 = vector.broadcast %2 : vector<1x128xf32> to vector<32x128xf32>
    %94 = arith.addf %92, %93 : vector<32x128xf32>
    %95 = arith.truncf %94 : vector<32x128xf32> to vector<32x128xbf16>
    %c0_31 = arith.constant 0 : index
    %c0_32 = arith.constant 0 : index
    %96 = vector.load %arg9[%c0_31, %c0_32] : memref<128x128xbf16, #tpu.memory_space<vmem>>, vector<128x128xbf16>
    %cst_33 = arith.constant dense<0.000000e+00> : vector<32x128xf32>
    %97 = tpu.matmul %95, %96, %cst_33 {dimension_numbers = #tpu.dot_dimension_numbers<[1], [0], [0], [1], [0, 0, 1, 1], [], []>} : vector<32x128xbf16>, vector<128x128xbf16>, vector<32x128xf32> -> vector<32x128xf32>
    %c0_34 = arith.constant 0 : index
    %c0_35 = arith.constant 0 : index
    %98 = vector.load %arg10[%c0_34, %c0_35] : memref<1x128xf32, #tpu.memory_space<vmem>>, vector<1x128xf32>
    %99 = vector.broadcast %98 : vector<1x128xf32> to vector<32x128xf32>
    %100 = arith.addf %97, %99 : vector<32x128xf32>
    %cst_36 = arith.constant 5.000000e-01 : f32
    %101 = vector.broadcast %cst_36 : f32 to vector<32x128xf32>
    %102 = arith.mulf %101, %100 : vector<32x128xf32>
    %cst_37 = arith.constant 0.707106769 : f32
    %103 = vector.broadcast %cst_37 : f32 to vector<32x128xf32>
    %104 = arith.mulf %100, %103 : vector<32x128xf32>
    %105 = math.erf %104 : vector<32x128xf32>
    %cst_38 = arith.constant 1.000000e+00 : f32
    %106 = vector.broadcast %cst_38 : f32 to vector<32x128xf32>
    %107 = arith.addf %106, %105 : vector<32x128xf32>
    %108 = arith.mulf %102, %107 : vector<32x128xf32>
    %109 = arith.truncf %108 : vector<32x128xf32> to vector<32x128xbf16>
    %c0_39 = arith.constant 0 : index
    %c0_40 = arith.constant 0 : index
    %110 = vector.load %arg11[%c0_39, %c0_40] : memref<128x128xbf16, #tpu.memory_space<vmem>>, vector<128x128xbf16>
    %cst_41 = arith.constant dense<0.000000e+00> : vector<32x128xf32>
    %111 = tpu.matmul %109, %110, %cst_41 {dimension_numbers = #tpu.dot_dimension_numbers<[1], [0], [0], [1], [0, 0, 1, 1], [], []>} : vector<32x128xbf16>, vector<128x128xbf16>, vector<32x128xf32> -> vector<32x128xf32>
    %c0_42 = arith.constant 0 : index
    %c0_43 = arith.constant 0 : index
    %112 = vector.load %arg12[%c0_42, %c0_43] : memref<1x128xf32, #tpu.memory_space<vmem>>, vector<1x128xf32>
    %113 = vector.broadcast %112 : vector<1x128xf32> to vector<32x128xf32>
    %114 = arith.addf %111, %113 : vector<32x128xf32>
    %115 = arith.addf %94, %114 : vector<32x128xf32>
    %c0_44 = arith.constant 0 : index
    %c0_45 = arith.constant 0 : index
    %116 = vector.load %arg13[%c0_44, %c0_45] : memref<32x128xf32, #tpu.memory_space<vmem>>, vector<32x128xf32>
    tpu.vector_store %arg13[%c0_44, %c0_45], %115 {strides = array<i32>} : memref<32x128xf32, #tpu.memory_space<vmem>>, vector<32x128xf32>,
    return
  }
  func.func @transform_0(%arg0: i32) -> (i32, i32) {
    %c0_i32 = arith.constant 0 : i32
    %c0_i32_0 = arith.constant 0 : i32
    return %arg0, %c0_i32 : i32, i32
  }
  func.func @transform_1(%arg0: i32) -> (i32, i32) {
    %c0_i32 = arith.constant 0 : i32
    %c0_i32_0 = arith.constant 0 : i32
    %c0_i32_1 = arith.constant 0 : i32
    return %c0_i32, %c0_i32_0 : i32, i32
  }
  func.func @transform_2(%arg0: i32) -> (i32, i32) {
    %c0_i32 = arith.constant 0 : i32
    %c0_i32_0 = arith.constant 0 : i32
    %c0_i32_1 = arith.constant 0 : i32
    return %c0_i32, %c0_i32_0 : i32, i32
  }
  func.func @transform_3(%arg0: i32) -> (i32, i32) {
    %c0_i32 = arith.constant 0 : i32
    %c0_i32_0 = arith.constant 0 : i32
    %c0_i32_1 = arith.constant 0 : i32
    return %c0_i32, %c0_i32_0 : i32, i32
  }
  func.func @transform_4(%arg0: i32) -> (i32, i32) {
    %c0_i32 = arith.constant 0 : i32
    %c0_i32_0 = arith.constant 0 : i32
    %c0_i32_1 = arith.constant 0 : i32
    return %c0_i32, %c0_i32_0 : i32, i32
  }
  func.func @transform_5(%arg0: i32) -> (i32, i32) {
    %c0_i32 = arith.constant 0 : i32
    %c0_i32_0 = arith.constant 0 : i32
    %c0_i32_1 = arith.constant 0 : i32
    return %c0_i32, %c0_i32_0 : i32, i32
  }
  func.func @transform_6(%arg0: i32) -> (i32, i32) {
    %c0_i32 = arith.constant 0 : i32
    %c0_i32_0 = arith.constant 0 : i32
    %c0_i32_1 = arith.constant 0 : i32
    return %c0_i32, %c0_i32_0 : i32, i32
  }
  func.func @transform_7(%arg0: i32) -> (i32, i32) {
    %c0_i32 = arith.constant 0 : i32
    %c0_i32_0 = arith.constant 0 : i32
    %c0_i32_1 = arith.constant 0 : i32
    return %c0_i32, %c0_i32_0 : i32, i32
  }
  func.func @transform_8(%arg0: i32) -> (i32, i32) {
    %c0_i32 = arith.constant 0 : i32
    %c0_i32_0 = arith.constant 0 : i32
    %c0_i32_1 = arith.constant 0 : i32
    return %c0_i32, %c0_i32_0 : i32, i32
  }
  func.func @transform_9(%arg0: i32) -> (i32, i32) {
    %c0_i32 = arith.constant 0 : i32
    %c0_i32_0 = arith.constant 0 : i32
    %c0_i32_1 = arith.constant 0 : i32
    return %c0_i32, %c0_i32_0 : i32, i32
  }
  func.func @transform_10(%arg0: i32) -> (i32, i32) {
    %c0_i32 = arith.constant 0 : i32
    %c0_i32_0 = arith.constant 0 : i32
    %c0_i32_1 = arith.constant 0 : i32
    return %c0_i32, %c0_i32_0 : i32, i32
  }
  func.func @transform_11(%arg0: i32) -> (i32, i32) {
    %c0_i32 = arith.constant 0 : i32
    %c0_i32_0 = arith.constant 0 : i32
    %c0_i32_1 = arith.constant 0 : i32
    return %c0_i32, %c0_i32_0 : i32, i32
  }
  func.func @transform_12(%arg0: i32) -> (i32, i32) {
    %c0_i32 = arith.constant 0 : i32
    %c0_i32_0 = arith.constant 0 : i32
    return %arg0, %c0_i32 : i32, i32
  }
}

module attributes {stable_mosaic.version = 11 : i64} {
  func.func @_encoder_kernel(%arg0: i32, %arg1: memref<32x128xf32, #tpu.memory_space<vmem>>, %arg2: memref<16x16xbf16, #tpu.memory_space<vmem>>, %arg3: memref<1x128xf32, #tpu.memory_space<vmem>>, %arg4: memref<1x128xf32, #tpu.memory_space<vmem>>, %arg5: memref<128x384xbf16, #tpu.memory_space<vmem>>, %arg6: memref<1x384xf32, #tpu.memory_space<vmem>>, %arg7: memref<128x128xbf16, #tpu.memory_space<vmem>>, %arg8: memref<1x128xf32, #tpu.memory_space<vmem>>, %arg9: memref<128x128xbf16, #tpu.memory_space<vmem>>, %arg10: memref<1x128xf32, #tpu.memory_space<vmem>>, %arg11: memref<128x128xbf16, #tpu.memory_space<vmem>>, %arg12: memref<1x128xf32, #tpu.memory_space<vmem>>, %arg13: memref<32x128xf32, #tpu.memory_space<vmem>>) attributes {dimension_semantics = [#tpu.dimension_semantics<parallel>], iteration_bounds = array<i64: 1>, scalar_prefetch = 0 : i64, scratch_operands = 0 : i64, tpu.core_type = #tpu.core_type<tc>, window_params = [{transform_indices = @transform_0, window_bounds = array<i64: 32, 128>}, {pipeline_mode = #tpu.pipeline_mode<synchronous>, transform_indices = @transform_1, window_bounds = array<i64: 16, 16>}, {pipeline_mode = #tpu.pipeline_mode<synchronous>, transform_indices = @transform_2, window_bounds = array<i64: 1, 128>}, {pipeline_mode = #tpu.pipeline_mode<synchronous>, transform_indices = @transform_3, window_bounds = array<i64: 1, 128>}, {pipeline_mode = #tpu.pipeline_mode<synchronous>, transform_indices = @transform_4, window_bounds = array<i64: 128, 384>}, {pipeline_mode = #tpu.pipeline_mode<synchronous>, transform_indices = @transform_5, window_bounds = array<i64: 1, 384>}, {pipeline_mode = #tpu.pipeline_mode<synchronous>, transform_indices = @transform_6, window_bounds = array<i64: 128, 128>}, {pipeline_mode = #tpu.pipeline_mode<synchronous>, transform_indices = @transform_7, window_bounds = array<i64: 1, 128>}, {pipeline_mode = #tpu.pipeline_mode<synchronous>, transform_indices = @transform_8, window_bounds = array<i64: 128, 128>}, {pipeline_mode = #tpu.pipeline_mode<synchronous>, transform_indices = @transform_9, window_bounds = array<i64: 1, 128>}, {pipeline_mode = #tpu.pipeline_mode<synchronous>, transform_indices = @transform_10, window_bounds = array<i64: 128, 128>}, {pipeline_mode = #tpu.pipeline_mode<synchronous>, transform_indices = @transform_11, window_bounds = array<i64: 1, 128>}, {transform_indices = @transform_12, window_bounds = array<i64: 32, 128>}]} {
    %c0 = arith.constant 0 : index
    %c0_0 = arith.constant 0 : index
    %0 = vector.load %arg1[%c0, %c0_0] : memref<32x128xf32, #tpu.memory_space<vmem>>, vector<32x128xf32>
    %c0_1 = arith.constant 0 : index
    %c0_2 = arith.constant 0 : index
    %1 = vector.load %arg3[%c0_1, %c0_2] : memref<1x128xf32, #tpu.memory_space<vmem>>, vector<1x128xf32>
    %c0_3 = arith.constant 0 : index
    %c0_4 = arith.constant 0 : index
    %2 = vector.load %arg4[%c0_3, %c0_4] : memref<1x128xf32, #tpu.memory_space<vmem>>, vector<1x128xf32>
    %3 = tpu.iota {dimensions = array<i32: 1>} : vector<1x128xi32>
    %c32_i32 = arith.constant 32 : i32
    %4 = vector.broadcast %c32_i32 : i32 to vector<1x128xi32>
    %5 = arith.cmpi slt, %3, %4 : vector<1x128xi32>
    %6 = arith.extui %5 : vector<1x128xi1> to vector<1x128xi32>
    %7 = arith.sitofp %6 : vector<1x128xi32> to vector<1x128xf32>
    %cst = arith.constant dense<0.000000e+00> : vector<32xf32>
    %8 = vector.multi_reduction <add>, %0, %cst [1] : vector<32x128xf32> to vector<32xf32>
    %9 = vector.shape_cast %8 : vector<32xf32> to vector<32x1xf32>
    %cst_5 = arith.constant 3.125000e-02 : f32
    %10 = vector.broadcast %cst_5 : f32 to vector<32x1xf32>
    %11 = arith.mulf %9, %10 : vector<32x1xf32>
    %12 = vector.broadcast %11 : vector<32x1xf32> to vector<32x128xf32>
    %13 = arith.subf %0, %12 : vector<32x128xf32>
    %14 = vector.broadcast %7 : vector<1x128xf32> to vector<32x128xf32>
    %15 = arith.mulf %13, %14 : vector<32x128xf32>
    %16 = arith.mulf %15, %15 : vector<32x128xf32>
    %cst_6 = arith.constant dense<0.000000e+00> : vector<32xf32>
    %17 = vector.multi_reduction <add>, %16, %cst_6 [1] : vector<32x128xf32> to vector<32xf32>
    %18 = vector.shape_cast %17 : vector<32xf32> to vector<32x1xf32>
    %cst_7 = arith.constant 3.125000e-02 : f32
    %19 = vector.broadcast %cst_7 : f32 to vector<32x1xf32>
    %20 = arith.mulf %18, %19 : vector<32x1xf32>
    %cst_8 = arith.constant 9.99999974E-6 : f32
    %21 = vector.broadcast %cst_8 : f32 to vector<32x1xf32>
    %22 = arith.addf %20, %21 : vector<32x1xf32>
    %23 = math.rsqrt %22 : vector<32x1xf32>
    %24 = vector.broadcast %23 : vector<32x1xf32> to vector<32x128xf32>
    %25 = arith.mulf %15, %24 : vector<32x128xf32>
    %26 = vector.broadcast %1 : vector<1x128xf32> to vector<32x128xf32>
    %27 = arith.mulf %25, %26 : vector<32x128xf32>
    %28 = vector.broadcast %2 : vector<1x128xf32> to vector<32x128xf32>
    %29 = arith.addf %27, %28 : vector<32x128xf32>
    %30 = arith.truncf %29 : vector<32x128xf32> to vector<32x128xbf16>
    %c0_9 = arith.constant 0 : index
    %c0_10 = arith.constant 0 : index
    %31 = vector.load %arg5[%c0_9, %c0_10] : memref<128x384xbf16, #tpu.memory_space<vmem>>, vector<128x384xbf16>
    %cst_11 = arith.constant dense<0.000000e+00> : vector<32x384xf32>
    %32 = tpu.matmul %30, %31, %cst_11 {dimension_numbers = #tpu.dot_dimension_numbers<[1], [0], [0], [1], [0, 0, 1, 1], [], []>} : vector<32x128xbf16>, vector<128x384xbf16>, vector<32x384xf32> -> vector<32x384xf32>
    %c0_12 = arith.constant 0 : index
    %c0_13 = arith.constant 0 : index
    %33 = vector.load %arg6[%c0_12, %c0_13] : memref<1x384xf32, #tpu.memory_space<vmem>>, vector<1x384xf32>
    %34 = vector.broadcast %33 : vector<1x384xf32> to vector<32x384xf32>
    %35 = arith.addf %32, %34 : vector<32x384xf32>
    %36 = vector.extract_strided_slice %35 {offsets = [0, 0], sizes = [32, 128], strides = [1, 1]} : vector<32x384xf32> to vector<32x128xf32>
    %cst_14 = arith.constant 0.176776692 : f32
    %37 = vector.broadcast %cst_14 : f32 to vector<32x128xf32>
    %38 = arith.mulf %36, %37 : vector<32x128xf32>
    %39 = arith.truncf %38 : vector<32x128xf32> to vector<32x128xbf16>
    %40 = vector.shape_cast %39 : vector<32x128xbf16> to vector<2x16x128xbf16>
    %41 = vector.extract_strided_slice %35 {offsets = [0, 128], sizes = [32, 128], strides = [1, 1]} : vector<32x384xf32> to vector<32x128xf32>
    %42 = arith.truncf %41 : vector<32x128xf32> to vector<32x128xbf16>
    %43 = vector.shape_cast %42 : vector<32x128xbf16> to vector<2x16x128xbf16>
    %44 = vector.extract_strided_slice %35 {offsets = [0, 256], sizes = [32, 128], strides = [1, 1]} : vector<32x384xf32> to vector<32x128xf32>
    %45 = arith.truncf %44 : vector<32x128xf32> to vector<32x128xbf16>
    %46 = vector.shape_cast %45 : vector<32x128xbf16> to vector<2x16x128xbf16>
    "tpu.trace_start"() <{level = 10 : i32, message = "bqd,bkd->bqk"}> : () -> ()
    %cst_15 = arith.constant dense<0.000000e+00> : vector<2x16x16xf32>
    %47 = tpu.matmul %40, %43, %cst_15 {dimension_numbers = #tpu.dot_dimension_numbers<[2], [2], [1], [1], [0, 0, 0, 1, 1, 1], [0], [0]>} : vector<2x16x128xbf16>, vector<2x16x128xbf16>, vector<2x16x16xf32> -> vector<2x16x16xf32>
    "tpu.trace_stop"() : () -> ()
    %c0_16 = arith.constant 0 : index
    %c0_17 = arith.constant 0 : index
    %48 = vector.load %arg2[%c0_16, %c0_17] : memref<16x16xbf16, #tpu.memory_space<vmem>>, vector<16x16xbf16>
    %49 = arith.extf %48 : vector<16x16xbf16> to vector<16x16xf32>
    %50 = vector.shape_cast %49 : vector<16x16xf32> to vector<1x16x16xf32>
    %51 = vector.broadcast %50 : vector<1x16x16xf32> to vector<2x16x16xf32>
    %52 = arith.addf %47, %51 : vector<2x16x16xf32>
    %cst_18 = arith.constant dense<0xFF800000> : vector<2x16xf32>
    %53 = vector.multi_reduction <maximumf>, %52, %cst_18 [2] : vector<2x16x16xf32> to vector<2x16xf32>
    %54 = vector.shape_cast %53 : vector<2x16xf32> to vector<2x16x1xf32>
    %55 = vector.broadcast %54 : vector<2x16x1xf32> to vector<2x16x16xf32>
    %56 = arith.subf %52, %55 : vector<2x16x16xf32>
    %57 = math.exp %56 : vector<2x16x16xf32>
    %cst_19 = arith.constant dense<0.000000e+00> : vector<2x16xf32>
    %58 = vector.multi_reduction <add>, %57, %cst_19 [2] : vector<2x16x16xf32> to vector<2x16xf32>
    %59 = vector.shape_cast %58 : vector<2x16xf32> to vector<2x16x1xf32>
    %60 = tpu.reciprocal %59 {approx = true} : vector<2x16x1xf32> -> vector<2x16x1xf32>
    %61 = vector.broadcast %60 : vector<2x16x1xf32> to vector<2x16x16xf32>
    %62 = arith.mulf %57, %61 : vector<2x16x16xf32>
    %63 = arith.truncf %62 : vector<2x16x16xf32> to vector<2x16x16xbf16>
    "tpu.trace_start"() <{level = 10 : i32, message = "bqk,bkd->bqd"}> : () -> ()
    %cst_20 = arith.constant dense<0.000000e+00> : vector<2x16x128xf32>
    %64 = tpu.matmul %63, %46, %cst_20 {dimension_numbers = #tpu.dot_dimension_numbers<[2], [1], [1], [2], [0, 0, 0, 1, 1, 2], [0], [0]>} : vector<2x16x16xbf16>, vector<2x16x128xbf16>, vector<2x16x128xf32> -> vector<2x16x128xf32>
    "tpu.trace_stop"() : () -> ()
    %65 = vector.shape_cast %64 : vector<2x16x128xf32> to vector<32x128xf32>
    %66 = arith.truncf %65 : vector<32x128xf32> to vector<32x128xbf16>
    %c0_21 = arith.constant 0 : index
    %c0_22 = arith.constant 0 : index
    %67 = vector.load %arg7[%c0_21, %c0_22] : memref<128x128xbf16, #tpu.memory_space<vmem>>, vector<128x128xbf16>
    %cst_23 = arith.constant dense<0.000000e+00> : vector<32x128xf32>
    %68 = tpu.matmul %66, %67, %cst_23 {dimension_numbers = #tpu.dot_dimension_numbers<[1], [0], [0], [1], [0, 0, 1, 1], [], []>} : vector<32x128xbf16>, vector<128x128xbf16>, vector<32x128xf32> -> vector<32x128xf32>
    %c0_24 = arith.constant 0 : index
    %c0_25 = arith.constant 0 : index
    %69 = vector.load %arg8[%c0_24, %c0_25] : memref<1x128xf32, #tpu.memory_space<vmem>>, vector<1x128xf32>
    %70 = vector.broadcast %69 : vector<1x128xf32> to vector<32x128xf32>
    %71 = arith.addf %68, %70 : vector<32x128xf32>
    %72 = arith.addf %29, %71 : vector<32x128xf32>
    %cst_26 = arith.constant dense<0.000000e+00> : vector<32xf32>
    %73 = vector.multi_reduction <add>, %72, %cst_26 [1] : vector<32x128xf32> to vector<32xf32>
    %74 = vector.shape_cast %73 : vector<32xf32> to vector<32x1xf32>
    %cst_27 = arith.constant 3.125000e-02 : f32
    %75 = vector.broadcast %cst_27 : f32 to vector<32x1xf32>
    %76 = arith.mulf %74, %75 : vector<32x1xf32>
    %77 = vector.broadcast %76 : vector<32x1xf32> to vector<32x128xf32>
    %78 = arith.subf %72, %77 : vector<32x128xf32>
    %79 = vector.broadcast %7 : vector<1x128xf32> to vector<32x128xf32>
    %80 = arith.mulf %78, %79 : vector<32x128xf32>
    %81 = arith.mulf %80, %80 : vector<32x128xf32>
    %cst_28 = arith.constant dense<0.000000e+00> : vector<32xf32>
    %82 = vector.multi_reduction <add>, %81, %cst_28 [1] : vector<32x128xf32> to vector<32xf32>
    %83 = vector.shape_cast %82 : vector<32xf32> to vector<32x1xf32>
    %cst_29 = arith.constant 3.125000e-02 : f32
    %84 = vector.broadcast %cst_29 : f32 to vector<32x1xf32>
    %85 = arith.mulf %83, %84 : vector<32x1xf32>
    %cst_30 = arith.constant 9.99999974E-6 : f32
    %86 = vector.broadcast %cst_30 : f32 to vector<32x1xf32>
    %87 = arith.addf %85, %86 : vector<32x1xf32>
    %88 = math.rsqrt %87 : vector<32x1xf32>
    %89 = vector.broadcast %88 : vector<32x1xf32> to vector<32x128xf32>
    %90 = arith.mulf %80, %89 : vector<32x128xf32>
    %91 = vector.broadcast %1 : vector<1x128xf32> to vector<32x128xf32>
    %92 = arith.mulf %90, %91 : vector<32x128xf32>
    %93 = vector.broadcast %2 : vector<1x128xf32> to vector<32x128xf32>
    %94 = arith.addf %92, %93 : vector<32x128xf32>
    %95 = arith.truncf %94 : vector<32x128xf32> to vector<32x128xbf16>
    %c0_31 = arith.constant 0 : index
    %c0_32 = arith.constant 0 : index
    %96 = vector.load %arg9[%c0_31, %c0_32] : memref<128x128xbf16, #tpu.memory_space<vmem>>, vector<128x128xbf16>
    %cst_33 = arith.constant dense<0.000000e+00> : vector<32x128xf32>
    %97 = tpu.matmul %95, %96, %cst_33 {dimension_numbers = #tpu.dot_dimension_numbers<[1], [0], [0], [1], [0, 0, 1, 1], [], []>} : vector<32x128xbf16>, vector<128x128xbf16>, vector<32x128xf32> -> vector<32x128xf32>
    %c0_34 = arith.constant 0 : index
    %c0_35 = arith.constant 0 : index
    %98 = vector.load %arg10[%c0_34, %c0_35] : memref<1x128xf32, #tpu.memory_space<vmem>>, vector<1x128xf32>
    %99 = vector.broadcast %98 : vector<1x128xf32> to vector<32x128xf32>
    %100 = arith.addf %97, %99 : vector<32x128xf32>
    %cst_36 = arith.constant 5.000000e-01 : f32
    %101 = vector.broadcast %cst_36 : f32 to vector<32x128xf32>
    %102 = arith.mulf %101, %100 : vector<32x128xf32>
    %cst_37 = arith.constant 0.707106769 : f32
    %103 = vector.broadcast %cst_37 : f32 to vector<32x128xf32>
    %104 = arith.mulf %100, %103 : vector<32x128xf32>
    %105 = math.erf %104 : vector<32x128xf32>
    %cst_38 = arith.constant 1.000000e+00 : f32
    %106 = vector.broadcast %cst_38 : f32 to vector<32x128xf32>
    %107 = arith.addf %106, %105 : vector<32x128xf32>
    %108 = arith.mulf %102, %107 : vector<32x128xf32>
    %109 = arith.truncf %108 : vector<32x128xf32> to vector<32x128xbf16>
    %c0_39 = arith.constant 0 : index
    %c0_40 = arith.constant 0 : index
    %110 = vector.load %arg11[%c0_39, %c0_40] : memref<128x128xbf16, #tpu.memory_space<vmem>>, vector<128x128xbf16>
    %cst_41 = arith.constant dense<0.000000e+00> : vector<32x128xf32>
    %111 = tpu.matmul %109, %110, %cst_41 {dimension_numbers = #tpu.dot_dimension_numbers<[1], [0], [0], [1], [0, 0, 1, 1], [], []>} : vector<32x128xbf16>, vector<128x128xbf16>, vector<32x128xf32> -> vector<32x128xf32>
    %c0_42 = arith.constant 0 : index
    %c0_43 = arith.constant 0 : index
    %112 = vector.load %arg12[%c0_42, %c0_43] : memref<1x128xf32, #tpu.memory_space<vmem>>, vector<1x128xf32>
    %113 = vector.broadcast %112 : vector<1x128xf32> to vector<32x128xf32>
    %114 = arith.addf %111, %113 : vector<32x128xf32>
    %115 = arith.addf %94, %114 : vector<32x128xf32>
    %c0_44 = arith.constant 0 : index
    %c0_45 = arith.constant 0 : index
    %116 = vector.load %arg13[%c0_44, %c0_45] : memref<32x128xf32, #tpu.memory_space<vmem>>, vector<32x128xf32>
    tpu.vector_store %arg13[%c0_44, %c0_45], %115 {strides = array<i32>} : memref<32x128xf32, #tpu.memory_space<vmem>>, vector<32x128xf32>,
    return
  }
  func.func @transform_0(%arg0: i32) -> (i32, i32) {
    %c0_i32 = arith.constant 0 : i32
    %c0_i32_0 = arith.constant 0 : i32
    return %arg0, %c0_i32 : i32, i32
  }
  func.func @transform_1(%arg0: i32) -> (i32, i32) {
    %c0_i32 = arith.constant 0 : i32
    %c0_i32_0 = arith.constant 0 : i32
    %c0_i32_1 = arith.constant 0 : i32
    return %c0_i32, %c0_i32_0 : i32, i32
  }
  func.func @transform_2(%arg0: i32) -> (i32, i32) {
    %c0_i32 = arith.constant 0 : i32
    %c0_i32_0 = arith.constant 0 : i32
    %c0_i32_1 = arith.constant 0 : i32
    return %c0_i32, %c0_i32_0 : i32, i32
  }
  func.func @transform_3(%arg0: i32) -> (i32, i32) {
    %c0_i32 = arith.constant 0 : i32
    %c0_i32_0 = arith.constant 0 : i32
    %c0_i32_1 = arith.constant 0 : i32
    return %c0_i32, %c0_i32_0 : i32, i32
  }
  func.func @transform_4(%arg0: i32) -> (i32, i32) {
    %c0_i32 = arith.constant 0 : i32
    %c0_i32_0 = arith.constant 0 : i32
    %c0_i32_1 = arith.constant 0 : i32
    return %c0_i32, %c0_i32_0 : i32, i32
  }
  func.func @transform_5(%arg0: i32) -> (i32, i32) {
    %c0_i32 = arith.constant 0 : i32
    %c0_i32_0 = arith.constant 0 : i32
    %c0_i32_1 = arith.constant 0 : i32
    return %c0_i32, %c0_i32_0 : i32, i32
  }
  func.func @transform_6(%arg0: i32) -> (i32, i32) {
    %c0_i32 = arith.constant 0 : i32
    %c0_i32_0 = arith.constant 0 : i32
    %c0_i32_1 = arith.constant 0 : i32
    return %c0_i32, %c0_i32_0 : i32, i32
  }
  func.func @transform_7(%arg0: i32) -> (i32, i32) {
    %c0_i32 = arith.constant 0 : i32
    %c0_i32_0 = arith.constant 0 : i32
    %c0_i32_1 = arith.constant 0 : i32
    return %c0_i32, %c0_i32_0 : i32, i32
  }
  func.func @transform_8(%arg0: i32) -> (i32, i32) {
    %c0_i32 = arith.constant 0 : i32
    %c0_i32_0 = arith.constant 0 : i32
    %c0_i32_1 = arith.constant 0 : i32
    return %c0_i32, %c0_i32_0 : i32, i32
  }
  func.func @transform_9(%arg0: i32) -> (i32, i32) {
    %c0_i32 = arith.constant 0 : i32
    %c0_i32_0 = arith.constant 0 : i32
    %c0_i32_1 = arith.constant 0 : i32
    return %c0_i32, %c0_i32_0 : i32, i32
  }
  func.func @transform_10(%arg0: i32) -> (i32, i32) {
    %c0_i32 = arith.constant 0 : i32
    %c0_i32_0 = arith.constant 0 : i32
    %c0_i32_1 = arith.constant 0 : i32
    return %c0_i32, %c0_i32_0 : i32, i32
  }
  func.func @transform_11(%arg0: i32) -> (i32, i32) {
    %c0_i32 = arith.constant 0 : i32
    %c0_i32_0 = arith.constant 0 : i32
    %c0_i32_1 = arith.constant 0 : i32
    return %c0_i32, %c0_i32_0 : i32, i32
  }
  func.func @transform_12(%arg0: i32) -> (i32, i32) {
    %c0_i32 = arith.constant 0 : i32
    %c0_i32_0 = arith.constant 0 : i32
    return %arg0, %c0_i32 : i32, i32
  }
}

</mosaic_0001>

<llo_original>
// kernel: _forward_impl.1
$region0: #{_forward_impl.1}
  #allocation0 [shape = 'u32[]', space=smem, size = 0x4, offset = 0x4, fixed_abs, tag = 'smem constant byte address 0x4 - core index']
  #allocation1 [shape = 'u32[144,128]{1,0:T(1,128)}', space=vmem, size = 0x12000, scoped, tag = 'internal scratch']
  %s0 = inlined_call_operand.hbm [shape: f32[32,128], index: 0, kind: input, shape index: {}]
  %s1 = inlined_call_operand.hbm [shape: bf16[16,16], index: 1, kind: input, shape index: {}]
  %s2 = inlined_call_operand.hbm [shape: f32[1,128], index: 2, kind: input, shape index: {}]
  %s3 = inlined_call_operand.hbm [shape: f32[1,128], index: 3, kind: input, shape index: {}]
  %s4 = inlined_call_operand.hbm [shape: bf16[128,384], index: 4, kind: input, shape index: {}]
  %s5 = inlined_call_operand.hbm [shape: f32[1,384], index: 5, kind: input, shape index: {}]
  %s6 = inlined_call_operand.hbm [shape: bf16[128,128], index: 6, kind: input, shape index: {}]
  %s7 = inlined_call_operand.hbm [shape: f32[1,128], index: 7, kind: input, shape index: {}]
  %s8 = inlined_call_operand.hbm [shape: bf16[128,128], index: 8, kind: input, shape index: {}]
  %s9 = inlined_call_operand.hbm [shape: f32[1,128], index: 9, kind: input, shape index: {}]
  %s10 = inlined_call_operand.hbm [shape: bf16[128,128], index: 10, kind: input, shape index: {}]
  %s11 = inlined_call_operand.hbm [shape: f32[1,128], index: 11, kind: input, shape index: {}]
  %s12 = inlined_call_operand.hbm [shape: f32[32,128], index: 12, kind: output, shape index: {}]
  %s13 = sld [smem:[#allocation0]]
  $region106: #{_forward_impl.1} parent=0
    _
  %s15 = ssub.s32 1, %s13
  %s16 = scalar_select 0, %s15, %s13
  $region1: #{_forward_impl.1} parent=0
    #allocation2 [shape = 'u8[16384]{0}', space=vmem, size = 0x4000, scoped, tag = 'input window, operand 0, single buffered']
    #allocation3 [shape = 's32[1]{0}', space=sflag, size = 0x4, scoped, tag = 'scoped memory for _forward_impl.1']
    #allocation4 [shape = 's32[1]{0}', space=sflag, size = 0x4, scoped, tag = 'scoped memory for _forward_impl.1']
    #allocation5 [shape = 'u8[4096]{0}', space=vmem, size = 0x1000, scoped, tag = 'input window, operand 1, single buffered']
    #allocation6 [shape = 's32[1]{0}', space=sflag, size = 0x4, scoped, tag = 'scoped memory for _forward_impl.1']
    #allocation7 [shape = 'u8[512]{0}', space=vmem, size = 0x400, scoped, tag = 'input window, operand 2, single buffered']
    #allocation8 [shape = 'u8[512]{0}', space=vmem, size = 0x400, scoped, tag = 'input window, operand 3, single buffered']
    #allocation9 [shape = 's32[1]{0}', space=sflag, size = 0x4, scoped, tag = 'scoped memory for _forward_impl.1']
    #allocation10 [shape = 'u8[98304]{0}', space=vmem, size = 0x18000, scoped, tag = 'input window, operand 4, single buffered']
    #allocation11 [shape = 'u8[1536]{0}', space=vmem, size = 0x800, scoped, tag = 'input window, operand 5, single buffered']
    #allocation12 [shape = 's32[1]{0}', space=sflag, size = 0x4, scoped, tag = 'scoped memory for _forward_impl.1']
    #allocation13 [shape = 'u8[32768]{0}', space=vmem, size = 0x8000, scoped, tag = 'input window, operand 6, single buffered']
    #allocation14 [shape = 'u8[512]{0}', space=vmem, size = 0x400, scoped, tag = 'input window, operand 7, single buffered']
    #allocation15 [shape = 's32[1]{0}', space=sflag, size = 0x4, scoped, tag = 'scoped memory for _forward_impl.1']
    #allocation16 [shape = 'u8[32768]{0}', space=vmem, size = 0x8000, scoped, tag = 'input window, operand 8, single buffered']
    #allocation17 [shape = 'u8[512]{0}', space=vmem, size = 0x400, scoped, tag = 'input window, operand 9, single buffered']
    #allocation18 [shape = 's32[1]{0}', space=sflag, size = 0x4, scoped, tag = 'scoped memory for _forward_impl.1']
    #allocation19 [shape = 'u8[32768]{0}', space=vmem, size = 0x8000, scoped, tag = 'input window, operand 10, single buffered']
    #allocation20 [shape = 'u8[512]{0}', space=vmem, size = 0x400, scoped, tag = 'input window, operand 11, single buffered']
    #allocation21 [shape = 's32[1]{0}', space=sflag, size = 0x4, scoped, tag = 'scoped memory for _forward_impl.1']
    #allocation22 [shape = 'u8[16384]{0}', space=vmem, size = 0x4000, scoped, tag = 'output window, operand 0, single buffered']
    %17 = vsyncpa [#allocation3], 0
    %18 = vsyncpa [#allocation6], 0
    %19 = vsyncpa [#allocation9], 0
    %20 = vsyncpa [#allocation12], 0
    %21 = vsyncpa [#allocation15], 0
    %22 = vsyncpa [#allocation18], 0
    %23 = vsyncpa [#allocation21], 0
    %24 = vsyncpa [#allocation4], 0
    // Predicated region
    $region2: #{_forward_impl.1} parent=1 // pred_check
      _
    $region3: #{_forward_impl.1} parent=1 // pred_check_branch
      %26 = sbr.rel (0) target = $region5
    $region4: #{_forward_impl.1} parent=1 // pred_region
      %s28 = ssub.s32 512, 512
      %29 = vsyncadd [#allocation3], %s28
      %s30 = sshll.u32 [#allocation2], 4
      %s31 = int_to_ptr.vmem [resolvable:$true] %s30
      %36 = dma.hbm_to_vmem [thread:$0]  %s0, 512, %s31, [#allocation3], 128, 128, 8
    $region5: #{_forward_impl.1} parent=1 // pred_fallthru
      _
    // Predicated region
    $region6: #{_forward_impl.1} parent=1 // pred_check
      _
    $region7: #{_forward_impl.1} parent=1 // pred_check_branch
      %38 = sbr.rel (0) target = $region9
    $region8: #{_forward_impl.1} parent=1 // pred_region
      %s40 = ssub.s32 128, 128
      %41 = vsyncadd [#allocation6], %s40
      %s42 = sshll.u32 [#allocation5], 4
      %s43 = int_to_ptr.vmem [resolvable:$true] %s42
      %48 = dma.hbm_to_vmem [thread:$0]  %s1, 128, %s43, [#allocation6], 64, 64, 4
    $region9: #{_forward_impl.1} parent=1 // pred_fallthru
      _
    // Predicated region
    $region10: #{_forward_impl.1} parent=1 // pred_check
      _
    $region11: #{_forward_impl.1} parent=1 // pred_check_branch
      %50 = sbr.rel (0) target = $region13
    $region12: #{_forward_impl.1} parent=1 // pred_region
      %s52 = ssub.s32 16, 16
      %53 = vsyncadd [#allocation6], %s52
      %s55 = sshll.u32 [#allocation7], 4
      %s56 = int_to_ptr.vmem [resolvable:$true] %s55
      %58 = dma.hbm_to_vmem [thread:$0]  %s2, 16, %s56, [#allocation6]
    $region13: #{_forward_impl.1} parent=1 // pred_fallthru
      _
    // Predicated region
    $region14: #{_forward_impl.1} parent=1 // pred_check
      _
    $region15: #{_forward_impl.1} parent=1 // pred_check_branch
      %60 = sbr.rel (0) target = $region17
    $region16: #{_forward_impl.1} parent=1 // pred_region
      %s62 = ssub.s32 16, 16
      %63 = vsyncadd [#allocation9], %s62
      %s65 = sshll.u32 [#allocation8], 4
      %s66 = int_to_ptr.vmem [resolvable:$true] %s65
      %68 = dma.hbm_to_vmem [thread:$0]  %s3, 16, %s66, [#allocation9]
    $region17: #{_forward_impl.1} parent=1 // pred_fallthru
      _
    // Predicated region
    $region18: #{_forward_impl.1} parent=1 // pred_check
      _
    $region19: #{_forward_impl.1} parent=1 // pred_check_branch
      %70 = sbr.rel (0) target = $region21
    $region20: #{_forward_impl.1} parent=1 // pred_region
      %s72 = ssub.s32 3072, 3072
      %73 = vsyncadd [#allocation9], %s72
      %s74 = sshll.u32 [#allocation10], 4
      %s75 = int_to_ptr.vmem [resolvable:$true] %s74
      %80 = dma.hbm_to_vmem [thread:$0]  %s4, 3072, %s75, [#allocation9], 192, 192, 12
    $region21: #{_forward_impl.1} parent=1 // pred_fallthru
      _
    // Predicated region
    $region22: #{_forward_impl.1} parent=1 // pred_check
      _
    $region23: #{_forward_impl.1} parent=1 // pred_check_branch
      %82 = sbr.rel (0) target = $region25
    $region24: #{_forward_impl.1} parent=1 // pred_region
      %s84 = ssub.s32 48, 48
      %85 = vsyncadd [#allocation12], %s84
      %s87 = sshll.u32 [#allocation11], 4
      %s88 = int_to_ptr.vmem [resolvable:$true] %s87
      %90 = dma.hbm_to_vmem [thread:$0]  %s5, 48, %s88, [#allocation12]
    $region25: #{_forward_impl.1} parent=1 // pred_fallthru
      _
    // Predicated region
    $region26: #{_forward_impl.1} parent=1 // pred_check
      _
    $region27: #{_forward_impl.1} parent=1 // pred_check_branch
      %92 = sbr.rel (0) target = $region29
    $region28: #{_forward_impl.1} parent=1 // pred_region
      %s94 = ssub.s32 1024, 1024
      %95 = vsyncadd [#allocation12], %s94
      %s96 = sshll.u32 [#allocation13], 4
      %s97 = int_to_ptr.vmem [resolvable:$true] %s96
      %102 = dma.hbm_to_vmem [thread:$0]  %s6, 1024, %s97, [#allocation12], 64, 64, 4
    $region29: #{_forward_impl.1} parent=1 // pred_fallthru
      _
    // Predicated region
    $region30: #{_forward_impl.1} parent=1 // pred_check
      _
    $region31: #{_forward_impl.1} parent=1 // pred_check_branch
      %104 = sbr.rel (0) target = $region33
    $region32: #{_forward_impl.1} parent=1 // pred_region
      %s106 = ssub.s32 16, 16
      %107 = vsyncadd [#allocation15], %s106
      %s109 = sshll.u32 [#allocation14], 4
      %s110 = int_to_ptr.vmem [resolvable:$true] %s109
      %112 = dma.hbm_to_vmem [thread:$0]  %s7, 16, %s110, [#allocation15]
    $region33: #{_forward_impl.1} parent=1 // pred_fallthru
      _
    // Predicated region
    $region34: #{_forward_impl.1} parent=1 // pred_check
      _
    $region35: #{_forward_impl.1} parent=1 // pred_check_branch
      %114 = sbr.rel (0) target = $region37
    $region36: #{_forward_impl.1} parent=1 // pred_region
      %s116 = ssub.s32 1024, 1024
      %117 = vsyncadd [#allocation15], %s116
      %s118 = sshll.u32 [#allocation16], 4
      %s119 = int_to_ptr.vmem [resolvable:$true] %s118
      %124 = dma.hbm_to_vmem [thread:$0]  %s8, 1024, %s119, [#allocation15], 64, 64, 4
    $region37: #{_forward_impl.1} parent=1 // pred_fallthru
      _
    // Predicated region
    $region38: #{_forward_impl.1} parent=1 // pred_check
      _
    $region39: #{_forward_impl.1} parent=1 // pred_check_branch
      %126 = sbr.rel (0) target = $region41
    $region40: #{_forward_impl.1} parent=1 // pred_region
      %s128 = ssub.s32 16, 16
      %129 = vsyncadd [#allocation18], %s128
      %s131 = sshll.u32 [#allocation17], 4
      %s132 = int_to_ptr.vmem [resolvable:$true] %s131
      %134 = dma.hbm_to_vmem [thread:$0]  %s9, 16, %s132, [#allocation18]
    $region41: #{_forward_impl.1} parent=1 // pred_fallthru
      _
    // Predicated region
    $region42: #{_forward_impl.1} parent=1 // pred_check
      _
    $region43: #{_forward_impl.1} parent=1 // pred_check_branch
      %136 = sbr.rel (0) target = $region45
    $region44: #{_forward_impl.1} parent=1 // pred_region
      %s138 = ssub.s32 1024, 1024
      %139 = vsyncadd [#allocation18], %s138
      %s140 = sshll.u32 [#allocation19], 4
      %s141 = int_to_ptr.vmem [resolvable:$true] %s140
      %146 = dma.hbm_to_vmem [thread:$0]  %s10, 1024, %s141, [#allocation18], 64, 64, 4
    $region45: #{_forward_impl.1} parent=1 // pred_fallthru
      _
    // Predicated region
    $region46: #{_forward_impl.1} parent=1 // pred_check
      _
    $region47: #{_forward_impl.1} parent=1 // pred_check_branch
      %148 = sbr.rel (0) target = $region49
    $region48: #{_forward_impl.1} parent=1 // pred_region
      %s150 = ssub.s32 16, 16
      %151 = vsyncadd [#allocation21], %s150
      %s153 = sshll.u32 [#allocation20], 4
      %s154 = int_to_ptr.vmem [resolvable:$true] %s153
      %156 = dma.hbm_to_vmem [thread:$0]  %s11, 16, %s154, [#allocation21]
    $region49: #{_forward_impl.1} parent=1 // pred_fallthru
      _
    // Predicated region
    $region50: #{_forward_impl.1} parent=1 // pred_check
      _
    $region51: #{_forward_impl.1} parent=1 // pred_check_branch
      %158 = sbr.rel (0) target = $region53
    $region52: #{_forward_impl.1} parent=1 // pred_region
      %159 = dma.done [#allocation3], 512
    $region53: #{_forward_impl.1} parent=1 // pred_fallthru
      _
    // Predicated region
    $region54: #{_forward_impl.1} parent=1 // pred_check
      _
    $region55: #{_forward_impl.1} parent=1 // pred_check_branch
      %161 = sbr.rel (0) target = $region57
    $region56: #{_forward_impl.1} parent=1 // pred_region
      %162 = dma.done [#allocation6], 128
    $region57: #{_forward_impl.1} parent=1 // pred_fallthru
      _
    // Predicated region
    $region58: #{_forward_impl.1} parent=1 // pred_check
      _
    $region59: #{_forward_impl.1} parent=1 // pred_check_branch
      %164 = sbr.rel (0) target = $region61
    $region60: #{_forward_impl.1} parent=1 // pred_region
      %165 = dma.done [#allocation6], 16
    $region61: #{_forward_impl.1} parent=1 // pred_fallthru
      _
    // Predicated region
    $region62: #{_forward_impl.1} parent=1 // pred_check
      _
    $region63: #{_forward_impl.1} parent=1 // pred_check_branch
      %167 = sbr.rel (0) target = $region65
    $region64: #{_forward_impl.1} parent=1 // pred_region
      %168 = dma.done [#allocation9], 16
    $region65: #{_forward_impl.1} parent=1 // pred_fallthru
      _
    // Predicated region
    $region66: #{_forward_impl.1} parent=1 // pred_check
      _
    $region67: #{_forward_impl.1} parent=1 // pred_check_branch
      %170 = sbr.rel (0) target = $region69
    $region68: #{_forward_impl.1} parent=1 // pred_region
      %171 = dma.done [#allocation9], 3072
    $region69: #{_forward_impl.1} parent=1 // pred_fallthru
      _
    // Predicated region
    $region70: #{_forward_impl.1} parent=1 // pred_check
      _
    $region71: #{_forward_impl.1} parent=1 // pred_check_branch
      %173 = sbr.rel (0) target = $region73
    $region72: #{_forward_impl.1} parent=1 // pred_region
      %174 = dma.done [#allocation12], 48
    $region73: #{_forward_impl.1} parent=1 // pred_fallthru
      _
    // Predicated region
    $region74: #{_forward_impl.1} parent=1 // pred_check
      _
    $region75: #{_forward_impl.1} parent=1 // pred_check_branch
      %176 = sbr.rel (0) target = $region77
    $region76: #{_forward_impl.1} parent=1 // pred_region
      %177 = dma.done [#allocation12], 1024
    $region77: #{_forward_impl.1} parent=1 // pred_fallthru
      _
    // Predicated region
    $region78: #{_forward_impl.1} parent=1 // pred_check
      _
    $region79: #{_forward_impl.1} parent=1 // pred_check_branch
      %179 = sbr.rel (0) target = $region81
    $region80: #{_forward_impl.1} parent=1 // pred_region
      %180 = dma.done [#allocation15], 16
    $region81: #{_forward_impl.1} parent=1 // pred_fallthru
      _
    // Predicated region
    $region82: #{_forward_impl.1} parent=1 // pred_check
      _
    $region83: #{_forward_impl.1} parent=1 // pred_check_branch
      %182 = sbr.rel (0) target = $region85
    $region84: #{_forward_impl.1} parent=1 // pred_region
      %183 = dma.done [#allocation15], 1024
    $region85: #{_forward_impl.1} parent=1 // pred_fallthru
      _
    // Predicated region
    $region86: #{_forward_impl.1} parent=1 // pred_check
      _
    $region87: #{_forward_impl.1} parent=1 // pred_check_branch
      %185 = sbr.rel (0) target = $region89
    $region88: #{_forward_impl.1} parent=1 // pred_region
      %186 = dma.done [#allocation18], 16
    $region89: #{_forward_impl.1} parent=1 // pred_fallthru
      _
    // Predicated region
    $region90: #{_forward_impl.1} parent=1 // pred_check
      _
    $region91: #{_forward_impl.1} parent=1 // pred_check_branch
      %188 = sbr.rel (0) target = $region93
    $region92: #{_forward_impl.1} parent=1 // pred_region
      %189 = dma.done [#allocation18], 1024
    $region93: #{_forward_impl.1} parent=1 // pred_fallthru
      _
    // Predicated region
    $region94: #{_forward_impl.1} parent=1 // pred_check
      _
    $region95: #{_forward_impl.1} parent=1 // pred_check_branch
      %191 = sbr.rel (0) target = $region97
    $region96: #{_forward_impl.1} parent=1 // pred_region
      %192 = dma.done [#allocation21], 16
    $region97: #{_forward_impl.1} parent=1 // pred_fallthru
      _
    %v194 = vld [vmem:[#allocation2] sm:$0xff]
    %v195 = vld [vmem:[#allocation2 + $0x8] sm:$0xff]
    %v196 = vld [vmem:[#allocation2 + $0x10] sm:$0xff]
    %v197 = vld [vmem:[#allocation2 + $0x18] sm:$0xff]
    %v198 = vld [vmem:[#allocation7] sm:$0x1]
    %v199 = vld [vmem:[#allocation8] sm:$0x1]
    %v200 = vlaneseq
    %v201 = vand.u32 %v200, 127
    %vm202 = vcmp.lt.s32.totalorder %v201, 32
    %v203 = vsel %vm202, 1, 0
    %v204 = vcvt.s32.f32 %v203
    %205 = vadd.xlane.f32.xlu0 %v194
    %v206 = vpop.xlane.xlu0 %205
    %207 = vadd.xlane.f32.xlu0 %v195
    %v208 = vpop.xlane.xlu0 %207
    %209 = vadd.xlane.f32.xlu0 %v196
    %v210 = vpop.xlane.xlu0 %209
    %211 = vadd.xlane.f32.xlu0 %v197
    %v212 = vpop.xlane.xlu0 %211
    %v213 = vmul.f32 %v206, 0.03125
    %v214 = vmul.f32 %v208, 0.03125
    %v215 = vmul.f32 %v210, 0.03125
    %v216 = vmul.f32 %v212, 0.03125
    %v217 = vsub.f32 %v194, %v213
    %v218 = vsub.f32 %v195, %v214
    %v219 = vsub.f32 %v196, %v215
    %v220 = vsub.f32 %v197, %v216
    %v221 = vmul.f32 %v217, %v204
    %v222 = vmul.f32 %v218, %v204
    %v223 = vmul.f32 %v219, %v204
    %v224 = vmul.f32 %v220, %v204
    %v225 = vmul.f32 %v221, %v221
    %v226 = vmul.f32 %v222, %v222
    %v227 = vmul.f32 %v223, %v223
    %v228 = vmul.f32 %v224, %v224
    %229 = vadd.xlane.f32.xlu0 %v225
    %v230 = vpop.xlane.xlu0 %229
    %231 = vadd.xlane.f32.xlu0 %v226
    %v232 = vpop.xlane.xlu0 %231
    %233 = vadd.xlane.f32.xlu0 %v227
    %v234 = vpop.xlane.xlu0 %233
    %235 = vadd.xlane.f32.xlu0 %v228
    %v236 = vpop.xlane.xlu0 %235
    %v237 = vmul.f32 %v230, 0.03125
    %v238 = vmul.f32 %v232, 0.03125
    %v239 = vmul.f32 %v234, 0.03125
    %v240 = vmul.f32 %v236, 0.03125
    %v241 = vadd.f32 %v237, 1e-05
    %v242 = vadd.f32 %v238, 1e-05
    %v243 = vadd.f32 %v239, 1e-05
    %v244 = vadd.f32 %v240, 1e-05
    %v245 = vrsqrt.pop %v241
    %v246 = vrsqrt.pop %v242
    %v247 = vrsqrt.pop %v243
    %v248 = vrsqrt.pop %v244
    %v249 = vmul.f32 %v221, %v245
    %v250 = vmul.f32 %v222, %v246
    %v251 = vmul.f32 %v223, %v247
    %v252 = vmul.f32 %v224, %v248
    %v254 = vlaneseq
    %v255 = vshrl.u32 %v254, 7
    %v256 = vsub.s32 0, %v255
    %v257 = vrot.slane %v198, %v256
    %v259 = vmul.f32 %v249, %v257
    %v260 = vmul.f32 %v250, %v257
    %v261 = vmul.f32 %v251, %v257
    %v262 = vmul.f32 %v252, %v257
    %v264 = vlaneseq
    %v265 = vshrl.u32 %v264, 7
    %v266 = vsub.s32 0, %v265
    %v267 = vrot.slane %v199, %v266
    %v269 = vadd.f32 %v259, %v267
    %v270 = vadd.f32 %v260, %v267
    %v271 = vadd.f32 %v261, %v267
    %v272 = vadd.f32 %v262, %v267
    %v273 = vpack.c.bf16 %v270, %v269
    %v274 = vpack.c.bf16 %v272, %v271
    %v275 = vld [vmem:[#allocation10] sm:$0xff]
    %v276 = vld [vmem:[#allocation10 + $0x8] sm:$0xf]
    %v277 = vld [vmem:[#allocation10 + $0xc] sm:$0xff]
    %v278 = vld [vmem:[#allocation10 + $0x14] sm:$0xf]
    %v279 = vld [vmem:[#allocation10 + $0x18] sm:$0xff]
    %v280 = vld [vmem:[#allocation10 + $0x20] sm:$0xf]
    %v281 = vld [vmem:[#allocation10 + $0x24] sm:$0xff]
    %v282 = vld [vmem:[#allocation10 + $0x2c] sm:$0xf]
    %v283 = vld [vmem:[#allocation10 + $0x30] sm:$0xff]
    %v284 = vld [vmem:[#allocation10 + $0x38] sm:$0xf]
    %v285 = vld [vmem:[#allocation10 + $0x3c] sm:$0xff]
    %v286 = vld [vmem:[#allocation10 + $0x44] sm:$0xf]
    %v287 = vld [vmem:[#allocation10 + $0x48] sm:$0xff]
    %v288 = vld [vmem:[#allocation10 + $0x50] sm:$0xf]
    %v289 = vld [vmem:[#allocation10 + $0x54] sm:$0xff]
    %v290 = vld [vmem:[#allocation10 + $0x5c] sm:$0xf]
    %v291 = vld [vmem:[#allocation10 + $0x60] sm:$0xff]
    %v292 = vld [vmem:[#allocation10 + $0x68] sm:$0xf]
    %v293 = vld [vmem:[#allocation10 + $0x6c] sm:$0xff]
    %v294 = vld [vmem:[#allocation10 + $0x74] sm:$0xf]
    %v295 = vld [vmem:[#allocation10 + $0x78] sm:$0xff]
    %v296 = vld [vmem:[#allocation10 + $0x80] sm:$0xf]
    %v297 = vld [vmem:[#allocation10 + $0x84] sm:$0xff]
    %v298 = vld [vmem:[#allocation10 + $0x8c] sm:$0xf]
    %v299 = vld [vmem:[#allocation10 + $0x90] sm:$0xff]
    %v300 = vld [vmem:[#allocation10 + $0x98] sm:$0xf]
    %v301 = vld [vmem:[#allocation10 + $0x9c] sm:$0xff]
    %v302 = vld [vmem:[#allocation10 + $0xa4] sm:$0xf]
    %v303 = vld [vmem:[#allocation10 + $0xa8] sm:$0xff]
    %v304 = vld [vmem:[#allocation10 + $0xb0] sm:$0xf]
    %v305 = vld [vmem:[#allocation10 + $0xb4] sm:$0xff]
    %v306 = vld [vmem:[#allocation10 + $0xbc] sm:$0xf]
    %v307 = vld [vmem:[#allocation11] sm:$0x7]
    %v309 = vlaneseq
    %v310 = vshrl.u32 %v309, 7
    %v311 = vsub.s32 0, %v310
    %v312 = vrot.slane %v307, %v311
    %v313 = vlaneseq
    %v314 = vshrl.u32 %v313, 7
    %v315 = vsub.s32 1, %v314
    %v316 = vrot.slane %v307, %v315
    %v317 = vlaneseq
    %v318 = vshrl.u32 %v317, 7
    %v319 = vsub.s32 2, %v318
    %v320 = vrot.slane %v307, %v319
    %v356 = vunpack.c.l.b16 %v275
    %v357 = vunpack.c.h.b16 %v275
    %v358 = vunpack.c.l.b16 %v276
    %v359 = vunpack.c.l.b16 %v277
    %v360 = vunpack.c.h.b16 %v277
    %v361 = vunpack.c.l.b16 %v278
    %v362 = vunpack.c.l.b16 %v279
    %v363 = vunpack.c.h.b16 %v279
    %v364 = vunpack.c.l.b16 %v280
    %v365 = vunpack.c.l.b16 %v281
    %v366 = vunpack.c.h.b16 %v281
    %v367 = vunpack.c.l.b16 %v282
    %v368 = vunpack.c.l.b16 %v283
    %v369 = vunpack.c.h.b16 %v283
    %v370 = vunpack.c.l.b16 %v284
    %v371 = vunpack.c.l.b16 %v285
    %v372 = vunpack.c.h.b16 %v285
    %v373 = vunpack.c.l.b16 %v286
    %v374 = vunpack.c.l.b16 %v287
    %v375 = vunpack.c.h.b16 %v287
    %v376 = vunpack.c.l.b16 %v288
    %v377 = vunpack.c.l.b16 %v289
    %v378 = vunpack.c.h.b16 %v289
    %v379 = vunpack.c.l.b16 %v290
    %v380 = vunpack.c.l.b16 %v291
    %v381 = vunpack.c.h.b16 %v291
    %v382 = vunpack.c.l.b16 %v292
    %v383 = vunpack.c.l.b16 %v293
    %v384 = vunpack.c.h.b16 %v293
    %v385 = vunpack.c.l.b16 %v294
    %v386 = vunpack.c.l.b16 %v295
    %v387 = vunpack.c.h.b16 %v295
    %v388 = vunpack.c.l.b16 %v296
    %v389 = vunpack.c.l.b16 %v297
    %v390 = vunpack.c.h.b16 %v297
    %v391 = vunpack.c.l.b16 %v298
    %v392 = vunpack.c.l.b16 %v299
    %v393 = vunpack.c.h.b16 %v299
    %v394 = vunpack.c.l.b16 %v300
    %v395 = vunpack.c.l.b16 %v301
    %v396 = vunpack.c.h.b16 %v301
    %v397 = vunpack.c.l.b16 %v302
    %v398 = vunpack.c.l.b16 %v303
    %v399 = vunpack.c.h.b16 %v303
    %v400 = vunpack.c.l.b16 %v304
    %v401 = vunpack.c.l.b16 %v305
    %v402 = vunpack.c.h.b16 %v305
    %v403 = vunpack.c.l.b16 %v306
    %v404 = vpack.c.b16 %v359, %v356
    %v405 = vpack.c.b16 %v360, %v357
    %v406 = vpack.c.b16 %v361, %v358
    %v407 = vpack.c.b16 %v365, %v362
    %v408 = vpack.c.b16 %v366, %v363
    %v409 = vpack.c.b16 %v367, %v364
    %v410 = vpack.c.b16 %v371, %v368
    %v411 = vpack.c.b16 %v372, %v369
    %v412 = vpack.c.b16 %v373, %v370
    %v413 = vpack.c.b16 %v377, %v374
    %v414 = vpack.c.b16 %v378, %v375
    %v415 = vpack.c.b16 %v379, %v376
    %v416 = vpack.c.b16 %v383, %v380
    %v417 = vpack.c.b16 %v384, %v381
    %v418 = vpack.c.b16 %v385, %v382
    %v419 = vpack.c.b16 %v389, %v386
    %v420 = vpack.c.b16 %v390, %v387
    %v421 = vpack.c.b16 %v391, %v388
    %v422 = vpack.c.b16 %v395, %v392
    %v423 = vpack.c.b16 %v396, %v393
    %v424 = vpack.c.b16 %v397, %v394
    %v425 = vpack.c.b16 %v401, %v398
    %v426 = vpack.c.b16 %v402, %v399
    %v427 = vpack.c.b16 %v403, %v400
    %452 = vmatprep.subr.bf16.mxu0 %v405
    %453 = vmatpush1.bf16.msra.mxu0 %v404
    %454 = vmatprep.subr.bf16.mxu0 %v408
    %455 = vmatpush1.bf16.msra.mxu0 %v407
    %456 = vmatprep.subr.bf16.mxu0 %v411
    %457 = vmatpush1.bf16.msra.mxu0 %v410
    %458 = vmatprep.subr.bf16.mxu0 %v414
    %459 = vmatpush1.bf16.msra.mxu0 %v413
    %460 = vmatprep.subr.bf16.mxu0 %v417
    %461 = vmatpush1.bf16.msra.mxu0 %v416
    %462 = vmatprep.subr.bf16.mxu0 %v420
    %463 = vmatpush1.bf16.msra.mxu0 %v419
    %464 = vmatprep.subr.bf16.mxu0 %v423
    %465 = vmatpush1.bf16.msra.mxu0 %v422
    %466 = vmatprep.subr.bf16.mxu0 %v426
    %467 = vmatpush1.bf16.msra.mxu0 %v425
    %468 = vmatprep.subr.bf16.mxu0 0
    %469 = vmatpush1.bf16.msra.mxu0 0
    %470 = vmatprep.subr.bf16.mxu0 0
    %471 = vmatpush1.bf16.msra.mxu0 0
    %472 = vmatprep.subr.bf16.mxu0 0
    %473 = vmatpush1.bf16.msra.mxu0 0
    %474 = vmatprep.subr.bf16.mxu0 0
    %475 = vmatpush1.bf16.msra.mxu0 0
    %476 = vmatprep.subr.bf16.mxu0 0
    %477 = vmatpush1.bf16.msra.mxu0 0
    %478 = vmatprep.subr.bf16.mxu0 0
    %479 = vmatpush1.bf16.msra.mxu0 0
    %480 = vmatprep.subr.bf16.mxu0 0
    %481 = vmatpush1.bf16.msra.mxu0 0
    %482 = vmatprep.subr.bf16.mxu0 0
    %483 = vmatpush1.bf16.msra.mxu0 0
    %484 = vmatprep.mubr.bf16.mxu0 0
    %485 = vmatmul.mubr.bf16.gmra.mrb[0].mxu0 %v273
    %v486 = vpop.f32.mrb[0].mxu0
    %v487 = vadd.f32 %v312, %v486
    %v488 = vpop.f32.mrb[0].mxu0
    %v489 = vadd.f32 %v316, %v488
    %v490 = vpop.f32.mrb[0].mxu0
    %v491 = vadd.f32 %v312, %v490
    %v492 = vpop.f32.mrb[0].mxu0
    %v493 = vadd.f32 %v316, %v492
    %494 = vmatprep.mubr.bf16.mxu0 0
    %495 = vmatmul.mubr.bf16.gmra.mrb[0].mxu0 %v274
    %v496 = vpop.f32.mrb[0].mxu0
    %v497 = vadd.f32 %v312, %v496
    %v498 = vpop.f32.mrb[0].mxu0
    %v499 = vadd.f32 %v316, %v498
    %v500 = vpop.f32.mrb[0].mxu0
    %v501 = vadd.f32 %v312, %v500
    %v502 = vpop.f32.mrb[0].mxu0
    %v503 = vadd.f32 %v316, %v502
    %504 = vdwg.mxu0
    %505 = vmatprep.subr.bf16.mxu0 0
    %506 = vmatpush1.bf16.msra.mxu0 %v406
    %507 = vmatprep.subr.bf16.mxu0 0
    %508 = vmatpush1.bf16.msra.mxu0 %v409
    %509 = vmatprep.subr.bf16.mxu0 0
    %510 = vmatpush1.bf16.msra.mxu0 %v412
    %511 = vmatprep.subr.bf16.mxu0 0
    %512 = vmatpush1.bf16.msra.mxu0 %v415
    %513 = vmatprep.subr.bf16.mxu0 0
    %514 = vmatpush1.bf16.msra.mxu0 %v418
    %515 = vmatprep.subr.bf16.mxu0 0
    %516 = vmatpush1.bf16.msra.mxu0 %v421
    %517 = vmatprep.subr.bf16.mxu0 0
    %518 = vmatpush1.bf16.msra.mxu0 %v424
    %519 = vmatprep.subr.bf16.mxu0 0
    %520 = vmatpush1.bf16.msra.mxu0 %v427
    %521 = vmatprep.subr.bf16.mxu0 0
    %522 = vmatpush1.bf16.msra.mxu0 0
    %523 = vmatprep.subr.bf16.mxu0 0
    %524 = vmatpush1.bf16.msra.mxu0 0
    %525 = vmatprep.subr.bf16.mxu0 0
    %526 = vmatpush1.bf16.msra.mxu0 0
    %527 = vmatprep.subr.bf16.mxu0 0
    %528 = vmatpush1.bf16.msra.mxu0 0
    %529 = vmatprep.subr.bf16.mxu0 0
    %530 = vmatpush1.bf16.msra.mxu0 0
    %531 = vmatprep.subr.bf16.mxu0 0
    %532 = vmatpush1.bf16.msra.mxu0 0
    %533 = vmatprep.subr.bf16.mxu0 0
    %534 = vmatpush1.bf16.msra.mxu0 0
    %535 = vmatprep.subr.bf16.mxu0 0
    %536 = vmatpush1.bf16.msra.mxu0 0
    %537 = vmatprep.mubr.bf16.mxu0 0
    %538 = vmatmul.mubr.bf16.gmra.mrb[0].mxu0 %v273
    %v539 = vpop.f32.mrb[0].mxu0
    %v540 = vadd.f32 %v320, %v539
    %v541 = vpop.f32.mrb[0].mxu0
    %v542 = vpop.f32.mrb[0].mxu0
    %v543 = vadd.f32 %v320, %v542
    %v544 = vpop.f32.mrb[0].mxu0
    %545 = vmatprep.mubr.bf16.mxu0 0
    %546 = vmatmul.mubr.bf16.gmra.mrb[0].mxu0 %v274
    %v547 = vpop.f32.mrb[0].mxu0
    %v548 = vadd.f32 %v320, %v547
    %v549 = vpop.f32.mrb[0].mxu0
    %v550 = vpop.f32.mrb[0].mxu0
    %v551 = vadd.f32 %v320, %v550
    %v552 = vpop.f32.mrb[0].mxu0
    %553 = vdwg.mxu0
    %v554 = vmul.f32 %v487, 0.17677669
    %v555 = vmul.f32 %v491, 0.17677669
    %v556 = vmul.f32 %v497, 0.17677669
    %v557 = vmul.f32 %v501, 0.17677669
    %v558 = vpack.c.bf16 %v555, %v554
    %v559 = vpack.c.bf16 %v557, %v556
    %v560 = vpack.c.bf16 %v493, %v489
    %v561 = vpack.c.bf16 %v503, %v499
    %v562 = vpack.c.bf16 %v543, %v540
    %v563 = vpack.c.bf16 %v551, %v548
    %v564 = vld [vmem:[#allocation5] sm:$0xf]
    %v565 = vld [vmem:[#allocation5 + $0x4] sm:$0xf]
    %v566 = vunpack.c.l.bf16 %v564
    %v567 = vunpack.c.l.bf16 %v565
    %568 = vmatprep.subr.bf16.mxu0 0
    %569 = vmatpush1.bf16.xpose.msra.mxu0 %v560
    %570 = vmatprep.subr.bf16.mxu0 0
    %571 = vmatpush1.bf16.xpose.msra.mxu0 0
    %572 = vmatprep.subr.bf16.mxu0 0
    %573 = vmatpush1.bf16.xpose.msra.mxu0 0
    %574 = vmatprep.subr.bf16.mxu0 0
    %575 = vmatpush1.bf16.xpose.msra.mxu0 0
    %576 = vmatprep.subr.bf16.mxu0 0
    %577 = vmatpush1.bf16.xpose.msra.mxu0 0
    %578 = vmatprep.subr.bf16.mxu0 0
    %579 = vmatpush1.bf16.xpose.msra.mxu0 0
    %580 = vmatprep.subr.bf16.mxu0 0
    %581 = vmatpush1.bf16.xpose.msra.mxu0 0
    %582 = vmatprep.subr.bf16.mxu0 0
    %583 = vmatpush1.bf16.xpose.msra.mxu0 0
    %584 = vmatprep.subr.bf16.mxu0 0
    %585 = vmatpush1.bf16.xpose.msra.mxu0 0
    %586 = vmatprep.subr.bf16.mxu0 0
    %587 = vmatpush1.bf16.xpose.msra.mxu0 0
    %588 = vmatprep.subr.bf16.mxu0 0
    %589 = vmatpush1.bf16.xpose.msra.mxu0 0
    %590 = vmatprep.subr.bf16.mxu0 0
    %591 = vmatpush1.bf16.xpose.msra.mxu0 0
    %592 = vmatprep.subr.bf16.mxu0 0
    %593 = vmatpush1.bf16.xpose.msra.mxu0 0
    %594 = vmatprep.subr.bf16.mxu0 0
    %595 = vmatpush1.bf16.xpose.msra.mxu0 0
    %596 = vmatprep.subr.bf16.mxu0 0
    %597 = vmatpush1.bf16.xpose.msra.mxu0 0
    %598 = vmatprep.subr.bf16.mxu0 0
    %599 = vmatpush1.bf16.xpose.msra.mxu0 0
    %600 = vmatprep.mubr.bf16.mxu0 0
    %601 = vmatmul.mubr.bf16.gmra.mrb[0].mxu0 %v558
    %v602 = vpop.f32.mrb[0].mxu0
    %v603 = vadd.f32 %v566, %v602
    %v604 = vpop.f32.mrb[0].mxu0
    %v605 = vpop.f32.mrb[0].mxu0
    %v606 = vadd.f32 %v567, %v605
    %v607 = vpop.f32.mrb[0].mxu0
    %608 = vdwg.mxu0
    %609 = vmatprep.subr.bf16.mxu0 0
    %610 = vmatpush1.bf16.xpose.msra.mxu0 %v561
    %611 = vmatprep.subr.bf16.mxu0 0
    %612 = vmatpush1.bf16.xpose.msra.mxu0 0
    %613 = vmatprep.subr.bf16.mxu0 0
    %614 = vmatpush1.bf16.xpose.msra.mxu0 0
    %615 = vmatprep.subr.bf16.mxu0 0
    %616 = vmatpush1.bf16.xpose.msra.mxu0 0
    %617 = vmatprep.subr.bf16.mxu0 0
    %618 = vmatpush1.bf16.xpose.msra.mxu0 0
    %619 = vmatprep.subr.bf16.mxu0 0
    %620 = vmatpush1.bf16.xpose.msra.mxu0 0
    %621 = vmatprep.subr.bf16.mxu0 0
    %622 = vmatpush1.bf16.xpose.msra.mxu0 0
    %623 = vmatprep.subr.bf16.mxu0 0
    %624 = vmatpush1.bf16.xpose.msra.mxu0 0
    %625 = vmatprep.subr.bf16.mxu0 0
    %626 = vmatpush1.bf16.xpose.msra.mxu0 0
    %627 = vmatprep.subr.bf16.mxu0 0
    %628 = vmatpush1.bf16.xpose.msra.mxu0 0
    %629 = vmatprep.subr.bf16.mxu0 0
    %630 = vmatpush1.bf16.xpose.msra.mxu0 0
    %631 = vmatprep.subr.bf16.mxu0 0
    %632 = vmatpush1.bf16.xpose.msra.mxu0 0
    %633 = vmatprep.subr.bf16.mxu0 0
    %634 = vmatpush1.bf16.xpose.msra.mxu0 0
    %635 = vmatprep.subr.bf16.mxu0 0
    %636 = vmatpush1.bf16.xpose.msra.mxu0 0
    %637 = vmatprep.subr.bf16.mxu0 0
    %638 = vmatpush1.bf16.xpose.msra.mxu0 0
    %639 = vmatprep.subr.bf16.mxu0 0
    %640 = vmatpush1.bf16.xpose.msra.mxu0 0
    %641 = vmatprep.mubr.bf16.mxu0 0
    %642 = vmatmul.mubr.bf16.gmra.mrb[0].mxu0 %v559
    %v643 = vpop.f32.mrb[0].mxu0
    %v644 = vadd.f32 %v566, %v643
    %v645 = vpop.f32.mrb[0].mxu0
    %v646 = vpop.f32.mrb[0].mxu0
    %v647 = vadd.f32 %v567, %v646
    %v648 = vpop.f32.mrb[0].mxu0
    %649 = vdwg.mxu0
    %vm650 = vcmask 130048
    %v651 = vsel %vm650, %v603, -inf
    %652 = vmax.xlane.f32.xlu0 %v651
    %v653 = vpop.xlane.xlu0 %652
    %v654 = vsel %vm650, %v606, -inf
    %655 = vmax.xlane.f32.xlu0 %v654
    %v656 = vpop.xlane.xlu0 %655
    %v657 = vsel %vm650, %v644, -inf
    %658 = vmax.xlane.f32.xlu0 %v657
    %v659 = vpop.xlane.xlu0 %658
    %v660 = vsel %vm650, %v647, -inf
    %661 = vmax.xlane.f32.xlu0 %v660
    %v662 = vpop.xlane.xlu0 %661
    %v663 = vsub.f32 %v603, %v653
    %v664 = vsub.f32 %v606, %v656
    %v665 = vsub.f32 %v644, %v659
    %v666 = vsub.f32 %v647, %v662
    %v667 = vmul.f32 %v663, 1.442695
    %v668 = vpow.pop %v667
    %v669 = vmul.f32 %v664, 1.442695
    %v670 = vpow.pop %v669
    %v671 = vmul.f32 %v665, 1.442695
    %v672 = vpow.pop %v671
    %v673 = vmul.f32 %v666, 1.442695
    %v674 = vpow.pop %v673
    %v675 = vsel %vm650, %v668, 0.0
    %676 = vadd.xlane.f32.xlu0 %v675
    %v677 = vpop.xlane.xlu0 %676
    %v678 = vsel %vm650, %v670, 0.0
    %679 = vadd.xlane.f32.xlu0 %v678
    %v680 = vpop.xlane.xlu0 %679
    %v681 = vsel %vm650, %v672, 0.0
    %682 = vadd.xlane.f32.xlu0 %v681
    %v683 = vpop.xlane.xlu0 %682
    %v684 = vsel %vm650, %v674, 0.0
    %685 = vadd.xlane.f32.xlu0 %v684
    %v686 = vpop.xlane.xlu0 %685
    %v687 = vrcp.pop %v677
    %v688 = vrcp.pop %v680
    %v689 = vrcp.pop %v683
    %v690 = vrcp.pop %v686
    %v691 = vmul.f32 %v668, %v687
    %v692 = vmul.f32 %v670, %v688
    %v693 = vmul.f32 %v672, %v689
    %v694 = vmul.f32 %v674, %v690
    %v695 = vpack.c.bf16 %v692, %v691
    %v696 = vpack.c.bf16 %v694, %v693
    %v698 = vsel %vm650, %v695, 0
    %700 = vmatprep.subr.bf16.mxu0 0
    %701 = vmatpush1.bf16.msra.mxu0 %v562
    %702 = vmatprep.subr.bf16.mxu0 0
    %703 = vmatpush1.bf16.msra.mxu0 0
    %704 = vmatprep.subr.bf16.mxu0 0
    %705 = vmatpush1.bf16.msra.mxu0 0
    %706 = vmatprep.subr.bf16.mxu0 0
    %707 = vmatpush1.bf16.msra.mxu0 0
    %708 = vmatprep.subr.bf16.mxu0 0
    %709 = vmatpush1.bf16.msra.mxu0 0
    %710 = vmatprep.subr.bf16.mxu0 0
    %711 = vmatpush1.bf16.msra.mxu0 0
    %712 = vmatprep.subr.bf16.mxu0 0
    %713 = vmatpush1.bf16.msra.mxu0 0
    %714 = vmatprep.subr.bf16.mxu0 0
    %715 = vmatpush1.bf16.msra.mxu0 0
    %716 = vmatprep.subr.bf16.mxu0 0
    %717 = vmatpush1.bf16.msra.mxu0 0
    %718 = vmatprep.subr.bf16.mxu0 0
    %719 = vmatpush1.bf16.msra.mxu0 0
    %720 = vmatprep.subr.bf16.mxu0 0
    %721 = vmatpush1.bf16.msra.mxu0 0
    %722 = vmatprep.subr.bf16.mxu0 0
    %723 = vmatpush1.bf16.msra.mxu0 0
    %724 = vmatprep.subr.bf16.mxu0 0
    %725 = vmatpush1.bf16.msra.mxu0 0
    %726 = vmatprep.subr.bf16.mxu0 0
    %727 = vmatpush1.bf16.msra.mxu0 0
    %728 = vmatprep.subr.bf16.mxu0 0
    %729 = vmatpush1.bf16.msra.mxu0 0
    %730 = vmatprep.subr.bf16.mxu0 0
    %731 = vmatpush1.bf16.msra.mxu0 0
    %732 = vmatprep.mubr.bf16.mxu0 0
    %733 = vmatmul.mubr.bf16.gmra.mrb[0].mxu0 %v698
    %v734 = vpop.f32.mrb[0].mxu0
    %v735 = vadd.f32 0.0, %v734
    %v736 = vpop.f32.mrb[0].mxu0
    %v737 = vpop.f32.mrb[0].mxu0
    %v738 = vadd.f32 0.0, %v737
    %v739 = vpop.f32.mrb[0].mxu0
    %740 = vdwg.mxu0
    %v742 = vsel %vm650, %v696, 0
    %744 = vmatprep.subr.bf16.mxu0 0
    %745 = vmatpush1.bf16.msra.mxu0 %v563
    %746 = vmatprep.subr.bf16.mxu0 0
    %747 = vmatpush1.bf16.msra.mxu0 0
    %748 = vmatprep.subr.bf16.mxu0 0
    %749 = vmatpush1.bf16.msra.mxu0 0
    %750 = vmatprep.subr.bf16.mxu0 0
    %751 = vmatpush1.bf16.msra.mxu0 0
    %752 = vmatprep.subr.bf16.mxu0 0
    %753 = vmatpush1.bf16.msra.mxu0 0
    %754 = vmatprep.subr.bf16.mxu0 0
    %755 = vmatpush1.bf16.msra.mxu0 0
    %756 = vmatprep.subr.bf16.mxu0 0
    %757 = vmatpush1.bf16.msra.mxu0 0
    %758 = vmatprep.subr.bf16.mxu0 0
    %759 = vmatpush1.bf16.msra.mxu0 0
    %760 = vmatprep.subr.bf16.mxu0 0
    %761 = vmatpush1.bf16.msra.mxu0 0
    %762 = vmatprep.subr.bf16.mxu0 0
    %763 = vmatpush1.bf16.msra.mxu0 0
    %764 = vmatprep.subr.bf16.mxu0 0
    %765 = vmatpush1.bf16.msra.mxu0 0
    %766 = vmatprep.subr.bf16.mxu0 0
    %767 = vmatpush1.bf16.msra.mxu0 0
    %768 = vmatprep.subr.bf16.mxu0 0
    %769 = vmatpush1.bf16.msra.mxu0 0
    %770 = vmatprep.subr.bf16.mxu0 0
    %771 = vmatpush1.bf16.msra.mxu0 0
    %772 = vmatprep.subr.bf16.mxu0 0
    %773 = vmatpush1.bf16.msra.mxu0 0
    %774 = vmatprep.subr.bf16.mxu0 0
    %775 = vmatpush1.bf16.msra.mxu0 0
    %776 = vmatprep.mubr.bf16.mxu0 0
    %777 = vmatmul.mubr.bf16.gmra.mrb[0].mxu0 %v742
    %v778 = vpop.f32.mrb[0].mxu0
    %v779 = vadd.f32 0.0, %v778
    %v780 = vpop.f32.mrb[0].mxu0
    %v781 = vpop.f32.mrb[0].mxu0
    %v782 = vadd.f32 0.0, %v781
    %v783 = vpop.f32.mrb[0].mxu0
    %784 = vdwg.mxu0
    %v785 = vpack.c.bf16 %v738, %v735
    %v786 = vpack.c.bf16 %v782, %v779
    %v787 = vld [vmem:[#allocation13] sm:$0xf]
    %v788 = vld [vmem:[#allocation13 + $0x4] sm:$0xf]
    %v789 = vld [vmem:[#allocation13 + $0x8] sm:$0xf]
    %v790 = vld [vmem:[#allocation13 + $0xc] sm:$0xf]
    %v791 = vld [vmem:[#allocation13 + $0x10] sm:$0xf]
    %v792 = vld [vmem:[#allocation13 + $0x14] sm:$0xf]
    %v793 = vld [vmem:[#allocation13 + $0x18] sm:$0xf]
    %v794 = vld [vmem:[#allocation13 + $0x1c] sm:$0xf]
    %v795 = vld [vmem:[#allocation13 + $0x20] sm:$0xf]
    %v796 = vld [vmem:[#allocation13 + $0x24] sm:$0xf]
    %v797 = vld [vmem:[#allocation13 + $0x28] sm:$0xf]
    %v798 = vld [vmem:[#allocation13 + $0x2c] sm:$0xf]
    %v799 = vld [vmem:[#allocation13 + $0x30] sm:$0xf]
    %v800 = vld [vmem:[#allocation13 + $0x34] sm:$0xf]
    %v801 = vld [vmem:[#allocation13 + $0x38] sm:$0xf]
    %v802 = vld [vmem:[#allocation13 + $0x3c] sm:$0xf]
    %v803 = vld [vmem:[#allocation14] sm:$0x1]
    %v805 = vlaneseq
    %v806 = vshrl.u32 %v805, 7
    %v807 = vsub.s32 0, %v806
    %v808 = vrot.slane %v803, %v807
    %v826 = vunpack.c.l.b16 %v787
    %v827 = vunpack.c.l.b16 %v788
    %v828 = vunpack.c.l.b16 %v789
    %v829 = vunpack.c.l.b16 %v790
    %v830 = vunpack.c.l.b16 %v791
    %v831 = vunpack.c.l.b16 %v792
    %v832 = vunpack.c.l.b16 %v793
    %v833 = vunpack.c.l.b16 %v794
    %v834 = vunpack.c.l.b16 %v795
    %v835 = vunpack.c.l.b16 %v796
    %v836 = vunpack.c.l.b16 %v797
    %v837 = vunpack.c.l.b16 %v798
    %v838 = vunpack.c.l.b16 %v799
    %v839 = vunpack.c.l.b16 %v800
    %v840 = vunpack.c.l.b16 %v801
    %v841 = vunpack.c.l.b16 %v802
    %v842 = vpack.c.b16 %v827, %v826
    %v843 = vpack.c.b16 %v829, %v828
    %v844 = vpack.c.b16 %v831, %v830
    %v845 = vpack.c.b16 %v833, %v832
    %v846 = vpack.c.b16 %v835, %v834
    %v847 = vpack.c.b16 %v837, %v836
    %v848 = vpack.c.b16 %v839, %v838
    %v849 = vpack.c.b16 %v841, %v840
    %858 = vmatprep.subr.bf16.mxu0 0
    %859 = vmatpush1.bf16.msra.mxu0 %v842
    %860 = vmatprep.subr.bf16.mxu0 0
    %861 = vmatpush1.bf16.msra.mxu0 %v843
    %862 = vmatprep.subr.bf16.mxu0 0
    %863 = vmatpush1.bf16.msra.mxu0 %v844
    %864 = vmatprep.subr.bf16.mxu0 0
    %865 = vmatpush1.bf16.msra.mxu0 %v845
    %866 = vmatprep.subr.bf16.mxu0 0
    %867 = vmatpush1.bf16.msra.mxu0 %v846
    %868 = vmatprep.subr.bf16.mxu0 0
    %869 = vmatpush1.bf16.msra.mxu0 %v847
    %870 = vmatprep.subr.bf16.mxu0 0
    %871 = vmatpush1.bf16.msra.mxu0 %v848
    %872 = vmatprep.subr.bf16.mxu0 0
    %873 = vmatpush1.bf16.msra.mxu0 %v849
    %874 = vmatprep.subr.bf16.mxu0 0
    %875 = vmatpush1.bf16.msra.mxu0 0
    %876 = vmatprep.subr.bf16.mxu0 0
    %877 = vmatpush1.bf16.msra.mxu0 0
    %878 = vmatprep.subr.bf16.mxu0 0
    %879 = vmatpush1.bf16.msra.mxu0 0
    %880 = vmatprep.subr.bf16.mxu0 0
    %881 = vmatpush1.bf16.msra.mxu0 0
    %882 = vmatprep.subr.bf16.mxu0 0
    %883 = vmatpush1.bf16.msra.mxu0 0
    %884 = vmatprep.subr.bf16.mxu0 0
    %885 = vmatpush1.bf16.msra.mxu0 0
    %886 = vmatprep.subr.bf16.mxu0 0
    %887 = vmatpush1.bf16.msra.mxu0 0
    %888 = vmatprep.subr.bf16.mxu0 0
    %889 = vmatpush1.bf16.msra.mxu0 0
    %890 = vmatprep.mubr.bf16.mxu0 0
    %891 = vmatmul.mubr.bf16.gmra.mrb[0].mxu0 %v785
    %v892 = vpop.f32.mrb[0].mxu0
    %v893 = vadd.f32 %v808, %v892
    %v894 = vpop.f32.mrb[0].mxu0
    %v895 = vpop.f32.mrb[0].mxu0
    %v896 = vadd.f32 %v808, %v895
    %v897 = vpop.f32.mrb[0].mxu0
    %898 = vmatprep.mubr.bf16.mxu0 0
    %899 = vmatmul.mubr.bf16.gmra.mrb[0].mxu0 %v786
    %v900 = vpop.f32.mrb[0].mxu0
    %v901 = vadd.f32 %v808, %v900
    %v902 = vpop.f32.mrb[0].mxu0
    %v903 = vpop.f32.mrb[0].mxu0
    %v904 = vadd.f32 %v808, %v903
    %v905 = vpop.f32.mrb[0].mxu0
    %906 = vdwg.mxu0
    %v907 = vadd.f32 %v269, %v893
    %v908 = vadd.f32 %v270, %v896
    %v909 = vadd.f32 %v271, %v901
    %v910 = vadd.f32 %v272, %v904
    %911 = vadd.xlane.f32.xlu0 %v907
    %v912 = vpop.xlane.xlu0 %911
    %913 = vadd.xlane.f32.xlu0 %v908
    %v914 = vpop.xlane.xlu0 %913
    %915 = vadd.xlane.f32.xlu0 %v909
    %v916 = vpop.xlane.xlu0 %915
    %917 = vadd.xlane.f32.xlu0 %v910
    %v918 = vpop.xlane.xlu0 %917
    %v919 = vmul.f32 %v912, 0.03125
    %v920 = vmul.f32 %v914, 0.03125
    %v921 = vmul.f32 %v916, 0.03125
    %v922 = vmul.f32 %v918, 0.03125
    %v923 = vsub.f32 %v907, %v919
    %v924 = vsub.f32 %v908, %v920
    %v925 = vsub.f32 %v909, %v921
    %v926 = vsub.f32 %v910, %v922
    %v927 = vmul.f32 %v923, %v204
    %v928 = vmul.f32 %v924, %v204
    %v929 = vmul.f32 %v925, %v204
    %v930 = vmul.f32 %v926, %v204
    %v931 = vmul.f32 %v927, %v927
    %v932 = vmul.f32 %v928, %v928
    %v933 = vmul.f32 %v929, %v929
    %v934 = vmul.f32 %v930, %v930
    %935 = vadd.xlane.f32.xlu0 %v931
    %v936 = vpop.xlane.xlu0 %935
    %937 = vadd.xlane.f32.xlu0 %v932
    %v938 = vpop.xlane.xlu0 %937
    %939 = vadd.xlane.f32.xlu0 %v933
    %v940 = vpop.xlane.xlu0 %939
    %941 = vadd.xlane.f32.xlu0 %v934
    %v942 = vpop.xlane.xlu0 %941
    %v943 = vmul.f32 %v936, 0.03125
    %v944 = vmul.f32 %v938, 0.03125
    %v945 = vmul.f32 %v940, 0.03125
    %v946 = vmul.f32 %v942, 0.03125
    %v947 = vadd.f32 %v943, 1e-05
    %v948 = vadd.f32 %v944, 1e-05
    %v949 = vadd.f32 %v945, 1e-05
    %v950 = vadd.f32 %v946, 1e-05
    %v951 = vrsqrt.pop %v947
    %v952 = vrsqrt.pop %v948
    %v953 = vrsqrt.pop %v949
    %v954 = vrsqrt.pop %v950
    %v955 = vmul.f32 %v927, %v951
    %v956 = vmul.f32 %v928, %v952
    %v957 = vmul.f32 %v929, %v953
    %v958 = vmul.f32 %v930, %v954
    %v959 = vmul.f32 %v955, %v257
    %v960 = vmul.f32 %v956, %v257
    %v961 = vmul.f32 %v957, %v257
    %v962 = vmul.f32 %v958, %v257
    %v963 = vadd.f32 %v959, %v267
    %v964 = vadd.f32 %v960, %v267
    %v965 = vadd.f32 %v961, %v267
    %v966 = vadd.f32 %v962, %v267
    %v967 = vpack.c.bf16 %v964, %v963
    %v968 = vpack.c.bf16 %v966, %v965
    %v969 = vld [vmem:[#allocation16] sm:$0xf]
    %v970 = vld [vmem:[#allocation16 + $0x4] sm:$0xf]
    %v971 = vld [vmem:[#allocation16 + $0x8] sm:$0xf]
    %v972 = vld [vmem:[#allocation16 + $0xc] sm:$0xf]
    %v973 = vld [vmem:[#allocation16 + $0x10] sm:$0xf]
    %v974 = vld [vmem:[#allocation16 + $0x14] sm:$0xf]
    %v975 = vld [vmem:[#allocation16 + $0x18] sm:$0xf]
    %v976 = vld [vmem:[#allocation16 + $0x1c] sm:$0xf]
    %v977 = vld [vmem:[#allocation16 + $0x20] sm:$0xf]
    %v978 = vld [vmem:[#allocation16 + $0x24] sm:$0xf]
    %v979 = vld [vmem:[#allocation16 + $0x28] sm:$0xf]
    %v980 = vld [vmem:[#allocation16 + $0x2c] sm:$0xf]
    %v981 = vld [vmem:[#allocation16 + $0x30] sm:$0xf]
    %v982 = vld [vmem:[#allocation16 + $0x34] sm:$0xf]
    %v983 = vld [vmem:[#allocation16 + $0x38] sm:$0xf]
    %v984 = vld [vmem:[#allocation16 + $0x3c] sm:$0xf]
    %v985 = vld [vmem:[#allocation17] sm:$0x1]
    %v987 = vlaneseq
    %v988 = vshrl.u32 %v987, 7
    %v989 = vsub.s32 0, %v988
    %v990 = vrot.slane %v985, %v989
    %v1008 = vunpack.c.l.b16 %v969
    %v1009 = vunpack.c.l.b16 %v970
    %v1010 = vunpack.c.l.b16 %v971
    %v1011 = vunpack.c.l.b16 %v972
    %v1012 = vunpack.c.l.b16 %v973
    %v1013 = vunpack.c.l.b16 %v974
    %v1014 = vunpack.c.l.b16 %v975
    %v1015 = vunpack.c.l.b16 %v976
    %v1016 = vunpack.c.l.b16 %v977
    %v1017 = vunpack.c.l.b16 %v978
    %v1018 = vunpack.c.l.b16 %v979
    %v1019 = vunpack.c.l.b16 %v980
    %v1020 = vunpack.c.l.b16 %v981
    %v1021 = vunpack.c.l.b16 %v982
    %v1022 = vunpack.c.l.b16 %v983
    %v1023 = vunpack.c.l.b16 %v984
    %v1024 = vpack.c.b16 %v1009, %v1008
    %v1025 = vpack.c.b16 %v1011, %v1010
    %v1026 = vpack.c.b16 %v1013, %v1012
    %v1027 = vpack.c.b16 %v1015, %v1014
    %v1028 = vpack.c.b16 %v1017, %v1016
    %v1029 = vpack.c.b16 %v1019, %v1018
    %v1030 = vpack.c.b16 %v1021, %v1020
    %v1031 = vpack.c.b16 %v1023, %v1022
    %1040 = vmatprep.subr.bf16.mxu0 0
    %1041 = vmatpush1.bf16.msra.mxu0 %v1024
    %1042 = vmatprep.subr.bf16.mxu0 0
    %1043 = vmatpush1.bf16.msra.mxu0 %v1025
    %1044 = vmatprep.subr.bf16.mxu0 0
    %1045 = vmatpush1.bf16.msra.mxu0 %v1026
    %1046 = vmatprep.subr.bf16.mxu0 0
    %1047 = vmatpush1.bf16.msra.mxu0 %v1027
    %1048 = vmatprep.subr.bf16.mxu0 0
    %1049 = vmatpush1.bf16.msra.mxu0 %v1028
    %1050 = vmatprep.subr.bf16.mxu0 0
    %1051 = vmatpush1.bf16.msra.mxu0 %v1029
    %1052 = vmatprep.subr.bf16.mxu0 0
    %1053 = vmatpush1.bf16.msra.mxu0 %v1030
    %1054 = vmatprep.subr.bf16.mxu0 0
    %1055 = vmatpush1.bf16.msra.mxu0 %v1031
    %1056 = vmatprep.subr.bf16.mxu0 0
    %1057 = vmatpush1.bf16.msra.mxu0 0
    %1058 = vmatprep.subr.bf16.mxu0 0
    %1059 = vmatpush1.bf16.msra.mxu0 0
    %1060 = vmatprep.subr.bf16.mxu0 0
    %1061 = vmatpush1.bf16.msra.mxu0 0
    %1062 = vmatprep.subr.bf16.mxu0 0
    %1063 = vmatpush1.bf16.msra.mxu0 0
    %1064 = vmatprep.subr.bf16.mxu0 0
    %1065 = vmatpush1.bf16.msra.mxu0 0
    %1066 = vmatprep.subr.bf16.mxu0 0
    %1067 = vmatpush1.bf16.msra.mxu0 0
    %1068 = vmatprep.subr.bf16.mxu0 0
    %1069 = vmatpush1.bf16.msra.mxu0 0
    %1070 = vmatprep.subr.bf16.mxu0 0
    %1071 = vmatpush1.bf16.msra.mxu0 0
    %1072 = vmatprep.mubr.bf16.mxu0 0
    %1073 = vmatmul.mubr.bf16.gmra.mrb[0].mxu0 %v967
    %v1074 = vpop.f32.mrb[0].mxu0
    %v1075 = vadd.f32 %v990, %v1074
    %v1076 = vpop.f32.mrb[0].mxu0
    %v1077 = vpop.f32.mrb[0].mxu0
    %v1078 = vadd.f32 %v990, %v1077
    %v1079 = vpop.f32.mrb[0].mxu0
    %1080 = vmatprep.mubr.bf16.mxu0 0
    %1081 = vmatmul.mubr.bf16.gmra.mrb[0].mxu0 %v968
    %v1082 = vpop.f32.mrb[0].mxu0
    %v1083 = vadd.f32 %v990, %v1082
    %v1084 = vpop.f32.mrb[0].mxu0
    %v1085 = vpop.f32.mrb[0].mxu0
    %v1086 = vadd.f32 %v990, %v1085
    %v1087 = vpop.f32.mrb[0].mxu0
    %1088 = vdwg.mxu0
    %v1089 = vmul.f32 %v1075, 0.5
    %v1090 = vmul.f32 %v1078, 0.5
    %v1091 = vmul.f32 %v1083, 0.5
    %v1092 = vmul.f32 %v1086, 0.5
    %v1093 = vmul.f32 %v1075, 0.70710677
    %v1094 = vmul.f32 %v1078, 0.70710677
    %v1095 = vmul.f32 %v1083, 0.70710677
    %v1096 = vmul.f32 %v1086, 0.70710677
    %v1097 = verf.f32.pop %v1093
    %v1098 = verf.f32.pop %v1094
    %v1099 = verf.f32.pop %v1095
    %v1100 = verf.f32.pop %v1096
    %v1101 = vadd.f32 %v1097, 1.0
    %v1102 = vadd.f32 %v1098, 1.0
    %v1103 = vadd.f32 %v1099, 1.0
    %v1104 = vadd.f32 %v1100, 1.0
    %v1105 = vmul.f32 %v1089, %v1101
    %v1106 = vmul.f32 %v1090, %v1102
    %v1107 = vmul.f32 %v1091, %v1103
    %v1108 = vmul.f32 %v1092, %v1104
    %v1109 = vpack.c.bf16 %v1106, %v1105
    %v1110 = vpack.c.bf16 %v1108, %v1107
    %v1111 = vld [vmem:[#allocation19] sm:$0xf]
    %v1112 = vld [vmem:[#allocation19 + $0x4] sm:$0xf]
    %v1113 = vld [vmem:[#allocation19 + $0x8] sm:$0xf]
    %v1114 = vld [vmem:[#allocation19 + $0xc] sm:$0xf]
    %v1115 = vld [vmem:[#allocation19 + $0x10] sm:$0xf]
    %v1116 = vld [vmem:[#allocation19 + $0x14] sm:$0xf]
    %v1117 = vld [vmem:[#allocation19 + $0x18] sm:$0xf]
    %v1118 = vld [vmem:[#allocation19 + $0x1c] sm:$0xf]
    %v1119 = vld [vmem:[#allocation19 + $0x20] sm:$0xf]
    %v1120 = vld [vmem:[#allocation19 + $0x24] sm:$0xf]
    %v1121 = vld [vmem:[#allocation19 + $0x28] sm:$0xf]
    %v1122 = vld [vmem:[#allocation19 + $0x2c] sm:$0xf]
    %v1123 = vld [vmem:[#allocation19 + $0x30] sm:$0xf]
    %v1124 = vld [vmem:[#allocation19 + $0x34] sm:$0xf]
    %v1125 = vld [vmem:[#allocation19 + $0x38] sm:$0xf]
    %v1126 = vld [vmem:[#allocation19 + $0x3c] sm:$0xf]
    %v1127 = vld [vmem:[#allocation20] sm:$0x1]
    %v1129 = vlaneseq
    %v1130 = vshrl.u32 %v1129, 7
    %v1131 = vsub.s32 0, %v1130
    %v1132 = vrot.slane %v1127, %v1131
    %v1150 = vunpack.c.l.b16 %v1111
    %v1151 = vunpack.c.l.b16 %v1112
    %v1152 = vunpack.c.l.b16 %v1113
    %v1153 = vunpack.c.l.b16 %v1114
    %v1154 = vunpack.c.l.b16 %v1115
    %v1155 = vunpack.c.l.b16 %v1116
    %v1156 = vunpack.c.l.b16 %v1117
    %v1157 = vunpack.c.l.b16 %v1118
    %v1158 = vunpack.c.l.b16 %v1119
    %v1159 = vunpack.c.l.b16 %v1120
    %v1160 = vunpack.c.l.b16 %v1121
    %v1161 = vunpack.c.l.b16 %v1122
    %v1162 = vunpack.c.l.b16 %v1123
    %v1163 = vunpack.c.l.b16 %v1124
    %v1164 = vunpack.c.l.b16 %v1125
    %v1165 = vunpack.c.l.b16 %v1126
    %v1166 = vpack.c.b16 %v1151, %v1150
    %v1167 = vpack.c.b16 %v1153, %v1152
    %v1168 = vpack.c.b16 %v1155, %v1154
    %v1169 = vpack.c.b16 %v1157, %v1156
    %v1170 = vpack.c.b16 %v1159, %v1158
    %v1171 = vpack.c.b16 %v1161, %v1160
    %v1172 = vpack.c.b16 %v1163, %v1162
    %v1173 = vpack.c.b16 %v1165, %v1164
    %1182 = vmatprep.subr.bf16.mxu0 0
    %1183 = vmatpush1.bf16.msra.mxu0 %v1166
    %1184 = vmatprep.subr.bf16.mxu0 0
    %1185 = vmatpush1.bf16.msra.mxu0 %v1167
    %1186 = vmatprep.subr.bf16.mxu0 0
    %1187 = vmatpush1.bf16.msra.mxu0 %v1168
    %1188 = vmatprep.subr.bf16.mxu0 0
    %1189 = vmatpush1.bf16.msra.mxu0 %v1169
    %1190 = vmatprep.subr.bf16.mxu0 0
    %1191 = vmatpush1.bf16.msra.mxu0 %v1170
    %1192 = vmatprep.subr.bf16.mxu0 0
    %1193 = vmatpush1.bf16.msra.mxu0 %v1171
    %1194 = vmatprep.subr.bf16.mxu0 0
    %1195 = vmatpush1.bf16.msra.mxu0 %v1172
    %1196 = vmatprep.subr.bf16.mxu0 0
    %1197 = vmatpush1.bf16.msra.mxu0 %v1173
    %1198 = vmatprep.subr.bf16.mxu0 0
    %1199 = vmatpush1.bf16.msra.mxu0 0
    %1200 = vmatprep.subr.bf16.mxu0 0
    %1201 = vmatpush1.bf16.msra.mxu0 0
    %1202 = vmatprep.subr.bf16.mxu0 0
    %1203 = vmatpush1.bf16.msra.mxu0 0
    %1204 = vmatprep.subr.bf16.mxu0 0
    %1205 = vmatpush1.bf16.msra.mxu0 0
    %1206 = vmatprep.subr.bf16.mxu0 0
    %1207 = vmatpush1.bf16.msra.mxu0 0
    %1208 = vmatprep.subr.bf16.mxu0 0
    %1209 = vmatpush1.bf16.msra.mxu0 0
    %1210 = vmatprep.subr.bf16.mxu0 0
    %1211 = vmatpush1.bf16.msra.mxu0 0
    %1212 = vmatprep.subr.bf16.mxu0 0
    %1213 = vmatpush1.bf16.msra.mxu0 0
    %1214 = vmatprep.mubr.bf16.mxu0 0
    %1215 = vmatmul.mubr.bf16.gmra.mrb[0].mxu0 %v1109
    %v1216 = vpop.f32.mrb[0].mxu0
    %v1217 = vadd.f32 %v1132, %v1216
    %v1218 = vpop.f32.mrb[0].mxu0
    %v1219 = vpop.f32.mrb[0].mxu0
    %v1220 = vadd.f32 %v1132, %v1219
    %v1221 = vpop.f32.mrb[0].mxu0
    %1222 = vmatprep.mubr.bf16.mxu0 0
    %1223 = vmatmul.mubr.bf16.gmra.mrb[0].mxu0 %v1110
    %v1224 = vpop.f32.mrb[0].mxu0
    %v1225 = vadd.f32 %v1132, %v1224
    %v1226 = vpop.f32.mrb[0].mxu0
    %v1227 = vpop.f32.mrb[0].mxu0
    %v1228 = vadd.f32 %v1132, %v1227
    %v1229 = vpop.f32.mrb[0].mxu0
    %1230 = vdwg.mxu0
    %v1231 = vadd.f32 %v963, %v1217
    %v1232 = vadd.f32 %v964, %v1220
    %v1233 = vadd.f32 %v965, %v1225
    %v1234 = vadd.f32 %v966, %v1228
    %1235 = vst [vmem:[#allocation22] sm:$0xff] %v1231
    %1236 = vst [vmem:[#allocation22 + $0x8] sm:$0xff] %v1232
    %1237 = vst [vmem:[#allocation22 + $0x10] sm:$0xff] %v1233
    %1238 = vst [vmem:[#allocation22 + $0x18] sm:$0xff] %v1234
    // Predicated region
    $region98: #{_forward_impl.1} parent=1 // pred_check
      _
    $region99: #{_forward_impl.1} parent=1 // pred_check_branch
      %1240 = sbr.rel (0) target = $region101
    $region100: #{_forward_impl.1} parent=1 // pred_region
      %s1242 = ssub.s32 512, 512
      %1243 = vsyncadd [#allocation4], %s1242
      %s1244 = sshll.u32 [#allocation22], 4
      %s1245 = int_to_ptr.vmem [resolvable:$true] %s1244
      %1250 = dma.vmem_to_hbm [thread:$0]  %s1245, 512, %s12, [#allocation4], 128, 128, 8
    $region101: #{_forward_impl.1} parent=1 // pred_fallthru
      _
    // Predicated region
    $region102: #{_forward_impl.1} parent=1 // pred_check
      _
    $region103: #{_forward_impl.1} parent=1 // pred_check_branch
      %1252 = sbr.rel (0) target = $region105
    $region104: #{_forward_impl.1} parent=1 // pred_region
      %1253 = dma.done [#allocation4], 512
    $region105: #{_forward_impl.1} parent=1 // pred_fallthru
      _
    %1254 = vsyncpa [#allocation3], 1
    %1255 = vsyncpa [#allocation6], 1
    %1256 = vsyncpa [#allocation9], 1
    %1257 = vsyncpa [#allocation12], 1
    %1258 = vsyncpa [#allocation15], 1
    %1259 = vsyncpa [#allocation18], 1
    %1260 = vsyncpa [#allocation21], 1
    %1261 = vsyncpa [#allocation4], 1

// kernel: _forward_impl.1
$region0: #{_forward_impl.1}
  #allocation0 [shape = 'u32[]', space=smem, size = 0x4, offset = 0x4, fixed_abs, tag = 'smem constant byte address 0x4 - core index']
  #allocation1 [shape = 'u32[144,128]{1,0:T(1,128)}', space=vmem, size = 0x12000, scoped, tag = 'internal scratch']
  %s0 = inlined_call_operand.hbm [shape: f32[32,128], index: 0, kind: input, shape index: {}]
  %s1 = inlined_call_operand.hbm [shape: bf16[16,16], index: 1, kind: input, shape index: {}]
  %s2 = inlined_call_operand.hbm [shape: f32[1,128], index: 2, kind: input, shape index: {}]
  %s3 = inlined_call_operand.hbm [shape: f32[1,128], index: 3, kind: input, shape index: {}]
  %s4 = inlined_call_operand.hbm [shape: bf16[128,384], index: 4, kind: input, shape index: {}]
  %s5 = inlined_call_operand.hbm [shape: f32[1,384], index: 5, kind: input, shape index: {}]
  %s6 = inlined_call_operand.hbm [shape: bf16[128,128], index: 6, kind: input, shape index: {}]
  %s7 = inlined_call_operand.hbm [shape: f32[1,128], index: 7, kind: input, shape index: {}]
  %s8 = inlined_call_operand.hbm [shape: bf16[128,128], index: 8, kind: input, shape index: {}]
  %s9 = inlined_call_operand.hbm [shape: f32[1,128], index: 9, kind: input, shape index: {}]
  %s10 = inlined_call_operand.hbm [shape: bf16[128,128], index: 10, kind: input, shape index: {}]
  %s11 = inlined_call_operand.hbm [shape: f32[1,128], index: 11, kind: input, shape index: {}]
  %s12 = inlined_call_operand.hbm [shape: f32[32,128], index: 12, kind: output, shape index: {}]
  %s13 = sld [smem:[#allocation0]]
  $region106: #{_forward_impl.1} parent=0
    _
  %s15 = ssub.s32 1, %s13
  %s16 = scalar_select 0, %s15, %s13
  $region1: #{_forward_impl.1} parent=0
    #allocation2 [shape = 'u8[16384]{0}', space=vmem, size = 0x4000, scoped, tag = 'input window, operand 0, single buffered']
    #allocation3 [shape = 's32[1]{0}', space=sflag, size = 0x4, scoped, tag = 'scoped memory for _forward_impl.1']
    #allocation4 [shape = 's32[1]{0}', space=sflag, size = 0x4, scoped, tag = 'scoped memory for _forward_impl.1']
    #allocation5 [shape = 'u8[4096]{0}', space=vmem, size = 0x1000, scoped, tag = 'input window, operand 1, single buffered']
    #allocation6 [shape = 's32[1]{0}', space=sflag, size = 0x4, scoped, tag = 'scoped memory for _forward_impl.1']
    #allocation7 [shape = 'u8[512]{0}', space=vmem, size = 0x400, scoped, tag = 'input window, operand 2, single buffered']
    #allocation8 [shape = 'u8[512]{0}', space=vmem, size = 0x400, scoped, tag = 'input window, operand 3, single buffered']
    #allocation9 [shape = 's32[1]{0}', space=sflag, size = 0x4, scoped, tag = 'scoped memory for _forward_impl.1']
    #allocation10 [shape = 'u8[98304]{0}', space=vmem, size = 0x18000, scoped, tag = 'input window, operand 4, single buffered']
    #allocation11 [shape = 'u8[1536]{0}', space=vmem, size = 0x800, scoped, tag = 'input window, operand 5, single buffered']
    #allocation12 [shape = 's32[1]{0}', space=sflag, size = 0x4, scoped, tag = 'scoped memory for _forward_impl.1']
    #allocation13 [shape = 'u8[32768]{0}', space=vmem, size = 0x8000, scoped, tag = 'input window, operand 6, single buffered']
    #allocation14 [shape = 'u8[512]{0}', space=vmem, size = 0x400, scoped, tag = 'input window, operand 7, single buffered']
    #allocation15 [shape = 's32[1]{0}', space=sflag, size = 0x4, scoped, tag = 'scoped memory for _forward_impl.1']
    #allocation16 [shape = 'u8[32768]{0}', space=vmem, size = 0x8000, scoped, tag = 'input window, operand 8, single buffered']
    #allocation17 [shape = 'u8[512]{0}', space=vmem, size = 0x400, scoped, tag = 'input window, operand 9, single buffered']
    #allocation18 [shape = 's32[1]{0}', space=sflag, size = 0x4, scoped, tag = 'scoped memory for _forward_impl.1']
    #allocation19 [shape = 'u8[32768]{0}', space=vmem, size = 0x8000, scoped, tag = 'input window, operand 10, single buffered']
    #allocation20 [shape = 'u8[512]{0}', space=vmem, size = 0x400, scoped, tag = 'input window, operand 11, single buffered']
    #allocation21 [shape = 's32[1]{0}', space=sflag, size = 0x4, scoped, tag = 'scoped memory for _forward_impl.1']
    #allocation22 [shape = 'u8[16384]{0}', space=vmem, size = 0x4000, scoped, tag = 'output window, operand 0, single buffered']
    %17 = vsyncpa [#allocation3], 0
    %18 = vsyncpa [#allocation6], 0
    %19 = vsyncpa [#allocation9], 0
    %20 = vsyncpa [#allocation12], 0
    %21 = vsyncpa [#allocation15], 0
    %22 = vsyncpa [#allocation18], 0
    %23 = vsyncpa [#allocation21], 0
    %24 = vsyncpa [#allocation4], 0
    // Predicated region
    $region2: #{_forward_impl.1} parent=1 // pred_check
      _
    $region3: #{_forward_impl.1} parent=1 // pred_check_branch
      %26 = sbr.rel (0) target = $region5
    $region4: #{_forward_impl.1} parent=1 // pred_region
      %s28 = ssub.s32 512, 512
      %29 = vsyncadd [#allocation3], %s28
      %s30 = sshll.u32 [#allocation2], 4
      %s31 = int_to_ptr.vmem [resolvable:$true] %s30
      %36 = dma.hbm_to_vmem [thread:$0]  %s0, 512, %s31, [#allocation3], 128, 128, 8
    $region5: #{_forward_impl.1} parent=1 // pred_fallthru
      _
    // Predicated region
    $region6: #{_forward_impl.1} parent=1 // pred_check
      _
    $region7: #{_forward_impl.1} parent=1 // pred_check_branch
      %38 = sbr.rel (0) target = $region9
    $region8: #{_forward_impl.1} parent=1 // pred_region
      %s40 = ssub.s32 128, 128
      %41 = vsyncadd [#allocation6], %s40
      %s42 = sshll.u32 [#allocation5], 4
      %s43 = int_to_ptr.vmem [resolvable:$true] %s42
      %48 = dma.hbm_to_vmem [thread:$0]  %s1, 128, %s43, [#allocation6], 64, 64, 4
    $region9: #{_forward_impl.1} parent=1 // pred_fallthru
      _
    // Predicated region
    $region10: #{_forward_impl.1} parent=1 // pred_check
      _
    $region11: #{_forward_impl.1} parent=1 // pred_check_branch
      %50 = sbr.rel (0) target = $region13
    $region12: #{_forward_impl.1} parent=1 // pred_region
      %s52 = ssub.s32 16, 16
      %53 = vsyncadd [#allocation6], %s52
      %s55 = sshll.u32 [#allocation7], 4
      %s56 = int_to_ptr.vmem [resolvable:$true] %s55
      %58 = dma.hbm_to_vmem [thread:$0]  %s2, 16, %s56, [#allocation6]
    $region13: #{_forward_impl.1} parent=1 // pred_fallthru
      _
    // Predicated region
    $region14: #{_forward_impl.1} parent=1 // pred_check
      _
    $region15: #{_forward_impl.1} parent=1 // pred_check_branch
      %60 = sbr.rel (0) target = $region17
    $region16: #{_forward_impl.1} parent=1 // pred_region
      %s62 = ssub.s32 16, 16
      %63 = vsyncadd [#allocation9], %s62
      %s65 = sshll.u32 [#allocation8], 4
      %s66 = int_to_ptr.vmem [resolvable:$true] %s65
      %68 = dma.hbm_to_vmem [thread:$0]  %s3, 16, %s66, [#allocation9]
    $region17: #{_forward_impl.1} parent=1 // pred_fallthru
      _
    // Predicated region
    $region18: #{_forward_impl.1} parent=1 // pred_check
      _
    $region19: #{_forward_impl.1} parent=1 // pred_check_branch
      %70 = sbr.rel (0) target = $region21
    $region20: #{_forward_impl.1} parent=1 // pred_region
      %s72 = ssub.s32 3072, 3072
      %73 = vsyncadd [#allocation9], %s72
      %s74 = sshll.u32 [#allocation10], 4
      %s75 = int_to_ptr.vmem [resolvable:$true] %s74
      %80 = dma.hbm_to_vmem [thread:$0]  %s4, 3072, %s75, [#allocation9], 192, 192, 12
    $region21: #{_forward_impl.1} parent=1 // pred_fallthru
      _
    // Predicated region
    $region22: #{_forward_impl.1} parent=1 // pred_check
      _
    $region23: #{_forward_impl.1} parent=1 // pred_check_branch
      %82 = sbr.rel (0) target = $region25
    $region24: #{_forward_impl.1} parent=1 // pred_region
      %s84 = ssub.s32 48, 48
      %85 = vsyncadd [#allocation12], %s84
      %s87 = sshll.u32 [#allocation11], 4
      %s88 = int_to_ptr.vmem [resolvable:$true] %s87
      %90 = dma.hbm_to_vmem [thread:$0]  %s5, 48, %s88, [#allocation12]
    $region25: #{_forward_impl.1} parent=1 // pred_fallthru
      _
    // Predicated region
    $region26: #{_forward_impl.1} parent=1 // pred_check
      _
    $region27: #{_forward_impl.1} parent=1 // pred_check_branch
      %92 = sbr.rel (0) target = $region29
    $region28: #{_forward_impl.1} parent=1 // pred_region
      %s94 = ssub.s32 1024, 1024
      %95 = vsyncadd [#allocation12], %s94
      %s96 = sshll.u32 [#allocation13], 4
      %s97 = int_to_ptr.vmem [resolvable:$true] %s96
      %102 = dma.hbm_to_vmem [thread:$0]  %s6, 1024, %s97, [#allocation12], 64, 64, 4
    $region29: #{_forward_impl.1} parent=1 // pred_fallthru
      _
    // Predicated region
    $region30: #{_forward_impl.1} parent=1 // pred_check
      _
    $region31: #{_forward_impl.1} parent=1 // pred_check_branch
      %104 = sbr.rel (0) target = $region33
    $region32: #{_forward_impl.1} parent=1 // pred_region
      %s106 = ssub.s32 16, 16
      %107 = vsyncadd [#allocation15], %s106
      %s109 = sshll.u32 [#allocation14], 4
      %s110 = int_to_ptr.vmem [resolvable:$true] %s109
      %112 = dma.hbm_to_vmem [thread:$0]  %s7, 16, %s110, [#allocation15]
    $region33: #{_forward_impl.1} parent=1 // pred_fallthru
      _
    // Predicated region
    $region34: #{_forward_impl.1} parent=1 // pred_check
      _
    $region35: #{_forward_impl.1} parent=1 // pred_check_branch
      %114 = sbr.rel (0) target = $region37
    $region36: #{_forward_impl.1} parent=1 // pred_region
      %s116 = ssub.s32 1024, 1024
      %117 = vsyncadd [#allocation15], %s116
      %s118 = sshll.u32 [#allocation16], 4
      %s119 = int_to_ptr.vmem [resolvable:$true] %s118
      %124 = dma.hbm_to_vmem [thread:$0]  %s8, 1024, %s119, [#allocation15], 64, 64, 4
    $region37: #{_forward_impl.1} parent=1 // pred_fallthru
      _
    // Predicated region
    $region38: #{_forward_impl.1} parent=1 // pred_check
      _
    $region39: #{_forward_impl.1} parent=1 // pred_check_branch
      %126 = sbr.rel (0) target = $region41
    $region40: #{_forward_impl.1} parent=1 // pred_region
      %s128 = ssub.s32 16, 16
      %129 = vsyncadd [#allocation18], %s128
      %s131 = sshll.u32 [#allocation17], 4
      %s132 = int_to_ptr.vmem [resolvable:$true] %s131
      %134 = dma.hbm_to_vmem [thread:$0]  %s9, 16, %s132, [#allocation18]
    $region41: #{_forward_impl.1} parent=1 // pred_fallthru
      _
    // Predicated region
    $region42: #{_forward_impl.1} parent=1 // pred_check
      _
    $region43: #{_forward_impl.1} parent=1 // pred_check_branch
      %136 = sbr.rel (0) target = $region45
    $region44: #{_forward_impl.1} parent=1 // pred_region
      %s138 = ssub.s32 1024, 1024
      %139 = vsyncadd [#allocation18], %s138
      %s140 = sshll.u32 [#allocation19], 4
      %s141 = int_to_ptr.vmem [resolvable:$true] %s140
      %146 = dma.hbm_to_vmem [thread:$0]  %s10, 1024, %s141, [#allocation18], 64, 64, 4
    $region45: #{_forward_impl.1} parent=1 // pred_fallthru
      _
    // Predicated region
    $region46: #{_forward_impl.1} parent=1 // pred_check
      _
    $region47: #{_forward_impl.1} parent=1 // pred_check_branch
      %148 = sbr.rel (0) target = $region49
    $region48: #{_forward_impl.1} parent=1 // pred_region
      %s150 = ssub.s32 16, 16
      %151 = vsyncadd [#allocation21], %s150
      %s153 = sshll.u32 [#allocation20], 4
      %s154 = int_to_ptr.vmem [resolvable:$true] %s153
      %156 = dma.hbm_to_vmem [thread:$0]  %s11, 16, %s154, [#allocation21]
    $region49: #{_forward_impl.1} parent=1 // pred_fallthru
      _
    // Predicated region
    $region50: #{_forward_impl.1} parent=1 // pred_check
      _
    $region51: #{_forward_impl.1} parent=1 // pred_check_branch
      %158 = sbr.rel (0) target = $region53
    $region52: #{_forward_impl.1} parent=1 // pred_region
      %159 = dma.done [#allocation3], 512
    $region53: #{_forward_impl.1} parent=1 // pred_fallthru
      _
    // Predicated region
    $region54: #{_forward_impl.1} parent=1 // pred_check
      _
    $region55: #{_forward_impl.1} parent=1 // pred_check_branch
      %161 = sbr.rel (0) target = $region57
    $region56: #{_forward_impl.1} parent=1 // pred_region
      %162 = dma.done [#allocation6], 128
    $region57: #{_forward_impl.1} parent=1 // pred_fallthru
      _
    // Predicated region
    $region58: #{_forward_impl.1} parent=1 // pred_check
      _
    $region59: #{_forward_impl.1} parent=1 // pred_check_branch
      %164 = sbr.rel (0) target = $region61
    $region60: #{_forward_impl.1} parent=1 // pred_region
      %165 = dma.done [#allocation6], 16
    $region61: #{_forward_impl.1} parent=1 // pred_fallthru
      _
    // Predicated region
    $region62: #{_forward_impl.1} parent=1 // pred_check
      _
    $region63: #{_forward_impl.1} parent=1 // pred_check_branch
      %167 = sbr.rel (0) target = $region65
    $region64: #{_forward_impl.1} parent=1 // pred_region
      %168 = dma.done [#allocation9], 16
    $region65: #{_forward_impl.1} parent=1 // pred_fallthru
      _
    // Predicated region
    $region66: #{_forward_impl.1} parent=1 // pred_check
      _
    $region67: #{_forward_impl.1} parent=1 // pred_check_branch
      %170 = sbr.rel (0) target = $region69
    $region68: #{_forward_impl.1} parent=1 // pred_region
      %171 = dma.done [#allocation9], 3072
    $region69: #{_forward_impl.1} parent=1 // pred_fallthru
      _
    // Predicated region
    $region70: #{_forward_impl.1} parent=1 // pred_check
      _
    $region71: #{_forward_impl.1} parent=1 // pred_check_branch
      %173 = sbr.rel (0) target = $region73
    $region72: #{_forward_impl.1} parent=1 // pred_region
      %174 = dma.done [#allocation12], 48
    $region73: #{_forward_impl.1} parent=1 // pred_fallthru
      _
    // Predicated region
    $region74: #{_forward_impl.1} parent=1 // pred_check
      _
    $region75: #{_forward_impl.1} parent=1 // pred_check_branch
      %176 = sbr.rel (0) target = $region77
    $region76: #{_forward_impl.1} parent=1 // pred_region
      %177 = dma.done [#allocation12], 1024
    $region77: #{_forward_impl.1} parent=1 // pred_fallthru
      _
    // Predicated region
    $region78: #{_forward_impl.1} parent=1 // pred_check
      _
    $region79: #{_forward_impl.1} parent=1 // pred_check_branch
      %179 = sbr.rel (0) target = $region81
    $region80: #{_forward_impl.1} parent=1 // pred_region
      %180 = dma.done [#allocation15], 16
    $region81: #{_forward_impl.1} parent=1 // pred_fallthru
      _
    // Predicated region
    $region82: #{_forward_impl.1} parent=1 // pred_check
      _
    $region83: #{_forward_impl.1} parent=1 // pred_check_branch
      %182 = sbr.rel (0) target = $region85
    $region84: #{_forward_impl.1} parent=1 // pred_region
      %183 = dma.done [#allocation15], 1024
    $region85: #{_forward_impl.1} parent=1 // pred_fallthru
      _
    // Predicated region
    $region86: #{_forward_impl.1} parent=1 // pred_check
      _
    $region87: #{_forward_impl.1} parent=1 // pred_check_branch
      %185 = sbr.rel (0) target = $region89
    $region88: #{_forward_impl.1} parent=1 // pred_region
      %186 = dma.done [#allocation18], 16
    $region89: #{_forward_impl.1} parent=1 // pred_fallthru
      _
    // Predicated region
    $region90: #{_forward_impl.1} parent=1 // pred_check
      _
    $region91: #{_forward_impl.1} parent=1 // pred_check_branch
      %188 = sbr.rel (0) target = $region93
    $region92: #{_forward_impl.1} parent=1 // pred_region
      %189 = dma.done [#allocation18], 1024
    $region93: #{_forward_impl.1} parent=1 // pred_fallthru
      _
    // Predicated region
    $region94: #{_forward_impl.1} parent=1 // pred_check
      _
    $region95: #{_forward_impl.1} parent=1 // pred_check_branch
      %191 = sbr.rel (0) target = $region97
    $region96: #{_forward_impl.1} parent=1 // pred_region
      %192 = dma.done [#allocation21], 16
    $region97: #{_forward_impl.1} parent=1 // pred_fallthru
      _
    %v194 = vld [vmem:[#allocation2] sm:$0xff]
    %v195 = vld [vmem:[#allocation2 + $0x8] sm:$0xff]
    %v196 = vld [vmem:[#allocation2 + $0x10] sm:$0xff]
    %v197 = vld [vmem:[#allocation2 + $0x18] sm:$0xff]
    %v198 = vld [vmem:[#allocation7] sm:$0x1]
    %v199 = vld [vmem:[#allocation8] sm:$0x1]
    %v200 = vlaneseq
    %v201 = vand.u32 %v200, 127
    %vm202 = vcmp.lt.s32.totalorder %v201, 32
    %v203 = vsel %vm202, 1, 0
    %v204 = vcvt.s32.f32 %v203
    %205 = vadd.xlane.f32.xlu0 %v194
    %v206 = vpop.xlane.xlu0 %205
    %207 = vadd.xlane.f32.xlu0 %v195
    %v208 = vpop.xlane.xlu0 %207
    %209 = vadd.xlane.f32.xlu0 %v196
    %v210 = vpop.xlane.xlu0 %209
    %211 = vadd.xlane.f32.xlu0 %v197
    %v212 = vpop.xlane.xlu0 %211
    %v213 = vmul.f32 %v206, 0.03125
    %v214 = vmul.f32 %v208, 0.03125
    %v215 = vmul.f32 %v210, 0.03125
    %v216 = vmul.f32 %v212, 0.03125
    %v217 = vsub.f32 %v194, %v213
    %v218 = vsub.f32 %v195, %v214
    %v219 = vsub.f32 %v196, %v215
    %v220 = vsub.f32 %v197, %v216
    %v221 = vmul.f32 %v217, %v204
    %v222 = vmul.f32 %v218, %v204
    %v223 = vmul.f32 %v219, %v204
    %v224 = vmul.f32 %v220, %v204
    %v225 = vmul.f32 %v221, %v221
    %v226 = vmul.f32 %v222, %v222
    %v227 = vmul.f32 %v223, %v223
    %v228 = vmul.f32 %v224, %v224
    %229 = vadd.xlane.f32.xlu0 %v225
    %v230 = vpop.xlane.xlu0 %229
    %231 = vadd.xlane.f32.xlu0 %v226
    %v232 = vpop.xlane.xlu0 %231
    %233 = vadd.xlane.f32.xlu0 %v227
    %v234 = vpop.xlane.xlu0 %233
    %235 = vadd.xlane.f32.xlu0 %v228
    %v236 = vpop.xlane.xlu0 %235
    %v237 = vmul.f32 %v230, 0.03125
    %v238 = vmul.f32 %v232, 0.03125
    %v239 = vmul.f32 %v234, 0.03125
    %v240 = vmul.f32 %v236, 0.03125
    %v241 = vadd.f32 %v237, 1e-05
    %v242 = vadd.f32 %v238, 1e-05
    %v243 = vadd.f32 %v239, 1e-05
    %v244 = vadd.f32 %v240, 1e-05
    %v245 = vrsqrt.pop %v241
    %v246 = vrsqrt.pop %v242
    %v247 = vrsqrt.pop %v243
    %v248 = vrsqrt.pop %v244
    %v249 = vmul.f32 %v221, %v245
    %v250 = vmul.f32 %v222, %v246
    %v251 = vmul.f32 %v223, %v247
    %v252 = vmul.f32 %v224, %v248
    %v254 = vlaneseq
    %v255 = vshrl.u32 %v254, 7
    %v256 = vsub.s32 0, %v255
    %v257 = vrot.slane %v198, %v256
    %v259 = vmul.f32 %v249, %v257
    %v260 = vmul.f32 %v250, %v257
    %v261 = vmul.f32 %v251, %v257
    %v262 = vmul.f32 %v252, %v257
    %v264 = vlaneseq
    %v265 = vshrl.u32 %v264, 7
    %v266 = vsub.s32 0, %v265
    %v267 = vrot.slane %v199, %v266
    %v269 = vadd.f32 %v259, %v267
    %v270 = vadd.f32 %v260, %v267
    %v271 = vadd.f32 %v261, %v267
    %v272 = vadd.f32 %v262, %v267
    %v273 = vpack.c.bf16 %v270, %v269
    %v274 = vpack.c.bf16 %v272, %v271
    %v275 = vld [vmem:[#allocation10] sm:$0xff]
    %v276 = vld [vmem:[#allocation10 + $0x8] sm:$0xf]
    %v277 = vld [vmem:[#allocation10 + $0xc] sm:$0xff]
    %v278 = vld [vmem:[#allocation10 + $0x14] sm:$0xf]
    %v279 = vld [vmem:[#allocation10 + $0x18] sm:$0xff]
    %v280 = vld [vmem:[#allocation10 + $0x20] sm:$0xf]
    %v281 = vld [vmem:[#allocation10 + $0x24] sm:$0xff]
    %v282 = vld [vmem:[#allocation10 + $0x2c] sm:$0xf]
    %v283 = vld [vmem:[#allocation10 + $0x30] sm:$0xff]
    %v284 = vld [vmem:[#allocation10 + $0x38] sm:$0xf]
    %v285 = vld [vmem:[#allocation10 + $0x3c] sm:$0xff]
    %v286 = vld [vmem:[#allocation10 + $0x44] sm:$0xf]
    %v287 = vld [vmem:[#allocation10 + $0x48] sm:$0xff]
    %v288 = vld [vmem:[#allocation10 + $0x50] sm:$0xf]
    %v289 = vld [vmem:[#allocation10 + $0x54] sm:$0xff]
    %v290 = vld [vmem:[#allocation10 + $0x5c] sm:$0xf]
    %v291 = vld [vmem:[#allocation10 + $0x60] sm:$0xff]
    %v292 = vld [vmem:[#allocation10 + $0x68] sm:$0xf]
    %v293 = vld [vmem:[#allocation10 + $0x6c] sm:$0xff]
    %v294 = vld [vmem:[#allocation10 + $0x74] sm:$0xf]
    %v295 = vld [vmem:[#allocation10 + $0x78] sm:$0xff]
    %v296 = vld [vmem:[#allocation10 + $0x80] sm:$0xf]
    %v297 = vld [vmem:[#allocation10 + $0x84] sm:$0xff]
    %v298 = vld [vmem:[#allocation10 + $0x8c] sm:$0xf]
    %v299 = vld [vmem:[#allocation10 + $0x90] sm:$0xff]
    %v300 = vld [vmem:[#allocation10 + $0x98] sm:$0xf]
    %v301 = vld [vmem:[#allocation10 + $0x9c] sm:$0xff]
    %v302 = vld [vmem:[#allocation10 + $0xa4] sm:$0xf]
    %v303 = vld [vmem:[#allocation10 + $0xa8] sm:$0xff]
    %v304 = vld [vmem:[#allocation10 + $0xb0] sm:$0xf]
    %v305 = vld [vmem:[#allocation10 + $0xb4] sm:$0xff]
    %v306 = vld [vmem:[#allocation10 + $0xbc] sm:$0xf]
    %v307 = vld [vmem:[#allocation11] sm:$0x7]
    %v309 = vlaneseq
    %v310 = vshrl.u32 %v309, 7
    %v311 = vsub.s32 0, %v310
    %v312 = vrot.slane %v307, %v311
    %v313 = vlaneseq
    %v314 = vshrl.u32 %v313, 7
    %v315 = vsub.s32 1, %v314
    %v316 = vrot.slane %v307, %v315
    %v317 = vlaneseq
    %v318 = vshrl.u32 %v317, 7
    %v319 = vsub.s32 2, %v318
    %v320 = vrot.slane %v307, %v319
    %v356 = vunpack.c.l.b16 %v275
    %v357 = vunpack.c.h.b16 %v275
    %v358 = vunpack.c.l.b16 %v276
    %v359 = vunpack.c.l.b16 %v277
    %v360 = vunpack.c.h.b16 %v277
    %v361 = vunpack.c.l.b16 %v278
    %v362 = vunpack.c.l.b16 %v279
    %v363 = vunpack.c.h.b16 %v279
    %v364 = vunpack.c.l.b16 %v280
    %v365 = vunpack.c.l.b16 %v281
    %v366 = vunpack.c.h.b16 %v281
    %v367 = vunpack.c.l.b16 %v282
    %v368 = vunpack.c.l.b16 %v283
    %v369 = vunpack.c.h.b16 %v283
    %v370 = vunpack.c.l.b16 %v284
    %v371 = vunpack.c.l.b16 %v285
    %v372 = vunpack.c.h.b16 %v285
    %v373 = vunpack.c.l.b16 %v286
    %v374 = vunpack.c.l.b16 %v287
    %v375 = vunpack.c.h.b16 %v287
    %v376 = vunpack.c.l.b16 %v288
    %v377 = vunpack.c.l.b16 %v289
    %v378 = vunpack.c.h.b16 %v289
    %v379 = vunpack.c.l.b16 %v290
    %v380 = vunpack.c.l.b16 %v291
    %v381 = vunpack.c.h.b16 %v291
    %v382 = vunpack.c.l.b16 %v292
    %v383 = vunpack.c.l.b16 %v293
    %v384 = vunpack.c.h.b16 %v293
    %v385 = vunpack.c.l.b16 %v294
    %v386 = vunpack.c.l.b16 %v295
    %v387 = vunpack.c.h.b16 %v295
    %v388 = vunpack.c.l.b16 %v296
    %v389 = vunpack.c.l.b16 %v297
    %v390 = vunpack.c.h.b16 %v297
    %v391 = vunpack.c.l.b16 %v298
    %v392 = vunpack.c.l.b16 %v299
    %v393 = vunpack.c.h.b16 %v299
    %v394 = vunpack.c.l.b16 %v300
    %v395 = vunpack.c.l.b16 %v301
    %v396 = vunpack.c.h.b16 %v301
    %v397 = vunpack.c.l.b16 %v302
    %v398 = vunpack.c.l.b16 %v303
    %v399 = vunpack.c.h.b16 %v303
    %v400 = vunpack.c.l.b16 %v304
    %v401 = vunpack.c.l.b16 %v305
    %v402 = vunpack.c.h.b16 %v305
    %v403 = vunpack.c.l.b16 %v306
    %v404 = vpack.c.b16 %v359, %v356
    %v405 = vpack.c.b16 %v360, %v357
    %v406 = vpack.c.b16 %v361, %v358
    %v407 = vpack.c.b16 %v365, %v362
    %v408 = vpack.c.b16 %v366, %v363
    %v409 = vpack.c.b16 %v367, %v364
    %v410 = vpack.c.b16 %v371, %v368
    %v411 = vpack.c.b16 %v372, %v369
    %v412 = vpack.c.b16 %v373, %v370
    %v413 = vpack.c.b16 %v377, %v374
    %v414 = vpack.c.b16 %v378, %v375
    %v415 = vpack.c.b16 %v379, %v376
    %v416 = vpack.c.b16 %v383, %v380
    %v417 = vpack.c.b16 %v384, %v381
    %v418 = vpack.c.b16 %v385, %v382
    %v419 = vpack.c.b16 %v389, %v386
    %v420 = vpack.c.b16 %v390, %v387
    %v421 = vpack.c.b16 %v391, %v388
    %v422 = vpack.c.b16 %v395, %v392
    %v423 = vpack.c.b16 %v396, %v393
    %v424 = vpack.c.b16 %v397, %v394
    %v425 = vpack.c.b16 %v401, %v398
    %v426 = vpack.c.b16 %v402, %v399
    %v427 = vpack.c.b16 %v403, %v400
    %452 = vmatprep.subr.bf16.mxu0 %v405
    %453 = vmatpush1.bf16.msra.mxu0 %v404
    %454 = vmatprep.subr.bf16.mxu0 %v408
    %455 = vmatpush1.bf16.msra.mxu0 %v407
    %456 = vmatprep.subr.bf16.mxu0 %v411
    %457 = vmatpush1.bf16.msra.mxu0 %v410
    %458 = vmatprep.subr.bf16.mxu0 %v414
    %459 = vmatpush1.bf16.msra.mxu0 %v413
    %460 = vmatprep.subr.bf16.mxu0 %v417
    %461 = vmatpush1.bf16.msra.mxu0 %v416
    %462 = vmatprep.subr.bf16.mxu0 %v420
    %463 = vmatpush1.bf16.msra.mxu0 %v419
    %464 = vmatprep.subr.bf16.mxu0 %v423
    %465 = vmatpush1.bf16.msra.mxu0 %v422
    %466 = vmatprep.subr.bf16.mxu0 %v426
    %467 = vmatpush1.bf16.msra.mxu0 %v425
    %468 = vmatprep.subr.bf16.mxu0 0
    %469 = vmatpush1.bf16.msra.mxu0 0
    %470 = vmatprep.subr.bf16.mxu0 0
    %471 = vmatpush1.bf16.msra.mxu0 0
    %472 = vmatprep.subr.bf16.mxu0 0
    %473 = vmatpush1.bf16.msra.mxu0 0
    %474 = vmatprep.subr.bf16.mxu0 0
    %475 = vmatpush1.bf16.msra.mxu0 0
    %476 = vmatprep.subr.bf16.mxu0 0
    %477 = vmatpush1.bf16.msra.mxu0 0
    %478 = vmatprep.subr.bf16.mxu0 0
    %479 = vmatpush1.bf16.msra.mxu0 0
    %480 = vmatprep.subr.bf16.mxu0 0
    %481 = vmatpush1.bf16.msra.mxu0 0
    %482 = vmatprep.subr.bf16.mxu0 0
    %483 = vmatpush1.bf16.msra.mxu0 0
    %484 = vmatprep.mubr.bf16.mxu0 0
    %485 = vmatmul.mubr.bf16.gmra.mrb[0].mxu0 %v273
    %v486 = vpop.f32.mrb[0].mxu0
    %v487 = vadd.f32 %v312, %v486
    %v488 = vpop.f32.mrb[0].mxu0
    %v489 = vadd.f32 %v316, %v488
    %v490 = vpop.f32.mrb[0].mxu0
    %v491 = vadd.f32 %v312, %v490
    %v492 = vpop.f32.mrb[0].mxu0
    %v493 = vadd.f32 %v316, %v492
    %494 = vmatprep.mubr.bf16.mxu0 0
    %495 = vmatmul.mubr.bf16.gmra.mrb[0].mxu0 %v274
    %v496 = vpop.f32.mrb[0].mxu0
    %v497 = vadd.f32 %v312, %v496
    %v498 = vpop.f32.mrb[0].mxu0
    %v499 = vadd.f32 %v316, %v498
    %v500 = vpop.f32.mrb[0].mxu0
    %v501 = vadd.f32 %v312, %v500
    %v502 = vpop.f32.mrb[0].mxu0
    %v503 = vadd.f32 %v316, %v502
    %504 = vdwg.mxu0
    %505 = vmatprep.subr.bf16.mxu0 0
    %506 = vmatpush1.bf16.msra.mxu0 %v406
    %507 = vmatprep.subr.bf16.mxu0 0
    %508 = vmatpush1.bf16.msra.mxu0 %v409
    %509 = vmatprep.subr.bf16.mxu0 0
    %510 = vmatpush1.bf16.msra.mxu0 %v412
    %511 = vmatprep.subr.bf16.mxu0 0
    %512 = vmatpush1.bf16.msra.mxu0 %v415
    %513 = vmatprep.subr.bf16.mxu0 0
    %514 = vmatpush1.bf16.msra.mxu0 %v418
    %515 = vmatprep.subr.bf16.mxu0 0
    %516 = vmatpush1.bf16.msra.mxu0 %v421
    %517 = vmatprep.subr.bf16.mxu0 0
    %518 = vmatpush1.bf16.msra.mxu0 %v424
    %519 = vmatprep.subr.bf16.mxu0 0
    %520 = vmatpush1.bf16.msra.mxu0 %v427
    %521 = vmatprep.subr.bf16.mxu0 0
    %522 = vmatpush1.bf16.msra.mxu0 0
    %523 = vmatprep.subr.bf16.mxu0 0
    %524 = vmatpush1.bf16.msra.mxu0 0
    %525 = vmatprep.subr.bf16.mxu0 0
    %526 = vmatpush1.bf16.msra.mxu0 0
    %527 = vmatprep.subr.bf16.mxu0 0
    %528 = vmatpush1.bf16.msra.mxu0 0
    %529 = vmatprep.subr.bf16.mxu0 0
    %530 = vmatpush1.bf16.msra.mxu0 0
    %531 = vmatprep.subr.bf16.mxu0 0
    %532 = vmatpush1.bf16.msra.mxu0 0
    %533 = vmatprep.subr.bf16.mxu0 0
    %534 = vmatpush1.bf16.msra.mxu0 0
    %535 = vmatprep.subr.bf16.mxu0 0
    %536 = vmatpush1.bf16.msra.mxu0 0
    %537 = vmatprep.mubr.bf16.mxu0 0
    %538 = vmatmul.mubr.bf16.gmra.mrb[0].mxu0 %v273
    %v539 = vpop.f32.mrb[0].mxu0
    %v540 = vadd.f32 %v320, %v539
    %v541 = vpop.f32.mrb[0].mxu0
    %v542 = vpop.f32.mrb[0].mxu0
    %v543 = vadd.f32 %v320, %v542
    %v544 = vpop.f32.mrb[0].mxu0
    %545 = vmatprep.mubr.bf16.mxu0 0
    %546 = vmatmul.mubr.bf16.gmra.mrb[0].mxu0 %v274
    %v547 = vpop.f32.mrb[0].mxu0
    %v548 = vadd.f32 %v320, %v547
    %v549 = vpop.f32.mrb[0].mxu0
    %v550 = vpop.f32.mrb[0].mxu0
    %v551 = vadd.f32 %v320, %v550
    %v552 = vpop.f32.mrb[0].mxu0
    %553 = vdwg.mxu0
    %v554 = vmul.f32 %v487, 0.17677669
    %v555 = vmul.f32 %v491, 0.17677669
    %v556 = vmul.f32 %v497, 0.17677669
    %v557 = vmul.f32 %v501, 0.17677669
    %v558 = vpack.c.bf16 %v555, %v554
    %v559 = vpack.c.bf16 %v557, %v556
    %v560 = vpack.c.bf16 %v493, %v489
    %v561 = vpack.c.bf16 %v503, %v499
    %v562 = vpack.c.bf16 %v543, %v540
    %v563 = vpack.c.bf16 %v551, %v548
    %v564 = vld [vmem:[#allocation5] sm:$0xf]
    %v565 = vld [vmem:[#allocation5 + $0x4] sm:$0xf]
    %v566 = vunpack.c.l.bf16 %v564
    %v567 = vunpack.c.l.bf16 %v565
    %568 = vmatprep.subr.bf16.mxu0 0
    %569 = vmatpush1.bf16.xpose.msra.mxu0 %v560
    %570 = vmatprep.subr.bf16.mxu0 0
    %571 = vmatpush1.bf16.xpose.msra.mxu0 0
    %572 = vmatprep.subr.bf16.mxu0 0
    %573 = vmatpush1.bf16.xpose.msra.mxu0 0
    %574 = vmatprep.subr.bf16.mxu0 0
    %575 = vmatpush1.bf16.xpose.msra.mxu0 0
    %576 = vmatprep.subr.bf16.mxu0 0
    %577 = vmatpush1.bf16.xpose.msra.mxu0 0
    %578 = vmatprep.subr.bf16.mxu0 0
    %579 = vmatpush1.bf16.xpose.msra.mxu0 0
    %580 = vmatprep.subr.bf16.mxu0 0
    %581 = vmatpush1.bf16.xpose.msra.mxu0 0
    %582 = vmatprep.subr.bf16.mxu0 0
    %583 = vmatpush1.bf16.xpose.msra.mxu0 0
    %584 = vmatprep.subr.bf16.mxu0 0
    %585 = vmatpush1.bf16.xpose.msra.mxu0 0
    %586 = vmatprep.subr.bf16.mxu0 0
    %587 = vmatpush1.bf16.xpose.msra.mxu0 0
    %588 = vmatprep.subr.bf16.mxu0 0
    %589 = vmatpush1.bf16.xpose.msra.mxu0 0
    %590 = vmatprep.subr.bf16.mxu0 0
    %591 = vmatpush1.bf16.xpose.msra.mxu0 0
    %592 = vmatprep.subr.bf16.mxu0 0
    %593 = vmatpush1.bf16.xpose.msra.mxu0 0
    %594 = vmatprep.subr.bf16.mxu0 0
    %595 = vmatpush1.bf16.xpose.msra.mxu0 0
    %596 = vmatprep.subr.bf16.mxu0 0
    %597 = vmatpush1.bf16.xpose.msra.mxu0 0
    %598 = vmatprep.subr.bf16.mxu0 0
    %599 = vmatpush1.bf16.xpose.msra.mxu0 0
    %600 = vmatprep.mubr.bf16.mxu0 0
    %601 = vmatmul.mubr.bf16.gmra.mrb[0].mxu0 %v558
    %v602 = vpop.f32.mrb[0].mxu0
    %v603 = vadd.f32 %v566, %v602
    %v604 = vpop.f32.mrb[0].mxu0
    %v605 = vpop.f32.mrb[0].mxu0
    %v606 = vadd.f32 %v567, %v605
    %v607 = vpop.f32.mrb[0].mxu0
    %608 = vdwg.mxu0
    %609 = vmatprep.subr.bf16.mxu0 0
    %610 = vmatpush1.bf16.xpose.msra.mxu0 %v561
    %611 = vmatprep.subr.bf16.mxu0 0
    %612 = vmatpush1.bf16.xpose.msra.mxu0 0
    %613 = vmatprep.subr.bf16.mxu0 0
    %614 = vmatpush1.bf16.xpose.msra.mxu0 0
    %615 = vmatprep.subr.bf16.mxu0 0
    %616 = vmatpush1.bf16.xpose.msra.mxu0 0
    %617 = vmatprep.subr.bf16.mxu0 0
    %618 = vmatpush1.bf16.xpose.msra.mxu0 0
    %619 = vmatprep.subr.bf16.mxu0 0
    %620 = vmatpush1.bf16.xpose.msra.mxu0 0
    %621 = vmatprep.subr.bf16.mxu0 0
    %622 = vmatpush1.bf16.xpose.msra.mxu0 0
    %623 = vmatprep.subr.bf16.mxu0 0
    %624 = vmatpush1.bf16.xpose.msra.mxu0 0
    %625 = vmatprep.subr.bf16.mxu0 0
    %626 = vmatpush1.bf16.xpose.msra.mxu0 0
    %627 = vmatprep.subr.bf16.mxu0 0
    %628 = vmatpush1.bf16.xpose.msra.mxu0 0
    %629 = vmatprep.subr.bf16.mxu0 0
    %630 = vmatpush1.bf16.xpose.msra.mxu0 0
    %631 = vmatprep.subr.bf16.mxu0 0
    %632 = vmatpush1.bf16.xpose.msra.mxu0 0
    %633 = vmatprep.subr.bf16.mxu0 0
    %634 = vmatpush1.bf16.xpose.msra.mxu0 0
    %635 = vmatprep.subr.bf16.mxu0 0
    %636 = vmatpush1.bf16.xpose.msra.mxu0 0
    %637 = vmatprep.subr.bf16.mxu0 0
    %638 = vmatpush1.bf16.xpose.msra.mxu0 0
    %639 = vmatprep.subr.bf16.mxu0 0
    %640 = vmatpush1.bf16.xpose.msra.mxu0 0
    %641 = vmatprep.mubr.bf16.mxu0 0
    %642 = vmatmul.mubr.bf16.gmra.mrb[0].mxu0 %v559
    %v643 = vpop.f32.mrb[0].mxu0
    %v644 = vadd.f32 %v566, %v643
    %v645 = vpop.f32.mrb[0].mxu0
    %v646 = vpop.f32.mrb[0].mxu0
    %v647 = vadd.f32 %v567, %v646
    %v648 = vpop.f32.mrb[0].mxu0
    %649 = vdwg.mxu0
    %vm650 = vcmask 130048
    %v651 = vsel %vm650, %v603, -inf
    %652 = vmax.xlane.f32.xlu0 %v651
    %v653 = vpop.xlane.xlu0 %652
    %v654 = vsel %vm650, %v606, -inf
    %655 = vmax.xlane.f32.xlu0 %v654
    %v656 = vpop.xlane.xlu0 %655
    %v657 = vsel %vm650, %v644, -inf
    %658 = vmax.xlane.f32.xlu0 %v657
    %v659 = vpop.xlane.xlu0 %658
    %v660 = vsel %vm650, %v647, -inf
    %661 = vmax.xlane.f32.xlu0 %v660
    %v662 = vpop.xlane.xlu0 %661
    %v663 = vsub.f32 %v603, %v653
    %v664 = vsub.f32 %v606, %v656
    %v665 = vsub.f32 %v644, %v659
    %v666 = vsub.f32 %v647, %v662
    %v667 = vmul.f32 %v663, 1.442695
    %v668 = vpow.pop %v667
    %v669 = vmul.f32 %v664, 1.442695
    %v670 = vpow.pop %v669
    %v671 = vmul.f32 %v665, 1.442695
    %v672 = vpow.pop %v671
    %v673 = vmul.f32 %v666, 1.442695
    %v674 = vpow.pop %v673
    %v675 = vsel %vm650, %v668, 0.0
    %676 = vadd.xlane.f32.xlu0 %v675
    %v677 = vpop.xlane.xlu0 %676
    %v678 = vsel %vm650, %v670, 0.0
    %679 = vadd.xlane.f32.xlu0 %v678
    %v680 = vpop.xlane.xlu0 %679
    %v681 = vsel %vm650, %v672, 0.0
    %682 = vadd.xlane.f32.xlu0 %v681
    %v683 = vpop.xlane.xlu0 %682
    %v684 = vsel %vm650, %v674, 0.0
    %685 = vadd.xlane.f32.xlu0 %v684
    %v686 = vpop.xlane.xlu0 %685
    %v687 = vrcp.pop %v677
    %v688 = vrcp.pop %v680
    %v689 = vrcp.pop %v683
    %v690 = vrcp.pop %v686
    %v691 = vmul.f32 %v668, %v687
    %v692 = vmul.f32 %v670, %v688
    %v693 = vmul.f32 %v672, %v689
    %v694 = vmul.f32 %v674, %v690
    %v695 = vpack.c.bf16 %v692, %v691
    %v696 = vpack.c.bf16 %v694, %v693
    %v698 = vsel %vm650, %v695, 0
    %700 = vmatprep.subr.bf16.mxu0 0
    %701 = vmatpush1.bf16.msra.mxu0 %v562
    %702 = vmatprep.subr.bf16.mxu0 0
    %703 = vmatpush1.bf16.msra.mxu0 0
    %704 = vmatprep.subr.bf16.mxu0 0
    %705 = vmatpush1.bf16.msra.mxu0 0
    %706 = vmatprep.subr.bf16.mxu0 0
    %707 = vmatpush1.bf16.msra.mxu0 0
    %708 = vmatprep.subr.bf16.mxu0 0
    %709 = vmatpush1.bf16.msra.mxu0 0
    %710 = vmatprep.subr.bf16.mxu0 0
    %711 = vmatpush1.bf16.msra.mxu0 0
    %712 = vmatprep.subr.bf16.mxu0 0
    %713 = vmatpush1.bf16.msra.mxu0 0
    %714 = vmatprep.subr.bf16.mxu0 0
    %715 = vmatpush1.bf16.msra.mxu0 0
    %716 = vmatprep.subr.bf16.mxu0 0
    %717 = vmatpush1.bf16.msra.mxu0 0
    %718 = vmatprep.subr.bf16.mxu0 0
    %719 = vmatpush1.bf16.msra.mxu0 0
    %720 = vmatprep.subr.bf16.mxu0 0
    %721 = vmatpush1.bf16.msra.mxu0 0
    %722 = vmatprep.subr.bf16.mxu0 0
    %723 = vmatpush1.bf16.msra.mxu0 0
    %724 = vmatprep.subr.bf16.mxu0 0
    %725 = vmatpush1.bf16.msra.mxu0 0
    %726 = vmatprep.subr.bf16.mxu0 0
    %727 = vmatpush1.bf16.msra.mxu0 0
    %728 = vmatprep.subr.bf16.mxu0 0
    %729 = vmatpush1.bf16.msra.mxu0 0
    %730 = vmatprep.subr.bf16.mxu0 0
    %731 = vmatpush1.bf16.msra.mxu0 0
    %732 = vmatprep.mubr.bf16.mxu0 0
    %733 = vmatmul.mubr.bf16.gmra.mrb[0].mxu0 %v698
    %v734 = vpop.f32.mrb[0].mxu0
    %v735 = vadd.f32 0.0, %v734
    %v736 = vpop.f32.mrb[0].mxu0
    %v737 = vpop.f32.mrb[0].mxu0
    %v738 = vadd.f32 0.0, %v737
    %v739 = vpop.f32.mrb[0].mxu0
    %740 = vdwg.mxu0
    %v742 = vsel %vm650, %v696, 0
    %744 = vmatprep.subr.bf16.mxu0 0
    %745 = vmatpush1.bf16.msra.mxu0 %v563
    %746 = vmatprep.subr.bf16.mxu0 0
    %747 = vmatpush1.bf16.msra.mxu0 0
    %748 = vmatprep.subr.bf16.mxu0 0
    %749 = vmatpush1.bf16.msra.mxu0 0
    %750 = vmatprep.subr.bf16.mxu0 0
    %751 = vmatpush1.bf16.msra.mxu0 0
    %752 = vmatprep.subr.bf16.mxu0 0
    %753 = vmatpush1.bf16.msra.mxu0 0
    %754 = vmatprep.subr.bf16.mxu0 0
    %755 = vmatpush1.bf16.msra.mxu0 0
    %756 = vmatprep.subr.bf16.mxu0 0
    %757 = vmatpush1.bf16.msra.mxu0 0
    %758 = vmatprep.subr.bf16.mxu0 0
    %759 = vmatpush1.bf16.msra.mxu0 0
    %760 = vmatprep.subr.bf16.mxu0 0
    %761 = vmatpush1.bf16.msra.mxu0 0
    %762 = vmatprep.subr.bf16.mxu0 0
    %763 = vmatpush1.bf16.msra.mxu0 0
    %764 = vmatprep.subr.bf16.mxu0 0
    %765 = vmatpush1.bf16.msra.mxu0 0
    %766 = vmatprep.subr.bf16.mxu0 0
    %767 = vmatpush1.bf16.msra.mxu0 0
    %768 = vmatprep.subr.bf16.mxu0 0
    %769 = vmatpush1.bf16.msra.mxu0 0
    %770 = vmatprep.subr.bf16.mxu0 0
    %771 = vmatpush1.bf16.msra.mxu0 0
    %772 = vmatprep.subr.bf16.mxu0 0
    %773 = vmatpush1.bf16.msra.mxu0 0
    %774 = vmatprep.subr.bf16.mxu0 0
    %775 = vmatpush1.bf16.msra.mxu0 0
    %776 = vmatprep.mubr.bf16.mxu0 0
    %777 = vmatmul.mubr.bf16.gmra.mrb[0].mxu0 %v742
    %v778 = vpop.f32.mrb[0].mxu0
    %v779 = vadd.f32 0.0, %v778
    %v780 = vpop.f32.mrb[0].mxu0
    %v781 = vpop.f32.mrb[0].mxu0
    %v782 = vadd.f32 0.0, %v781
    %v783 = vpop.f32.mrb[0].mxu0
    %784 = vdwg.mxu0
    %v785 = vpack.c.bf16 %v738, %v735
    %v786 = vpack.c.bf16 %v782, %v779
    %v787 = vld [vmem:[#allocation13] sm:$0xf]
    %v788 = vld [vmem:[#allocation13 + $0x4] sm:$0xf]
    %v789 = vld [vmem:[#allocation13 + $0x8] sm:$0xf]
    %v790 = vld [vmem:[#allocation13 + $0xc] sm:$0xf]
    %v791 = vld [vmem:[#allocation13 + $0x10] sm:$0xf]
    %v792 = vld [vmem:[#allocation13 + $0x14] sm:$0xf]
    %v793 = vld [vmem:[#allocation13 + $0x18] sm:$0xf]
    %v794 = vld [vmem:[#allocation13 + $0x1c] sm:$0xf]
    %v795 = vld [vmem:[#allocation13 + $0x20] sm:$0xf]
    %v796 = vld [vmem:[#allocation13 + $0x24] sm:$0xf]
    %v797 = vld [vmem:[#allocation13 + $0x28] sm:$0xf]
    %v798 = vld [vmem:[#allocation13 + $0x2c] sm:$0xf]
    %v799 = vld [vmem:[#allocation13 + $0x30] sm:$0xf]
    %v800 = vld [vmem:[#allocation13 + $0x34] sm:$0xf]
    %v801 = vld [vmem:[#allocation13 + $0x38] sm:$0xf]
    %v802 = vld [vmem:[#allocation13 + $0x3c] sm:$0xf]
    %v803 = vld [vmem:[#allocation14] sm:$0x1]
    %v805 = vlaneseq
    %v806 = vshrl.u32 %v805, 7
    %v807 = vsub.s32 0, %v806
    %v808 = vrot.slane %v803, %v807
    %v826 = vunpack.c.l.b16 %v787
    %v827 = vunpack.c.l.b16 %v788
    %v828 = vunpack.c.l.b16 %v789
    %v829 = vunpack.c.l.b16 %v790
    %v830 = vunpack.c.l.b16 %v791
    %v831 = vunpack.c.l.b16 %v792
    %v832 = vunpack.c.l.b16 %v793
    %v833 = vunpack.c.l.b16 %v794
    %v834 = vunpack.c.l.b16 %v795
    %v835 = vunpack.c.l.b16 %v796
    %v836 = vunpack.c.l.b16 %v797
    %v837 = vunpack.c.l.b16 %v798
    %v838 = vunpack.c.l.b16 %v799
    %v839 = vunpack.c.l.b16 %v800
    %v840 = vunpack.c.l.b16 %v801
    %v841 = vunpack.c.l.b16 %v802
    %v842 = vpack.c.b16 %v827, %v826
    %v843 = vpack.c.b16 %v829, %v828
    %v844 = vpack.c.b16 %v831, %v830
    %v845 = vpack.c.b16 %v833, %v832
    %v846 = vpack.c.b16 %v835, %v834
    %v847 = vpack.c.b16 %v837, %v836
    %v848 = vpack.c.b16 %v839, %v838
    %v849 = vpack.c.b16 %v841, %v840
    %858 = vmatprep.subr.bf16.mxu0 0
    %859 = vmatpush1.bf16.msra.mxu0 %v842
    %860 = vmatprep.subr.bf16.mxu0 0
    %861 = vmatpush1.bf16.msra.mxu0 %v843
    %862 = vmatprep.subr.bf16.mxu0 0
    %863 = vmatpush1.bf16.msra.mxu0 %v844
    %864 = vmatprep.subr.bf16.mxu0 0
    %865 = vmatpush1.bf16.msra.mxu0 %v845
    %866 = vmatprep.subr.bf16.mxu0 0
    %867 = vmatpush1.bf16.msra.mxu0 %v846
    %868 = vmatprep.subr.bf16.mxu0 0
    %869 = vmatpush1.bf16.msra.mxu0 %v847
    %870 = vmatprep.subr.bf16.mxu0 0
    %871 = vmatpush1.bf16.msra.mxu0 %v848
    %872 = vmatprep.subr.bf16.mxu0 0
    %873 = vmatpush1.bf16.msra.mxu0 %v849
    %874 = vmatprep.subr.bf16.mxu0 0
    %875 = vmatpush1.bf16.msra.mxu0 0
    %876 = vmatprep.subr.bf16.mxu0 0
    %877 = vmatpush1.bf16.msra.mxu0 0
    %878 = vmatprep.subr.bf16.mxu0 0
    %879 = vmatpush1.bf16.msra.mxu0 0
    %880 = vmatprep.subr.bf16.mxu0 0
    %881 = vmatpush1.bf16.msra.mxu0 0
    %882 = vmatprep.subr.bf16.mxu0 0
    %883 = vmatpush1.bf16.msra.mxu0 0
    %884 = vmatprep.subr.bf16.mxu0 0
    %885 = vmatpush1.bf16.msra.mxu0 0
    %886 = vmatprep.subr.bf16.mxu0 0
    %887 = vmatpush1.bf16.msra.mxu0 0
    %888 = vmatprep.subr.bf16.mxu0 0
    %889 = vmatpush1.bf16.msra.mxu0 0
    %890 = vmatprep.mubr.bf16.mxu0 0
    %891 = vmatmul.mubr.bf16.gmra.mrb[0].mxu0 %v785
    %v892 = vpop.f32.mrb[0].mxu0
    %v893 = vadd.f32 %v808, %v892
    %v894 = vpop.f32.mrb[0].mxu0
    %v895 = vpop.f32.mrb[0].mxu0
    %v896 = vadd.f32 %v808, %v895
    %v897 = vpop.f32.mrb[0].mxu0
    %898 = vmatprep.mubr.bf16.mxu0 0
    %899 = vmatmul.mubr.bf16.gmra.mrb[0].mxu0 %v786
    %v900 = vpop.f32.mrb[0].mxu0
    %v901 = vadd.f32 %v808, %v900
    %v902 = vpop.f32.mrb[0].mxu0
    %v903 = vpop.f32.mrb[0].mxu0
    %v904 = vadd.f32 %v808, %v903
    %v905 = vpop.f32.mrb[0].mxu0
    %906 = vdwg.mxu0
    %v907 = vadd.f32 %v269, %v893
    %v908 = vadd.f32 %v270, %v896
    %v909 = vadd.f32 %v271, %v901
    %v910 = vadd.f32 %v272, %v904
    %911 = vadd.xlane.f32.xlu0 %v907
    %v912 = vpop.xlane.xlu0 %911
    %913 = vadd.xlane.f32.xlu0 %v908
    %v914 = vpop.xlane.xlu0 %913
    %915 = vadd.xlane.f32.xlu0 %v909
    %v916 = vpop.xlane.xlu0 %915
    %917 = vadd.xlane.f32.xlu0 %v910
    %v918 = vpop.xlane.xlu0 %917
    %v919 = vmul.f32 %v912, 0.03125
    %v920 = vmul.f32 %v914, 0.03125
    %v921 = vmul.f32 %v916, 0.03125
    %v922 = vmul.f32 %v918, 0.03125
    %v923 = vsub.f32 %v907, %v919
    %v924 = vsub.f32 %v908, %v920
    %v925 = vsub.f32 %v909, %v921
    %v926 = vsub.f32 %v910, %v922
    %v927 = vmul.f32 %v923, %v204
    %v928 = vmul.f32 %v924, %v204
    %v929 = vmul.f32 %v925, %v204
    %v930 = vmul.f32 %v926, %v204
    %v931 = vmul.f32 %v927, %v927
    %v932 = vmul.f32 %v928, %v928
    %v933 = vmul.f32 %v929, %v929
    %v934 = vmul.f32 %v930, %v930
    %935 = vadd.xlane.f32.xlu0 %v931
    %v936 = vpop.xlane.xlu0 %935
    %937 = vadd.xlane.f32.xlu0 %v932
    %v938 = vpop.xlane.xlu0 %937
    %939 = vadd.xlane.f32.xlu0 %v933
    %v940 = vpop.xlane.xlu0 %939
    %941 = vadd.xlane.f32.xlu0 %v934
    %v942 = vpop.xlane.xlu0 %941
    %v943 = vmul.f32 %v936, 0.03125
    %v944 = vmul.f32 %v938, 0.03125
    %v945 = vmul.f32 %v940, 0.03125
    %v946 = vmul.f32 %v942, 0.03125
    %v947 = vadd.f32 %v943, 1e-05
    %v948 = vadd.f32 %v944, 1e-05
    %v949 = vadd.f32 %v945, 1e-05
    %v950 = vadd.f32 %v946, 1e-05
    %v951 = vrsqrt.pop %v947
    %v952 = vrsqrt.pop %v948
    %v953 = vrsqrt.pop %v949
    %v954 = vrsqrt.pop %v950
    %v955 = vmul.f32 %v927, %v951
    %v956 = vmul.f32 %v928, %v952
    %v957 = vmul.f32 %v929, %v953
    %v958 = vmul.f32 %v930, %v954
    %v959 = vmul.f32 %v955, %v257
    %v960 = vmul.f32 %v956, %v257
    %v961 = vmul.f32 %v957, %v257
    %v962 = vmul.f32 %v958, %v257
    %v963 = vadd.f32 %v959, %v267
    %v964 = vadd.f32 %v960, %v267
    %v965 = vadd.f32 %v961, %v267
    %v966 = vadd.f32 %v962, %v267
    %v967 = vpack.c.bf16 %v964, %v963
    %v968 = vpack.c.bf16 %v966, %v965
    %v969 = vld [vmem:[#allocation16] sm:$0xf]
    %v970 = vld [vmem:[#allocation16 + $0x4] sm:$0xf]
    %v971 = vld [vmem:[#allocation16 + $0x8] sm:$0xf]
    %v972 = vld [vmem:[#allocation16 + $0xc] sm:$0xf]
    %v973 = vld [vmem:[#allocation16 + $0x10] sm:$0xf]
    %v974 = vld [vmem:[#allocation16 + $0x14] sm:$0xf]
    %v975 = vld [vmem:[#allocation16 + $0x18] sm:$0xf]
    %v976 = vld [vmem:[#allocation16 + $0x1c] sm:$0xf]
    %v977 = vld [vmem:[#allocation16 + $0x20] sm:$0xf]
    %v978 = vld [vmem:[#allocation16 + $0x24] sm:$0xf]
    %v979 = vld [vmem:[#allocation16 + $0x28] sm:$0xf]
    %v980 = vld [vmem:[#allocation16 + $0x2c] sm:$0xf]
    %v981 = vld [vmem:[#allocation16 + $0x30] sm:$0xf]
    %v982 = vld [vmem:[#allocation16 + $0x34] sm:$0xf]
    %v983 = vld [vmem:[#allocation16 + $0x38] sm:$0xf]
    %v984 = vld [vmem:[#allocation16 + $0x3c] sm:$0xf]
    %v985 = vld [vmem:[#allocation17] sm:$0x1]
    %v987 = vlaneseq
    %v988 = vshrl.u32 %v987, 7
    %v989 = vsub.s32 0, %v988
    %v990 = vrot.slane %v985, %v989
    %v1008 = vunpack.c.l.b16 %v969
    %v1009 = vunpack.c.l.b16 %v970
    %v1010 = vunpack.c.l.b16 %v971
    %v1011 = vunpack.c.l.b16 %v972
    %v1012 = vunpack.c.l.b16 %v973
    %v1013 = vunpack.c.l.b16 %v974
    %v1014 = vunpack.c.l.b16 %v975
    %v1015 = vunpack.c.l.b16 %v976
    %v1016 = vunpack.c.l.b16 %v977
    %v1017 = vunpack.c.l.b16 %v978
    %v1018 = vunpack.c.l.b16 %v979
    %v1019 = vunpack.c.l.b16 %v980
    %v1020 = vunpack.c.l.b16 %v981
    %v1021 = vunpack.c.l.b16 %v982
    %v1022 = vunpack.c.l.b16 %v983
    %v1023 = vunpack.c.l.b16 %v984
    %v1024 = vpack.c.b16 %v1009, %v1008
    %v1025 = vpack.c.b16 %v1011, %v1010
    %v1026 = vpack.c.b16 %v1013, %v1012
    %v1027 = vpack.c.b16 %v1015, %v1014
    %v1028 = vpack.c.b16 %v1017, %v1016
    %v1029 = vpack.c.b16 %v1019, %v1018
    %v1030 = vpack.c.b16 %v1021, %v1020
    %v1031 = vpack.c.b16 %v1023, %v1022
    %1040 = vmatprep.subr.bf16.mxu0 0
    %1041 = vmatpush1.bf16.msra.mxu0 %v1024
    %1042 = vmatprep.subr.bf16.mxu0 0
    %1043 = vmatpush1.bf16.msra.mxu0 %v1025
    %1044 = vmatprep.subr.bf16.mxu0 0
    %1045 = vmatpush1.bf16.msra.mxu0 %v1026
    %1046 = vmatprep.subr.bf16.mxu0 0
    %1047 = vmatpush1.bf16.msra.mxu0 %v1027
    %1048 = vmatprep.subr.bf16.mxu0 0
    %1049 = vmatpush1.bf16.msra.mxu0 %v1028
    %1050 = vmatprep.subr.bf16.mxu0 0
    %1051 = vmatpush1.bf16.msra.mxu0 %v1029
    %1052 = vmatprep.subr.bf16.mxu0 0
    %1053 = vmatpush1.bf16.msra.mxu0 %v1030
    %1054 = vmatprep.subr.bf16.mxu0 0
    %1055 = vmatpush1.bf16.msra.mxu0 %v1031
    %1056 = vmatprep.subr.bf16.mxu0 0
    %1057 = vmatpush1.bf16.msra.mxu0 0
    %1058 = vmatprep.subr.bf16.mxu0 0
    %1059 = vmatpush1.bf16.msra.mxu0 0
    %1060 = vmatprep.subr.bf16.mxu0 0
    %1061 = vmatpush1.bf16.msra.mxu0 0
    %1062 = vmatprep.subr.bf16.mxu0 0
    %1063 = vmatpush1.bf16.msra.mxu0 0
    %1064 = vmatprep.subr.bf16.mxu0 0
    %1065 = vmatpush1.bf16.msra.mxu0 0
    %1066 = vmatprep.subr.bf16.mxu0 0
    %1067 = vmatpush1.bf16.msra.mxu0 0
    %1068 = vmatprep.subr.bf16.mxu0 0
    %1069 = vmatpush1.bf16.msra.mxu0 0
    %1070 = vmatprep.subr.bf16.mxu0 0
    %1071 = vmatpush1.bf16.msra.mxu0 0
    %1072 = vmatprep.mubr.bf16.mxu0 0
    %1073 = vmatmul.mubr.bf16.gmra.mrb[0].mxu0 %v967
    %v1074 = vpop.f32.mrb[0].mxu0
    %v1075 = vadd.f32 %v990, %v1074
    %v1076 = vpop.f32.mrb[0].mxu0
    %v1077 = vpop.f32.mrb[0].mxu0
    %v1078 = vadd.f32 %v990, %v1077
    %v1079 = vpop.f32.mrb[0].mxu0
    %1080 = vmatprep.mubr.bf16.mxu0 0
    %1081 = vmatmul.mubr.bf16.gmra.mrb[0].mxu0 %v968
    %v1082 = vpop.f32.mrb[0].mxu0
    %v1083 = vadd.f32 %v990, %v1082
    %v1084 = vpop.f32.mrb[0].mxu0
    %v1085 = vpop.f32.mrb[0].mxu0
    %v1086 = vadd.f32 %v990, %v1085
    %v1087 = vpop.f32.mrb[0].mxu0
    %1088 = vdwg.mxu0
    %v1089 = vmul.f32 %v1075, 0.5
    %v1090 = vmul.f32 %v1078, 0.5
    %v1091 = vmul.f32 %v1083, 0.5
    %v1092 = vmul.f32 %v1086, 0.5
    %v1093 = vmul.f32 %v1075, 0.70710677
    %v1094 = vmul.f32 %v1078, 0.70710677
    %v1095 = vmul.f32 %v1083, 0.70710677
    %v1096 = vmul.f32 %v1086, 0.70710677
    %v1097 = verf.f32.pop %v1093
    %v1098 = verf.f32.pop %v1094
    %v1099 = verf.f32.pop %v1095
    %v1100 = verf.f32.pop %v1096
    %v1101 = vadd.f32 %v1097, 1.0
    %v1102 = vadd.f32 %v1098, 1.0
    %v1103 = vadd.f32 %v1099, 1.0
    %v1104 = vadd.f32 %v1100, 1.0
    %v1105 = vmul.f32 %v1089, %v1101
    %v1106 = vmul.f32 %v1090, %v1102
    %v1107 = vmul.f32 %v1091, %v1103
    %v1108 = vmul.f32 %v1092, %v1104
    %v1109 = vpack.c.bf16 %v1106, %v1105
    %v1110 = vpack.c.bf16 %v1108, %v1107
    %v1111 = vld [vmem:[#allocation19] sm:$0xf]
    %v1112 = vld [vmem:[#allocation19 + $0x4] sm:$0xf]
    %v1113 = vld [vmem:[#allocation19 + $0x8] sm:$0xf]
    %v1114 = vld [vmem:[#allocation19 + $0xc] sm:$0xf]
    %v1115 = vld [vmem:[#allocation19 + $0x10] sm:$0xf]
    %v1116 = vld [vmem:[#allocation19 + $0x14] sm:$0xf]
    %v1117 = vld [vmem:[#allocation19 + $0x18] sm:$0xf]
    %v1118 = vld [vmem:[#allocation19 + $0x1c] sm:$0xf]
    %v1119 = vld [vmem:[#allocation19 + $0x20] sm:$0xf]
    %v1120 = vld [vmem:[#allocation19 + $0x24] sm:$0xf]
    %v1121 = vld [vmem:[#allocation19 + $0x28] sm:$0xf]
    %v1122 = vld [vmem:[#allocation19 + $0x2c] sm:$0xf]
    %v1123 = vld [vmem:[#allocation19 + $0x30] sm:$0xf]
    %v1124 = vld [vmem:[#allocation19 + $0x34] sm:$0xf]
    %v1125 = vld [vmem:[#allocation19 + $0x38] sm:$0xf]
    %v1126 = vld [vmem:[#allocation19 + $0x3c] sm:$0xf]
    %v1127 = vld [vmem:[#allocation20] sm:$0x1]
    %v1129 = vlaneseq
    %v1130 = vshrl.u32 %v1129, 7
    %v1131 = vsub.s32 0, %v1130
    %v1132 = vrot.slane %v1127, %v1131
    %v1150 = vunpack.c.l.b16 %v1111
    %v1151 = vunpack.c.l.b16 %v1112
    %v1152 = vunpack.c.l.b16 %v1113
    %v1153 = vunpack.c.l.b16 %v1114
    %v1154 = vunpack.c.l.b16 %v1115
    %v1155 = vunpack.c.l.b16 %v1116
    %v1156 = vunpack.c.l.b16 %v1117
    %v1157 = vunpack.c.l.b16 %v1118
    %v1158 = vunpack.c.l.b16 %v1119
    %v1159 = vunpack.c.l.b16 %v1120
    %v1160 = vunpack.c.l.b16 %v1121
    %v1161 = vunpack.c.l.b16 %v1122
    %v1162 = vunpack.c.l.b16 %v1123
    %v1163 = vunpack.c.l.b16 %v1124
    %v1164 = vunpack.c.l.b16 %v1125
    %v1165 = vunpack.c.l.b16 %v1126
    %v1166 = vpack.c.b16 %v1151, %v1150
    %v1167 = vpack.c.b16 %v1153, %v1152
    %v1168 = vpack.c.b16 %v1155, %v1154
    %v1169 = vpack.c.b16 %v1157, %v1156
    %v1170 = vpack.c.b16 %v1159, %v1158
    %v1171 = vpack.c.b16 %v1161, %v1160
    %v1172 = vpack.c.b16 %v1163, %v1162
    %v1173 = vpack.c.b16 %v1165, %v1164
    %1182 = vmatprep.subr.bf16.mxu0 0
    %1183 = vmatpush1.bf16.msra.mxu0 %v1166
    %1184 = vmatprep.subr.bf16.mxu0 0
    %1185 = vmatpush1.bf16.msra.mxu0 %v1167
    %1186 = vmatprep.subr.bf16.mxu0 0
    %1187 = vmatpush1.bf16.msra.mxu0 %v1168
    %1188 = vmatprep.subr.bf16.mxu0 0
    %1189 = vmatpush1.bf16.msra.mxu0 %v1169
    %1190 = vmatprep.subr.bf16.mxu0 0
    %1191 = vmatpush1.bf16.msra.mxu0 %v1170
    %1192 = vmatprep.subr.bf16.mxu0 0
    %1193 = vmatpush1.bf16.msra.mxu0 %v1171
    %1194 = vmatprep.subr.bf16.mxu0 0
    %1195 = vmatpush1.bf16.msra.mxu0 %v1172
    %1196 = vmatprep.subr.bf16.mxu0 0
    %1197 = vmatpush1.bf16.msra.mxu0 %v1173
    %1198 = vmatprep.subr.bf16.mxu0 0
    %1199 = vmatpush1.bf16.msra.mxu0 0
    %1200 = vmatprep.subr.bf16.mxu0 0
    %1201 = vmatpush1.bf16.msra.mxu0 0
    %1202 = vmatprep.subr.bf16.mxu0 0
    %1203 = vmatpush1.bf16.msra.mxu0 0
    %1204 = vmatprep.subr.bf16.mxu0 0
    %1205 = vmatpush1.bf16.msra.mxu0 0
    %1206 = vmatprep.subr.bf16.mxu0 0
    %1207 = vmatpush1.bf16.msra.mxu0 0
    %1208 = vmatprep.subr.bf16.mxu0 0
    %1209 = vmatpush1.bf16.msra.mxu0 0
    %1210 = vmatprep.subr.bf16.mxu0 0
    %1211 = vmatpush1.bf16.msra.mxu0 0
    %1212 = vmatprep.subr.bf16.mxu0 0
    %1213 = vmatpush1.bf16.msra.mxu0 0
    %1214 = vmatprep.mubr.bf16.mxu0 0
    %1215 = vmatmul.mubr.bf16.gmra.mrb[0].mxu0 %v1109
    %v1216 = vpop.f32.mrb[0].mxu0
    %v1217 = vadd.f32 %v1132, %v1216
    %v1218 = vpop.f32.mrb[0].mxu0
    %v1219 = vpop.f32.mrb[0].mxu0
    %v1220 = vadd.f32 %v1132, %v1219
    %v1221 = vpop.f32.mrb[0].mxu0
    %1222 = vmatprep.mubr.bf16.mxu0 0
    %1223 = vmatmul.mubr.bf16.gmra.mrb[0].mxu0 %v1110
    %v1224 = vpop.f32.mrb[0].mxu0
    %v1225 = vadd.f32 %v1132, %v1224
    %v1226 = vpop.f32.mrb[0].mxu0
    %v1227 = vpop.f32.mrb[0].mxu0
    %v1228 = vadd.f32 %v1132, %v1227
    %v1229 = vpop.f32.mrb[0].mxu0
    %1230 = vdwg.mxu0
    %v1231 = vadd.f32 %v963, %v1217
    %v1232 = vadd.f32 %v964, %v1220
    %v1233 = vadd.f32 %v965, %v1225
    %v1234 = vadd.f32 %v966, %v1228
    %1235 = vst [vmem:[#allocation22] sm:$0xff] %v1231
    %1236 = vst [vmem:[#allocation22 + $0x8] sm:$0xff] %v1232
    %1237 = vst [vmem:[#allocation22 + $0x10] sm:$0xff] %v1233
    %1238 = vst [vmem:[#allocation22 + $0x18] sm:$0xff] %v1234
    // Predicated region
    $region98: #{_forward_impl.1} parent=1 // pred_check
      _
    $region99: #{_forward_impl.1} parent=1 // pred_check_branch
      %1240 = sbr.rel (0) target = $region101
    $region100: #{_forward_impl.1} parent=1 // pred_region
      %s1242 = ssub.s32 512, 512
      %1243 = vsyncadd [#allocation4], %s1242
      %s1244 = sshll.u32 [#allocation22], 4
      %s1245 = int_to_ptr.vmem [resolvable:$true] %s1244
      %1250 = dma.vmem_to_hbm [thread:$0]  %s1245, 512, %s12, [#allocation4], 128, 128, 8
    $region101: #{_forward_impl.1} parent=1 // pred_fallthru
      _
    // Predicated region
    $region102: #{_forward_impl.1} parent=1 // pred_check
      _
    $region103: #{_forward_impl.1} parent=1 // pred_check_branch
      %1252 = sbr.rel (0) target = $region105
    $region104: #{_forward_impl.1} parent=1 // pred_region
      %1253 = dma.done [#allocation4], 512
    $region105: #{_forward_impl.1} parent=1 // pred_fallthru
      _
    %1254 = vsyncpa [#allocation3], 1
    %1255 = vsyncpa [#allocation6], 1
    %1256 = vsyncpa [#allocation9], 1
    %1257 = vsyncpa [#allocation12], 1
    %1258 = vsyncpa [#allocation15], 1
    %1259 = vsyncpa [#allocation18], 1
    %1260 = vsyncpa [#allocation21], 1
    %1261 = vsyncpa [#allocation4], 1

</llo_original>
